<compile_context>
chip_gen: v7x
topology: tpu7x:2x2x1
jax: 0.10.0
libtpu: 0.0.40
codegen_flags: <defaults>
</compile_context>

<pallas_src>
import functools
import math

import jax
import jax.numpy as jnp
from jax.experimental import pallas as pl
from jax.experimental.pallas import tpu as pltpu

_LANES = 128  # batch lanes per inner sub-tile (one vreg row)


def _sigmoid(x):
    # exact sigmoid routed through the EUP tanh unit (stable for all x)
    return 0.5 * (jnp.tanh(0.5 * x) + 1.0)


def _log_sigmoid(x):
    # stable log(sigmoid(x)) = min(x, 0) - log(1 + exp(-|x|))
    return jnp.minimum(x, 0.0) - jnp.log(1.0 + jnp.exp(-jnp.abs(x)))


def _routing_kernel(
    r0_ref,    # SMEM [1, 1]                learned initial routing prob
    a_ref,     # [n_inp, TB]                input scores, batch on lanes
    mu_ref,    # [CD, n_inp, TB]            input capsules, cd = c*d_inp + d
    w_ref,     # [DH, n_inp, n_out]         W,  dh = d*d_out + h
    bp_ref,    # [CH, n_inp, n_out]         B,  ch = c*d_out + h
    bubi_ref,  # [n_inp, n_out]             beta_use + beta_ign
    bit_ref,   # [n_out, n_inp]             beta_ign^T (for c0 matmul)
    aw_ref,    # [n_iters, n_out, n_out]    a_scaler weights
    ab_ref,    # [n_iters, n_out, 1]        a_scaler biases
    mw_ref,    # [2*n_out, 4*n_out]         mu_scaler weight (final iter only)
    mb_ref,    # [2*n_out, 1]               mu_scaler bias   (final iter only)
    out_ref,   # [5*n_out, TB]              packed (a_out | mu_out | sig2_out)
    *, d_cov, d_inp, d_out, n_iters, eps,
):
    n_inp, n_out = bubi_ref.shape
    CH = d_cov * d_out
    TB = a_ref.shape[-1]
    f32 = jnp.float32
    r0 = r0_ref[0, 0]
    n_sub = TB // _LANES

    # Static sub-tile loop over 128-lane batch slices (n_sub is small & static).
    for s in range(n_sub):
        col = pl.ds(s * _LANES, _LANES)

        f_a = _sigmoid(a_ref[:, col])                               # [n_inp, L]

        # ---- votes V[ch][i, j, t] = sum_d mu[c,d][i,t] * W[d,h][i,j] + B[c,h][i,j]
        V = []
        for c in range(d_cov):
            for h in range(d_out):
                v = (mu_ref[c * d_inp + 0, :, col][:, None, :]
                     * w_ref[0 * d_out + h][:, :, None])
                for d in range(1, d_inp):
                    v = v + (mu_ref[c * d_inp + d, :, col][:, None, :]
                             * w_ref[d * d_out + h][:, :, None])
                V.append(v + bp_ref[c * d_out + h][:, :, None])

        # ---- iteration-invariant pieces (hoisted out of the iteration loop)
        bubi_b = jnp.broadcast_to(bubi_ref[...][:, :, None],
                                  (n_inp, n_out, _LANES))            # bu+bi
        c0 = jnp.dot(bit_ref[...], f_a, preferred_element_type=f32)  # [n_out,L]

        a_out = q = log_det = None
        mu_pre = sig2 = None

        for it in range(n_iters):            # small static loop -> unrolled
            last = it == n_iters - 1

            # ---- routing weights D_use = f_a * R
            if it == 0:
                D_use = f_a[:, None, :] * r0                     # [n_inp, 1, L]
            else:
                # logits[i,j,t] = log_sigmoid(a_out)[j,t] - log_det[j,t] - q[i,j,t]
                base = (_log_sigmoid(a_out) - log_det)[None, :, :]
                logits = base - q                                # bcast in sub
                m = jnp.max(logits, axis=1, keepdims=True)       # over n_out
                e = jnp.exp(logits - m)
                inv_den = pl.reciprocal(jnp.sum(e, axis=1), approx=True)
                D_use = e * (f_a * inv_den)[:, None, :]          # f_a * softmax

            # ---- weighted statistics (D_ign eliminated algebraically)
            a_temp = jnp.sum(bubi_b * D_use, axis=0) - c0        # [n_out, L]
            over = 1.0 / (jnp.sum(D_use, axis=0) + eps)          # exact

            ga = (jnp.dot(aw_ref[it], a_temp, preferred_element_type=f32)
                  + ab_ref[it])
            a_out = a_temp * _sigmoid(ga)

            if last:
                # keep mu_pre / sig2 for the outputs
                mu_pre, sig2 = [], []
                for ch in range(CH):
                    m_ch = jnp.sum(D_use * V[ch], axis=0) * over
                    mu_pre.append(m_ch)
                    vl = (V[ch] - m_ch[None, :, :]) ** 2
                    sig2.append(jnp.sum(D_use * vl, axis=0) * over + eps)
            else:
                # carry q = sum_ch (V-mu)^2 * 0.5/sig2 and log_det into the
                # next iteration (reuses vl already computed for sig2).
                q = sig2_prod = None
                for ch in range(CH):
                    m_ch = jnp.sum(D_use * V[ch], axis=0) * over
                    vl = (V[ch] - m_ch[None, :, :]) ** 2
                    s_ch = jnp.sum(D_use * vl, axis=0) * over + eps
                    sig2_prod = s_ch if ch == 0 else sig2_prod * s_ch
                    half_inv = 0.5 * pl.reciprocal(s_ch, approx=True)
                    contrib = vl * half_inv[None, :, :]
                    q = contrib if ch == 0 else q + contrib
                log_det = 0.5 * jnp.log(sig2_prod)               # one EUP log

        # ---- final-iteration mu scaler (the only place it is ever consumed)
        ins = jnp.concatenate(mu_pre + sig2, axis=0)             # [4*n_out, L]
        gm = (jnp.dot(mw_ref[...], ins, preferred_element_type=f32)
              + mb_ref[...])                                     # [2*n_out, L]
        sm = _sigmoid(gm)

        # ---- direct, aligned, lane-dense sub-slice stores (no concat temp)
        out_ref[pl.ds(0, n_out), col] = a_out
        for ch in range(CH):
            out_ref[pl.ds((1 + ch) * n_out, n_out), col] = (
                mu_pre[ch] * sm[ch * n_out:(ch + 1) * n_out])
        for ch in range(CH):
            out_ref[pl.ds((1 + CH + ch) * n_out, n_out), col] = sig2[ch]


def routing_learned_routing(a_inp, mu_inp, params, *, d_cov, d_inp, d_out,
                            n_iters=3, eps=1e-5, block_b=128):
    f32 = jnp.float32
    Bsz, n_inp = a_inp.shape
    n_out = params["W"].shape[1]
    CH, CD, DH = d_cov * d_out, d_cov * d_inp, d_inp * d_out
    assert CH == 2, "mu_scaler = Linear(4*n_out, 2*n_out) requires d_cov*d_out == 2"
    assert block_b % _LANES == 0 and block_b > 0

    TB = block_b
    n_tiles = pl.cdiv(Bsz, TB)
    # v7x megacore note: dimension_semantics=("parallel",) shards grid steps
    # across both TensorCores; keep Bsz >= 2*TB so neither core idles.
    B_pad = n_tiles * TB

    # ---- host glue: batch on the last (lane) axis, zero-pad batch to TB multiple
    a_t = jnp.zeros((n_inp, B_pad), f32).at[:, :Bsz].set(a_inp.astype(f32).T)
    mu_t = jnp.zeros((CD, n_inp, B_pad), f32).at[:, :, :Bsz].set(
        mu_inp.astype(f32).transpose(2, 3, 1, 0).reshape(CD, n_inp, Bsz))

    w_k = params["W"].astype(f32).transpose(2, 3, 0, 1).reshape(DH, n_inp, n_out)
    bp_k = params["B"].astype(f32).transpose(2, 3, 0, 1).reshape(CH, n_inp, n_out)
    bu = params["beta_use"].astype(f32)
    bi = params["beta_ign"].astype(f32)
    bubi = bu + bi                    # D_ign eliminated: a_temp uses bu+bi only
    bit = bi.T                        # c0 = beta_ign^T @ f_a (one MXU dot)
    r0 = jnp.asarray(params["R_init"], f32).reshape(1, 1)

    aw = params["a_w"].astype(f32)                     # [T, n_out, n_out]
    ab = params["a_b"].astype(f32)[:, :, None]         # [T, n_out, 1]

    # mu scaler: only the FINAL iteration's weights are ever consumed.
    # Permute PyTorch's (j, ch) flattening to the kernel's (ch, j) flattening.
    mw = params["mu_w"].astype(f32)[n_iters - 1]       # [2n, 4n]
    mb = params["mu_b"].astype(f32)[n_iters - 1]       # [2n]
    mw = (mw.reshape(2 * n_out, 2, n_out, CH)          # cols: (part, j, ch)
            .transpose(0, 1, 3, 2)                     #    -> (part, ch, j)
            .reshape(2 * n_out, 4 * n_out))
    mw = (mw.reshape(n_out, CH, 4 * n_out)             # rows: (j, ch) -> (ch, j)
            .transpose(1, 0, 2)
            .reshape(2 * n_out, 4 * n_out))
    mb = mb.reshape(n_out, CH).T.reshape(2 * n_out)[:, None]   # [2n, 1]

    kernel = functools.partial(_routing_kernel, d_cov=d_cov, d_inp=d_inp,
                               d_out=d_out, n_iters=n_iters, eps=eps)

    def fixed(shape):
        zeros = (0,) * len(shape)
        return pl.BlockSpec(shape, lambda b, _z=zeros: _z)

    in_specs = [
        pl.BlockSpec(memory_space=pltpu.MemorySpace.SMEM),            # R_init
        pl.BlockSpec((n_inp, TB), lambda b: (0, b)),                  # a tile
        pl.BlockSpec((CD, n_inp, TB), lambda b: (0, 0, b)),           # mu tile
        fixed((DH, n_inp, n_out)),                                    # W
        fixed((CH, n_inp, n_out)),                                    # B
        fixed((n_inp, n_out)),                                        # bu + bi
        fixed((n_out, n_inp)),                                        # bi^T
        fixed((n_iters, n_out, n_out)),                               # a_w
        fixed((n_iters, n_out, 1)),                                   # a_b
        fixed((2 * n_out, 4 * n_out)),                                # mu_w last
        fixed((2 * n_out, 1)),                                        # mu_b last
    ]
    out_specs = pl.BlockSpec((5 * n_out, TB), lambda b: (0, b))
    out_shape = jax.ShapeDtypeStruct((5 * n_out, B_pad), f32)

    weight_bytes = 4 * (w_k.size + bp_k.size + bubi.size + bit.size
                        + aw.size + ab.size + mw.size + mb.size)
    flops = int(B_pad * (CH * n_inp * n_out * (2 * d_inp + 1)
                         + n_iters * (24 * n_inp * n_out
                                      + 2 * n_out * n_out + 16 * n_out)
                         + 2 * (2 * n_out) * (4 * n_out)))
    transcendentals = int(B_pad * (n_inp + n_iters * (n_inp * n_out + 6 * n_out)))
    cost = pl.CostEstimate(
        flops=flops,
        transcendentals=transcendentals,
        bytes_accessed=int(4 * B_pad * (n_inp + CD * n_inp + 5 * n_out)
                           + n_tiles * weight_bytes))

    slab = pl.pallas_call(
        kernel,
        grid=(n_tiles,),
        in_specs=in_specs,
        out_specs=out_specs,
        out_shape=out_shape,
        compiler_params=pltpu.CompilerParams(
            dimension_semantics=("parallel",)),
        cost_estimate=cost,
    )(r0, a_t, mu_t, w_k, bp_k, bubi, bit, aw, ab, mw, mb)

    # ---- back to the PyTorch output layout
    slab = slab[:, :Bsz]
    a_out = slab[:n_out].T
    mu_out = (slab[n_out:(1 + CH) * n_out].reshape(CH, n_out, Bsz)
              .transpose(2, 1, 0).reshape(Bsz, n_out, d_cov, d_out))
    sig2_out = (slab[(1 + CH) * n_out:].reshape(CH, n_out, Bsz)
                .transpose(2, 1, 0).reshape(Bsz, n_out, d_cov, d_out))
    return a_out, mu_out, sig2_out


def reference_forward(a_inp, mu_inp, params, *, n_iters=3, eps=1e-5):
    """Pure-JAX mirror of RoutingRNNLearnedRouting.forward (gaussian p_model,
    fixed n_inp/n_out, single_beta=False)."""
    W, Bp = params["W"], params["B"]
    beta_use, beta_ign = params["beta_use"], params["beta_ign"]
    a_w, a_b = params["a_w"], params["a_b"]
    mu_w, mu_b = params["mu_w"], params["mu_b"]
    Bsz, n_inp = a_inp.shape

    V = jnp.einsum("ijdh,bicd->bijch", W, mu_inp) + Bp
    f_a = jax.nn.sigmoid(a_inp)[..., None]
    a_out = mu_out = sig2_out = Vlm2 = None
    for it in range(n_iters):
        if it == 0:
            R = jnp.broadcast_to(params["R_init"], V.shape[:-2])
        else:
            log_p = (-jnp.einsum("bijch,bjch->bij", Vlm2, 1.0 / (2.0 * sig2_out))
                     - jnp.sum(jnp.log(jnp.sqrt(sig2_out)), axis=(-2, -1))[:, None, :])
            R = jax.nn.softmax(jax.nn.log_sigmoid(a_out)[:, None, :] + log_p, axis=-1)
        D_use = f_a * R
        D_ign = f_a - D_use
        a_temp = (jnp.sum(beta_use * D_use, axis=-2)
                  - jnp.sum(beta_ign * D_ign, axis=-2))
        a_out = a_temp * jax.nn.sigmoid(a_temp @ a_w[it].T + a_b[it])
        over = 1.0 / (jnp.sum(D_use, axis=-2) + eps)
        mu_out = jnp.einsum("bij,bijch,bj->bjch", D_use, V, over)
        Vlm2 = (V - mu_out[:, None]) ** 2
        sig2_out = jnp.einsum("bij,bijch,bj->bjch", D_use, Vlm2, over) + eps
        ins = jnp.concatenate(
            [mu_out.reshape(Bsz, -1), sig2_out.reshape(Bsz, -1)], axis=1)
        scale = jax.nn.sigmoid(ins @ mu_w[it].T + mu_b[it]).reshape(mu_out.shape)
        mu_out = mu_out * scale
    return a_out, mu_out, sig2_out


def _check(tag, got, ref, tol=2e-2):
    assert got.shape == ref.shape, (tag, got.shape, ref.shape)
    err = float(jnp.max(jnp.abs(got - ref)))
    assert err < tol, f"{tag}: max abs error too large: {err}"


if __name__ == "__main__":
    # mu_scaler = Linear(n_out*4, n_out*2) forces d_cov*d_out == 2
    d_cov, d_inp, d_out = 2, 4, 1
    n_inp, n_out, n_iters = 8, 8, 3
    Bsz, eps = 256, 1e-5   # 256 -> two parallel grid steps of 128 (feeds 2 TCs on v7x)

    key = jax.random.PRNGKey(0)
    ks = jax.random.split(key, 12)
    ka = 1.0 / math.sqrt(n_out)
    km = 1.0 / math.sqrt(4 * n_out)
    params = {
        "W": jax.random.normal(ks[0], (n_inp, n_out, d_inp, d_out), jnp.float32) / d_inp,
        "B": 0.1 * jax.random.normal(ks[1], (n_inp, n_out, d_cov, d_out), jnp.float32),
        "beta_use": 0.1 * jax.random.normal(ks[2], (n_inp, n_out), jnp.float32),
        "beta_ign": 0.1 * jax.random.normal(ks[3], (n_inp, n_out), jnp.float32),
        "R_init": jnp.float32(1.0 / n_out),
        "a_w": jax.random.uniform(ks[4], (n_iters, n_out, n_out), jnp.float32, -ka, ka),
        "a_b": jax.random.uniform(ks[5], (n_iters, n_out), jnp.float32, -ka, ka),
        "mu_w": jax.random.uniform(ks[6], (n_iters, 2 * n_out, 4 * n_out),
                                   jnp.float32, -km, km),
        "mu_b": jax.random.uniform(ks[7], (n_iters, 2 * n_out), jnp.float32, -km, km),
    }
    a_inp = jax.random.normal(ks[8], (Bsz, n_inp), jnp.float32)
    mu_inp = jax.random.normal(ks[9], (Bsz, n_inp, d_cov, d_inp), jnp.float32)

    a_r, mu_r, sig_r = reference_forward(a_inp, mu_inp, params,
                                         n_iters=n_iters, eps=eps)

    # block_b=128: two parallel grid steps (megacore-balanced).
    # block_b=256: one grid step with two inner 128-lane sub-tiles (amortizes
    # the per-grid-step pipeline overhead for large batches).
    for bb in (128, 256):
        a_out, mu_out, sig2_out = routing_learned_routing(
            a_inp, mu_inp, params, d_cov=d_cov, d_inp=d_inp, d_out=d_out,
            n_iters=n_iters, eps=eps, block_b=bb)
        jax.block_until_ready((a_out, mu_out, sig2_out))
        # tolerance leaves headroom for the approximate EUP reciprocals used on
        # the softmax denominator and the 0.5/sig2 terms.
        _check(f"a_out[b{bb}]", a_out, a_r)
        _check(f"mu_out[b{bb}]", mu_out, mu_r)
        _check(f"sig2_out[b{bb}]", sig2_out, sig_r)

    print("KERNEL_OK")
</pallas_src>

<mosaic_0001>
module attributes {stable_mosaic.version = 11 : i64} {
  func.func @_routing_kernel(%arg0: i32, %arg1: memref<1x1xf32, #tpu.memory_space<smem>>, %arg2: memref<8x128xf32, #tpu.memory_space<vmem>>, %arg3: memref<8x8x128xf32, #tpu.memory_space<vmem>>, %arg4: memref<4x8x8xf32, #tpu.memory_space<vmem>>, %arg5: memref<2x8x8xf32, #tpu.memory_space<vmem>>, %arg6: memref<8x8xf32, #tpu.memory_space<vmem>>, %arg7: memref<8x8xf32, #tpu.memory_space<vmem>>, %arg8: memref<3x8x8xf32, #tpu.memory_space<vmem>>, %arg9: memref<3x8x1xf32, #tpu.memory_space<vmem>>, %arg10: memref<16x32xf32, #tpu.memory_space<vmem>>, %arg11: memref<16x1xf32, #tpu.memory_space<vmem>>, %arg12: memref<40x128xf32, #tpu.memory_space<vmem>>) attributes {dimension_semantics = [#tpu.dimension_semantics<parallel>], iteration_bounds = array<i64: 2>, scalar_prefetch = 0 : i64, scratch_operands = 0 : i64, tpu.core_type = #tpu.core_type<tc>, window_params = [{transform_indices = @transform_0, window_bounds = array<i64: 1, 1>}, {transform_indices = @transform_1, window_bounds = array<i64: 8, 128>}, {transform_indices = @transform_2, window_bounds = array<i64: 8, 8, 128>}, {pipeline_mode = #tpu.pipeline_mode<synchronous>, transform_indices = @transform_3, window_bounds = array<i64: 4, 8, 8>}, {pipeline_mode = #tpu.pipeline_mode<synchronous>, transform_indices = @transform_4, window_bounds = array<i64: 2, 8, 8>}, {pipeline_mode = #tpu.pipeline_mode<synchronous>, transform_indices = @transform_5, window_bounds = array<i64: 8, 8>}, {pipeline_mode = #tpu.pipeline_mode<synchronous>, transform_indices = @transform_6, window_bounds = array<i64: 8, 8>}, {pipeline_mode = #tpu.pipeline_mode<synchronous>, transform_indices = @transform_7, window_bounds = array<i64: 3, 8, 8>}, {pipeline_mode = #tpu.pipeline_mode<synchronous>, transform_indices = @transform_8, window_bounds = array<i64: 3, 8, 1>}, {pipeline_mode = #tpu.pipeline_mode<synchronous>, transform_indices = @transform_9, window_bounds = array<i64: 16, 32>}, {pipeline_mode = #tpu.pipeline_mode<synchronous>, transform_indices = @transform_10, window_bounds = array<i64: 16, 1>}, {transform_indices = @transform_11, window_bounds = array<i64: 40, 128>}]} {
    %c0 = arith.constant 0 : index
    %c0_0 = arith.constant 0 : index
    %0 = memref.load %arg1[%c0, %c0_0] : memref<1x1xf32, #tpu.memory_space<smem>>
    %c0_1 = arith.constant 0 : index
    %c0_2 = arith.constant 0 : index
    %1 = vector.load %arg2[%c0_1, %c0_2] : memref<8x128xf32, #tpu.memory_space<vmem>>, vector<8x128xf32>
    %cst = arith.constant 5.000000e-01 : f32
    %2 = vector.broadcast %cst : f32 to vector<8x128xf32>
    %3 = arith.mulf %2, %1 : vector<8x128xf32>
    %4 = math.tanh %3 : vector<8x128xf32>
    %cst_3 = arith.constant 1.000000e+00 : f32
    %5 = vector.broadcast %cst_3 : f32 to vector<8x128xf32>
    %6 = arith.addf %4, %5 : vector<8x128xf32>
    %cst_4 = arith.constant 5.000000e-01 : f32
    %7 = vector.broadcast %cst_4 : f32 to vector<8x128xf32>
    %8 = arith.mulf %7, %6 : vector<8x128xf32>
    %c0_5 = arith.constant 0 : index
    %c0_6 = arith.constant 0 : index
    %c0_7 = arith.constant 0 : index
    %9 = vector.load %arg3[%c0_5, %c0_6, %c0_7] : memref<8x8x128xf32, #tpu.memory_space<vmem>>, vector<1x8x128xf32>
    %10 = vector.shape_cast %9 : vector<1x8x128xf32> to vector<8x128xf32>
    %11 = vector.shape_cast %10 : vector<8x128xf32> to vector<8x1x128xf32>
    %c0_8 = arith.constant 0 : index
    %c0_9 = arith.constant 0 : index
    %c0_10 = arith.constant 0 : index
    %12 = vector.load %arg4[%c0_8, %c0_9, %c0_10] : memref<4x8x8xf32, #tpu.memory_space<vmem>>, vector<1x8x8xf32>
    %13 = vector.shape_cast %12 : vector<1x8x8xf32> to vector<8x8xf32>
    %14 = vector.shape_cast %13 : vector<8x8xf32> to vector<8x8x1xf32>
    %15 = vector.broadcast %11 : vector<8x1x128xf32> to vector<8x8x128xf32>
    %16 = vector.broadcast %14 : vector<8x8x1xf32> to vector<8x8x128xf32>
    %17 = arith.mulf %15, %16 : vector<8x8x128xf32>
    %c1 = arith.constant 1 : index
    %c0_11 = arith.constant 0 : index
    %c0_12 = arith.constant 0 : index
    %18 = vector.load %arg3[%c1, %c0_11, %c0_12] : memref<8x8x128xf32, #tpu.memory_space<vmem>>, vector<1x8x128xf32>
    %19 = vector.shape_cast %18 : vector<1x8x128xf32> to vector<8x128xf32>
    %20 = vector.shape_cast %19 : vector<8x128xf32> to vector<8x1x128xf32>
    %c1_13 = arith.constant 1 : index
    %c0_14 = arith.constant 0 : index
    %c0_15 = arith.constant 0 : index
    %21 = vector.load %arg4[%c1_13, %c0_14, %c0_15] : memref<4x8x8xf32, #tpu.memory_space<vmem>>, vector<1x8x8xf32>
    %22 = vector.shape_cast %21 : vector<1x8x8xf32> to vector<8x8xf32>
    %23 = vector.shape_cast %22 : vector<8x8xf32> to vector<8x8x1xf32>
    %24 = vector.broadcast %20 : vector<8x1x128xf32> to vector<8x8x128xf32>
    %25 = vector.broadcast %23 : vector<8x8x1xf32> to vector<8x8x128xf32>
    %26 = arith.mulf %24, %25 : vector<8x8x128xf32>
    %27 = arith.addf %17, %26 : vector<8x8x128xf32>
    %c2 = arith.constant 2 : index
    %c0_16 = arith.constant 0 : index
    %c0_17 = arith.constant 0 : index
    %28 = vector.load %arg3[%c2, %c0_16, %c0_17] : memref<8x8x128xf32, #tpu.memory_space<vmem>>, vector<1x8x128xf32>
    %29 = vector.shape_cast %28 : vector<1x8x128xf32> to vector<8x128xf32>
    %30 = vector.shape_cast %29 : vector<8x128xf32> to vector<8x1x128xf32>
    %c2_18 = arith.constant 2 : index
    %c0_19 = arith.constant 0 : index
    %c0_20 = arith.constant 0 : index
    %31 = vector.load %arg4[%c2_18, %c0_19, %c0_20] : memref<4x8x8xf32, #tpu.memory_space<vmem>>, vector<1x8x8xf32>
    %32 = vector.shape_cast %31 : vector<1x8x8xf32> to vector<8x8xf32>
    %33 = vector.shape_cast %32 : vector<8x8xf32> to vector<8x8x1xf32>
    %34 = vector.broadcast %30 : vector<8x1x128xf32> to vector<8x8x128xf32>
    %35 = vector.broadcast %33 : vector<8x8x1xf32> to vector<8x8x128xf32>
    %36 = arith.mulf %34, %35 : vector<8x8x128xf32>
    %37 = arith.addf %27, %36 : vector<8x8x128xf32>
    %c3 = arith.constant 3 : index
    %c0_21 = arith.constant 0 : index
    %c0_22 = arith.constant 0 : index
    %38 = vector.load %arg3[%c3, %c0_21, %c0_22] : memref<8x8x128xf32, #tpu.memory_space<vmem>>, vector<1x8x128xf32>
    %39 = vector.shape_cast %38 : vector<1x8x128xf32> to vector<8x128xf32>
    %40 = vector.shape_cast %39 : vector<8x128xf32> to vector<8x1x128xf32>
    %c3_23 = arith.constant 3 : index
    %c0_24 = arith.constant 0 : index
    %c0_25 = arith.constant 0 : index
    %41 = vector.load %arg4[%c3_23, %c0_24, %c0_25] : memref<4x8x8xf32, #tpu.memory_space<vmem>>, vector<1x8x8xf32>
    %42 = vector.shape_cast %41 : vector<1x8x8xf32> to vector<8x8xf32>
    %43 = vector.shape_cast %42 : vector<8x8xf32> to vector<8x8x1xf32>
    %44 = vector.broadcast %40 : vector<8x1x128xf32> to vector<8x8x128xf32>
    %45 = vector.broadcast %43 : vector<8x8x1xf32> to vector<8x8x128xf32>
    %46 = arith.mulf %44, %45 : vector<8x8x128xf32>
    %47 = arith.addf %37, %46 : vector<8x8x128xf32>
    %c0_26 = arith.constant 0 : index
    %c0_27 = arith.constant 0 : index
    %c0_28 = arith.constant 0 : index
    %48 = vector.load %arg5[%c0_26, %c0_27, %c0_28] : memref<2x8x8xf32, #tpu.memory_space<vmem>>, vector<1x8x8xf32>
    %49 = vector.shape_cast %48 : vector<1x8x8xf32> to vector<8x8xf32>
    %50 = vector.shape_cast %49 : vector<8x8xf32> to vector<8x8x1xf32>
    %51 = vector.broadcast %50 : vector<8x8x1xf32> to vector<8x8x128xf32>
    %52 = arith.addf %47, %51 : vector<8x8x128xf32>
    %c4 = arith.constant 4 : index
    %c0_29 = arith.constant 0 : index
    %c0_30 = arith.constant 0 : index
    %53 = vector.load %arg3[%c4, %c0_29, %c0_30] : memref<8x8x128xf32, #tpu.memory_space<vmem>>, vector<1x8x128xf32>
    %54 = vector.shape_cast %53 : vector<1x8x128xf32> to vector<8x128xf32>
    %55 = vector.shape_cast %54 : vector<8x128xf32> to vector<8x1x128xf32>
    %c0_31 = arith.constant 0 : index
    %c0_32 = arith.constant 0 : index
    %c0_33 = arith.constant 0 : index
    %56 = vector.load %arg4[%c0_31, %c0_32, %c0_33] : memref<4x8x8xf32, #tpu.memory_space<vmem>>, vector<1x8x8xf32>
    %57 = vector.shape_cast %56 : vector<1x8x8xf32> to vector<8x8xf32>
    %58 = vector.shape_cast %57 : vector<8x8xf32> to vector<8x8x1xf32>
    %59 = vector.broadcast %55 : vector<8x1x128xf32> to vector<8x8x128xf32>
    %60 = vector.broadcast %58 : vector<8x8x1xf32> to vector<8x8x128xf32>
    %61 = arith.mulf %59, %60 : vector<8x8x128xf32>
    %c5 = arith.constant 5 : index
    %c0_34 = arith.constant 0 : index
    %c0_35 = arith.constant 0 : index
    %62 = vector.load %arg3[%c5, %c0_34, %c0_35] : memref<8x8x128xf32, #tpu.memory_space<vmem>>, vector<1x8x128xf32>
    %63 = vector.shape_cast %62 : vector<1x8x128xf32> to vector<8x128xf32>
    %64 = vector.shape_cast %63 : vector<8x128xf32> to vector<8x1x128xf32>
    %c1_36 = arith.constant 1 : index
    %c0_37 = arith.constant 0 : index
    %c0_38 = arith.constant 0 : index
    %65 = vector.load %arg4[%c1_36, %c0_37, %c0_38] : memref<4x8x8xf32, #tpu.memory_space<vmem>>, vector<1x8x8xf32>
    %66 = vector.shape_cast %65 : vector<1x8x8xf32> to vector<8x8xf32>
    %67 = vector.shape_cast %66 : vector<8x8xf32> to vector<8x8x1xf32>
    %68 = vector.broadcast %64 : vector<8x1x128xf32> to vector<8x8x128xf32>
    %69 = vector.broadcast %67 : vector<8x8x1xf32> to vector<8x8x128xf32>
    %70 = arith.mulf %68, %69 : vector<8x8x128xf32>
    %71 = arith.addf %61, %70 : vector<8x8x128xf32>
    %c6 = arith.constant 6 : index
    %c0_39 = arith.constant 0 : index
    %c0_40 = arith.constant 0 : index
    %72 = vector.load %arg3[%c6, %c0_39, %c0_40] : memref<8x8x128xf32, #tpu.memory_space<vmem>>, vector<1x8x128xf32>
    %73 = vector.shape_cast %72 : vector<1x8x128xf32> to vector<8x128xf32>
    %74 = vector.shape_cast %73 : vector<8x128xf32> to vector<8x1x128xf32>
    %c2_41 = arith.constant 2 : index
    %c0_42 = arith.constant 0 : index
    %c0_43 = arith.constant 0 : index
    %75 = vector.load %arg4[%c2_41, %c0_42, %c0_43] : memref<4x8x8xf32, #tpu.memory_space<vmem>>, vector<1x8x8xf32>
    %76 = vector.shape_cast %75 : vector<1x8x8xf32> to vector<8x8xf32>
    %77 = vector.shape_cast %76 : vector<8x8xf32> to vector<8x8x1xf32>
    %78 = vector.broadcast %74 : vector<8x1x128xf32> to vector<8x8x128xf32>
    %79 = vector.broadcast %77 : vector<8x8x1xf32> to vector<8x8x128xf32>
    %80 = arith.mulf %78, %79 : vector<8x8x128xf32>
    %81 = arith.addf %71, %80 : vector<8x8x128xf32>
    %c7 = arith.constant 7 : index
    %c0_44 = arith.constant 0 : index
    %c0_45 = arith.constant 0 : index
    %82 = vector.load %arg3[%c7, %c0_44, %c0_45] : memref<8x8x128xf32, #tpu.memory_space<vmem>>, vector<1x8x128xf32>
    %83 = vector.shape_cast %82 : vector<1x8x128xf32> to vector<8x128xf32>
    %84 = vector.shape_cast %83 : vector<8x128xf32> to vector<8x1x128xf32>
    %c3_46 = arith.constant 3 : index
    %c0_47 = arith.constant 0 : index
    %c0_48 = arith.constant 0 : index
    %85 = vector.load %arg4[%c3_46, %c0_47, %c0_48] : memref<4x8x8xf32, #tpu.memory_space<vmem>>, vector<1x8x8xf32>
    %86 = vector.shape_cast %85 : vector<1x8x8xf32> to vector<8x8xf32>
    %87 = vector.shape_cast %86 : vector<8x8xf32> to vector<8x8x1xf32>
    %88 = vector.broadcast %84 : vector<8x1x128xf32> to vector<8x8x128xf32>
    %89 = vector.broadcast %87 : vector<8x8x1xf32> to vector<8x8x128xf32>
    %90 = arith.mulf %88, %89 : vector<8x8x128xf32>
    %91 = arith.addf %81, %90 : vector<8x8x128xf32>
    %c1_49 = arith.constant 1 : index
    %c0_50 = arith.constant 0 : index
    %c0_51 = arith.constant 0 : index
    %92 = vector.load %arg5[%c1_49, %c0_50, %c0_51] : memref<2x8x8xf32, #tpu.memory_space<vmem>>, vector<1x8x8xf32>
    %93 = vector.shape_cast %92 : vector<1x8x8xf32> to vector<8x8xf32>
    %94 = vector.shape_cast %93 : vector<8x8xf32> to vector<8x8x1xf32>
    %95 = vector.broadcast %94 : vector<8x8x1xf32> to vector<8x8x128xf32>
    %96 = arith.addf %91, %95 : vector<8x8x128xf32>
    %c0_52 = arith.constant 0 : index
    %c0_53 = arith.constant 0 : index
    %97 = vector.load %arg6[%c0_52, %c0_53] : memref<8x8xf32, #tpu.memory_space<vmem>>, vector<8x8xf32>
    %98 = vector.shape_cast %97 : vector<8x8xf32> to vector<8x8x1xf32>
    %99 = vector.shape_cast %98 : vector<8x8x1xf32> to vector<8x8x1xf32>
    %100 = vector.broadcast %99 : vector<8x8x1xf32> to vector<8x8x128xf32>
    %c0_54 = arith.constant 0 : index
    %c0_55 = arith.constant 0 : index
    %101 = vector.load %arg7[%c0_54, %c0_55] : memref<8x8xf32, #tpu.memory_space<vmem>>, vector<8x8xf32>
    %cst_56 = arith.constant dense<0.000000e+00> : vector<8x128xf32>
    %102 = tpu.matmul %101, %8, %cst_56 {dimension_numbers = #tpu.dot_dimension_numbers<[1], [0], [0], [1], [0, 0, 1, 1], [], []>} : vector<8x8xf32>, vector<8x128xf32>, vector<8x128xf32> -> vector<8x128xf32>
    %103 = vector.shape_cast %8 : vector<8x128xf32> to vector<8x1x128xf32>
    %104 = vector.broadcast %0 : f32 to vector<8x1x128xf32>
    %105 = arith.mulf %103, %104 : vector<8x1x128xf32>
    %106 = vector.broadcast %105 : vector<8x1x128xf32> to vector<8x8x128xf32>
    %107 = arith.mulf %100, %106 : vector<8x8x128xf32>
    %cst_57 = arith.constant dense<0.000000e+00> : vector<8x128xf32>
    %108 = vector.multi_reduction <add>, %107, %cst_57 [0] : vector<8x8x128xf32> to vector<8x128xf32>
    %109 = arith.subf %108, %102 : vector<8x128xf32>
    %cst_58 = arith.constant dense<0.000000e+00> : vector<1x128xf32>
    %110 = vector.multi_reduction <add>, %105, %cst_58 [0] : vector<8x1x128xf32> to vector<1x128xf32>
    %cst_59 = arith.constant 9.99999974E-6 : f32
    %111 = vector.broadcast %cst_59 : f32 to vector<1x128xf32>
    %112 = arith.addf %110, %111 : vector<1x128xf32>
    %cst_60 = arith.constant 1.000000e+00 : f32
    %113 = vector.broadcast %cst_60 : f32 to vector<1x128xf32>
    %114 = arith.divf %113, %112 : vector<1x128xf32>
    %c0_61 = arith.constant 0 : index
    %c0_62 = arith.constant 0 : index
    %c0_63 = arith.constant 0 : index
    %115 = vector.load %arg8[%c0_61, %c0_62, %c0_63] : memref<3x8x8xf32, #tpu.memory_space<vmem>>, vector<1x8x8xf32>
    %116 = vector.shape_cast %115 : vector<1x8x8xf32> to vector<8x8xf32>
    %cst_64 = arith.constant dense<0.000000e+00> : vector<8x128xf32>
    %117 = tpu.matmul %116, %109, %cst_64 {dimension_numbers = #tpu.dot_dimension_numbers<[1], [0], [0], [1], [0, 0, 1, 1], [], []>} : vector<8x8xf32>, vector<8x128xf32>, vector<8x128xf32> -> vector<8x128xf32>
    %c0_65 = arith.constant 0 : index
    %c0_66 = arith.constant 0 : index
    %c0_67 = arith.constant 0 : index
    %118 = vector.load %arg9[%c0_65, %c0_66, %c0_67] : memref<3x8x1xf32, #tpu.memory_space<vmem>>, vector<1x8x1xf32>
    %119 = vector.shape_cast %118 : vector<1x8x1xf32> to vector<8x1xf32>
    %120 = vector.broadcast %119 : vector<8x1xf32> to vector<8x128xf32>
    %121 = arith.addf %117, %120 : vector<8x128xf32>
    %cst_68 = arith.constant 5.000000e-01 : f32
    %122 = vector.broadcast %cst_68 : f32 to vector<8x128xf32>
    %123 = arith.mulf %122, %121 : vector<8x128xf32>
    %124 = math.tanh %123 : vector<8x128xf32>
    %cst_69 = arith.constant 1.000000e+00 : f32
    %125 = vector.broadcast %cst_69 : f32 to vector<8x128xf32>
    %126 = arith.addf %124, %125 : vector<8x128xf32>
    %cst_70 = arith.constant 5.000000e-01 : f32
    %127 = vector.broadcast %cst_70 : f32 to vector<8x128xf32>
    %128 = arith.mulf %127, %126 : vector<8x128xf32>
    %129 = arith.mulf %109, %128 : vector<8x128xf32>
    %130 = vector.broadcast %105 : vector<8x1x128xf32> to vector<8x8x128xf32>
    %131 = arith.mulf %130, %52 : vector<8x8x128xf32>
    %cst_71 = arith.constant dense<0.000000e+00> : vector<8x128xf32>
    %132 = vector.multi_reduction <add>, %131, %cst_71 [0] : vector<8x8x128xf32> to vector<8x128xf32>
    %133 = vector.broadcast %114 : vector<1x128xf32> to vector<8x128xf32>
    %134 = arith.mulf %132, %133 : vector<8x128xf32>
    %135 = vector.shape_cast %134 : vector<8x128xf32> to vector<1x8x128xf32>
    %136 = vector.broadcast %135 : vector<1x8x128xf32> to vector<8x8x128xf32>
    %137 = arith.subf %52, %136 : vector<8x8x128xf32>
    %138 = arith.mulf %137, %137 : vector<8x8x128xf32>
    %139 = vector.broadcast %105 : vector<8x1x128xf32> to vector<8x8x128xf32>
    %140 = arith.mulf %139, %138 : vector<8x8x128xf32>
    %cst_72 = arith.constant dense<0.000000e+00> : vector<8x128xf32>
    %141 = vector.multi_reduction <add>, %140, %cst_72 [0] : vector<8x8x128xf32> to vector<8x128xf32>
    %142 = vector.broadcast %114 : vector<1x128xf32> to vector<8x128xf32>
    %143 = arith.mulf %141, %142 : vector<8x128xf32>
    %cst_73 = arith.constant 9.99999974E-6 : f32
    %144 = vector.broadcast %cst_73 : f32 to vector<8x128xf32>
    %145 = arith.addf %143, %144 : vector<8x128xf32>
    %146 = tpu.reciprocal %145 {approx = true} : vector<8x128xf32> -> vector<8x128xf32>
    %cst_74 = arith.constant 5.000000e-01 : f32
    %147 = vector.broadcast %cst_74 : f32 to vector<8x128xf32>
    %148 = arith.mulf %147, %146 : vector<8x128xf32>
    %149 = vector.shape_cast %148 : vector<8x128xf32> to vector<1x8x128xf32>
    %150 = vector.broadcast %149 : vector<1x8x128xf32> to vector<8x8x128xf32>
    %151 = arith.mulf %138, %150 : vector<8x8x128xf32>
    %152 = vector.broadcast %105 : vector<8x1x128xf32> to vector<8x8x128xf32>
    %153 = arith.mulf %152, %96 : vector<8x8x128xf32>
    %cst_75 = arith.constant dense<0.000000e+00> : vector<8x128xf32>
    %154 = vector.multi_reduction <add>, %153, %cst_75 [0] : vector<8x8x128xf32> to vector<8x128xf32>
    %155 = vector.broadcast %114 : vector<1x128xf32> to vector<8x128xf32>
    %156 = arith.mulf %154, %155 : vector<8x128xf32>
    %157 = vector.shape_cast %156 : vector<8x128xf32> to vector<1x8x128xf32>
    %158 = vector.broadcast %157 : vector<1x8x128xf32> to vector<8x8x128xf32>
    %159 = arith.subf %96, %158 : vector<8x8x128xf32>
    %160 = arith.mulf %159, %159 : vector<8x8x128xf32>
    %161 = vector.broadcast %105 : vector<8x1x128xf32> to vector<8x8x128xf32>
    %162 = arith.mulf %161, %160 : vector<8x8x128xf32>
    %cst_76 = arith.constant dense<0.000000e+00> : vector<8x128xf32>
    %163 = vector.multi_reduction <add>, %162, %cst_76 [0] : vector<8x8x128xf32> to vector<8x128xf32>
    %164 = vector.broadcast %114 : vector<1x128xf32> to vector<8x128xf32>
    %165 = arith.mulf %163, %164 : vector<8x128xf32>
    %cst_77 = arith.constant 9.99999974E-6 : f32
    %166 = vector.broadcast %cst_77 : f32 to vector<8x128xf32>
    %167 = arith.addf %165, %166 : vector<8x128xf32>
    %168 = arith.mulf %145, %167 : vector<8x128xf32>
    %169 = tpu.reciprocal %167 {approx = true} : vector<8x128xf32> -> vector<8x128xf32>
    %cst_78 = arith.constant 5.000000e-01 : f32
    %170 = vector.broadcast %cst_78 : f32 to vector<8x128xf32>
    %171 = arith.mulf %170, %169 : vector<8x128xf32>
    %172 = vector.shape_cast %171 : vector<8x128xf32> to vector<1x8x128xf32>
    %173 = vector.broadcast %172 : vector<1x8x128xf32> to vector<8x8x128xf32>
    %174 = arith.mulf %160, %173 : vector<8x8x128xf32>
    %175 = arith.addf %151, %174 : vector<8x8x128xf32>
    %176 = math.log %168 : vector<8x128xf32>
    %cst_79 = arith.constant 5.000000e-01 : f32
    %177 = vector.broadcast %cst_79 : f32 to vector<8x128xf32>
    %178 = arith.mulf %177, %176 : vector<8x128xf32>
    %cst_80 = arith.constant 0.000000e+00 : f32
    %179 = vector.broadcast %cst_80 : f32 to vector<8x128xf32>
    %180 = arith.minimumf %129, %179 : vector<8x128xf32>
    %181 = math.absf %129 : vector<8x128xf32>
    %cst_81 = arith.constant 0.000000e+00 : f32
    %182 = vector.broadcast %cst_81 : f32 to vector<8x128xf32>
    %183 = arith.subf %182, %181 : vector<8x128xf32>
    %184 = math.exp %183 : vector<8x128xf32>
    %cst_82 = arith.constant 1.000000e+00 : f32
    %185 = vector.broadcast %cst_82 : f32 to vector<8x128xf32>
    %186 = arith.addf %185, %184 : vector<8x128xf32>
    %187 = math.log %186 : vector<8x128xf32>
    %188 = arith.subf %180, %187 : vector<8x128xf32>
    %189 = arith.subf %188, %178 : vector<8x128xf32>
    %190 = vector.shape_cast %189 : vector<8x128xf32> to vector<1x8x128xf32>
    %191 = vector.broadcast %190 : vector<1x8x128xf32> to vector<8x8x128xf32>
    %192 = arith.subf %191, %175 : vector<8x8x128xf32>
    %cst_83 = arith.constant dense<0xFF800000> : vector<8x128xf32>
    %193 = vector.multi_reduction <maximumf>, %192, %cst_83 [1] : vector<8x8x128xf32> to vector<8x128xf32>
    %194 = vector.shape_cast %193 : vector<8x128xf32> to vector<8x1x128xf32>
    %195 = vector.broadcast %194 : vector<8x1x128xf32> to vector<8x8x128xf32>
    %196 = arith.subf %192, %195 : vector<8x8x128xf32>
    %197 = math.exp %196 : vector<8x8x128xf32>
    %cst_84 = arith.constant dense<0.000000e+00> : vector<8x128xf32>
    %198 = vector.multi_reduction <add>, %197, %cst_84 [1] : vector<8x8x128xf32> to vector<8x128xf32>
    %199 = tpu.reciprocal %198 {approx = true} : vector<8x128xf32> -> vector<8x128xf32>
    %200 = arith.mulf %8, %199 : vector<8x128xf32>
    %201 = vector.shape_cast %200 : vector<8x128xf32> to vector<8x1x128xf32>
    %202 = vector.broadcast %201 : vector<8x1x128xf32> to vector<8x8x128xf32>
    %203 = arith.mulf %197, %202 : vector<8x8x128xf32>
    %204 = arith.mulf %100, %203 : vector<8x8x128xf32>
    %cst_85 = arith.constant dense<0.000000e+00> : vector<8x128xf32>
    %205 = vector.multi_reduction <add>, %204, %cst_85 [0] : vector<8x8x128xf32> to vector<8x128xf32>
    %206 = arith.subf %205, %102 : vector<8x128xf32>
    %cst_86 = arith.constant dense<0.000000e+00> : vector<8x128xf32>
    %207 = vector.multi_reduction <add>, %203, %cst_86 [0] : vector<8x8x128xf32> to vector<8x128xf32>
    %cst_87 = arith.constant 9.99999974E-6 : f32
    %208 = vector.broadcast %cst_87 : f32 to vector<8x128xf32>
    %209 = arith.addf %207, %208 : vector<8x128xf32>
    %cst_88 = arith.constant 1.000000e+00 : f32
    %210 = vector.broadcast %cst_88 : f32 to vector<8x128xf32>
    %211 = arith.divf %210, %209 : vector<8x128xf32>
    %c1_89 = arith.constant 1 : index
    %c0_90 = arith.constant 0 : index
    %c0_91 = arith.constant 0 : index
    %212 = vector.load %arg8[%c1_89, %c0_90, %c0_91] : memref<3x8x8xf32, #tpu.memory_space<vmem>>, vector<1x8x8xf32>
    %213 = vector.shape_cast %212 : vector<1x8x8xf32> to vector<8x8xf32>
    %cst_92 = arith.constant dense<0.000000e+00> : vector<8x128xf32>
    %214 = tpu.matmul %213, %206, %cst_92 {dimension_numbers = #tpu.dot_dimension_numbers<[1], [0], [0], [1], [0, 0, 1, 1], [], []>} : vector<8x8xf32>, vector<8x128xf32>, vector<8x128xf32> -> vector<8x128xf32>
    %c1_93 = arith.constant 1 : index
    %c0_94 = arith.constant 0 : index
    %c0_95 = arith.constant 0 : index
    %215 = vector.load %arg9[%c1_93, %c0_94, %c0_95] : memref<3x8x1xf32, #tpu.memory_space<vmem>>, vector<1x8x1xf32>
    %216 = vector.shape_cast %215 : vector<1x8x1xf32> to vector<8x1xf32>
    %217 = vector.broadcast %216 : vector<8x1xf32> to vector<8x128xf32>
    %218 = arith.addf %214, %217 : vector<8x128xf32>
    %cst_96 = arith.constant 5.000000e-01 : f32
    %219 = vector.broadcast %cst_96 : f32 to vector<8x128xf32>
    %220 = arith.mulf %219, %218 : vector<8x128xf32>
    %221 = math.tanh %220 : vector<8x128xf32>
    %cst_97 = arith.constant 1.000000e+00 : f32
    %222 = vector.broadcast %cst_97 : f32 to vector<8x128xf32>
    %223 = arith.addf %221, %222 : vector<8x128xf32>
    %cst_98 = arith.constant 5.000000e-01 : f32
    %224 = vector.broadcast %cst_98 : f32 to vector<8x128xf32>
    %225 = arith.mulf %224, %223 : vector<8x128xf32>
    %226 = arith.mulf %206, %225 : vector<8x128xf32>
    %227 = arith.mulf %203, %52 : vector<8x8x128xf32>
    %cst_99 = arith.constant dense<0.000000e+00> : vector<8x128xf32>
    %228 = vector.multi_reduction <add>, %227, %cst_99 [0] : vector<8x8x128xf32> to vector<8x128xf32>
    %229 = arith.mulf %228, %211 : vector<8x128xf32>
    %230 = vector.shape_cast %229 : vector<8x128xf32> to vector<1x8x128xf32>
    %231 = vector.broadcast %230 : vector<1x8x128xf32> to vector<8x8x128xf32>
    %232 = arith.subf %52, %231 : vector<8x8x128xf32>
    %233 = arith.mulf %232, %232 : vector<8x8x128xf32>
    %234 = arith.mulf %203, %233 : vector<8x8x128xf32>
    %cst_100 = arith.constant dense<0.000000e+00> : vector<8x128xf32>
    %235 = vector.multi_reduction <add>, %234, %cst_100 [0] : vector<8x8x128xf32> to vector<8x128xf32>
    %236 = arith.mulf %235, %211 : vector<8x128xf32>
    %cst_101 = arith.constant 9.99999974E-6 : f32
    %237 = vector.broadcast %cst_101 : f32 to vector<8x128xf32>
    %238 = arith.addf %236, %237 : vector<8x128xf32>
    %239 = tpu.reciprocal %238 {approx = true} : vector<8x128xf32> -> vector<8x128xf32>
    %cst_102 = arith.constant 5.000000e-01 : f32
    %240 = vector.broadcast %cst_102 : f32 to vector<8x128xf32>
    %241 = arith.mulf %240, %239 : vector<8x128xf32>
    %242 = vector.shape_cast %241 : vector<8x128xf32> to vector<1x8x128xf32>
    %243 = vector.broadcast %242 : vector<1x8x128xf32> to vector<8x8x128xf32>
    %244 = arith.mulf %233, %243 : vector<8x8x128xf32>
    %245 = arith.mulf %203, %96 : vector<8x8x128xf32>
    %cst_103 = arith.constant dense<0.000000e+00> : vector<8x128xf32>
    %246 = vector.multi_reduction <add>, %245, %cst_103 [0] : vector<8x8x128xf32> to vector<8x128xf32>
    %247 = arith.mulf %246, %211 : vector<8x128xf32>
    %248 = vector.shape_cast %247 : vector<8x128xf32> to vector<1x8x128xf32>
    %249 = vector.broadcast %248 : vector<1x8x128xf32> to vector<8x8x128xf32>
    %250 = arith.subf %96, %249 : vector<8x8x128xf32>
    %251 = arith.mulf %250, %250 : vector<8x8x128xf32>
    %252 = arith.mulf %203, %251 : vector<8x8x128xf32>
    %cst_104 = arith.constant dense<0.000000e+00> : vector<8x128xf32>
    %253 = vector.multi_reduction <add>, %252, %cst_104 [0] : vector<8x8x128xf32> to vector<8x128xf32>
    %254 = arith.mulf %253, %211 : vector<8x128xf32>
    %cst_105 = arith.constant 9.99999974E-6 : f32
    %255 = vector.broadcast %cst_105 : f32 to vector<8x128xf32>
    %256 = arith.addf %254, %255 : vector<8x128xf32>
    %257 = arith.mulf %238, %256 : vector<8x128xf32>
    %258 = tpu.reciprocal %256 {approx = true} : vector<8x128xf32> -> vector<8x128xf32>
    %cst_106 = arith.constant 5.000000e-01 : f32
    %259 = vector.broadcast %cst_106 : f32 to vector<8x128xf32>
    %260 = arith.mulf %259, %258 : vector<8x128xf32>
    %261 = vector.shape_cast %260 : vector<8x128xf32> to vector<1x8x128xf32>
    %262 = vector.broadcast %261 : vector<1x8x128xf32> to vector<8x8x128xf32>
    %263 = arith.mulf %251, %262 : vector<8x8x128xf32>
    %264 = arith.addf %244, %263 : vector<8x8x128xf32>
    %265 = math.log %257 : vector<8x128xf32>
    %cst_107 = arith.constant 5.000000e-01 : f32
    %266 = vector.broadcast %cst_107 : f32 to vector<8x128xf32>
    %267 = arith.mulf %266, %265 : vector<8x128xf32>
    %cst_108 = arith.constant 0.000000e+00 : f32
    %268 = vector.broadcast %cst_108 : f32 to vector<8x128xf32>
    %269 = arith.minimumf %226, %268 : vector<8x128xf32>
    %270 = math.absf %226 : vector<8x128xf32>
    %cst_109 = arith.constant 0.000000e+00 : f32
    %271 = vector.broadcast %cst_109 : f32 to vector<8x128xf32>
    %272 = arith.subf %271, %270 : vector<8x128xf32>
    %273 = math.exp %272 : vector<8x128xf32>
    %cst_110 = arith.constant 1.000000e+00 : f32
    %274 = vector.broadcast %cst_110 : f32 to vector<8x128xf32>
    %275 = arith.addf %274, %273 : vector<8x128xf32>
    %276 = math.log %275 : vector<8x128xf32>
    %277 = arith.subf %269, %276 : vector<8x128xf32>
    %278 = arith.subf %277, %267 : vector<8x128xf32>
    %279 = vector.shape_cast %278 : vector<8x128xf32> to vector<1x8x128xf32>
    %280 = vector.broadcast %279 : vector<1x8x128xf32> to vector<8x8x128xf32>
    %281 = arith.subf %280, %264 : vector<8x8x128xf32>
    %cst_111 = arith.constant dense<0xFF800000> : vector<8x128xf32>
    %282 = vector.multi_reduction <maximumf>, %281, %cst_111 [1] : vector<8x8x128xf32> to vector<8x128xf32>
    %283 = vector.shape_cast %282 : vector<8x128xf32> to vector<8x1x128xf32>
    %284 = vector.broadcast %283 : vector<8x1x128xf32> to vector<8x8x128xf32>
    %285 = arith.subf %281, %284 : vector<8x8x128xf32>
    %286 = math.exp %285 : vector<8x8x128xf32>
    %cst_112 = arith.constant dense<0.000000e+00> : vector<8x128xf32>
    %287 = vector.multi_reduction <add>, %286, %cst_112 [1] : vector<8x8x128xf32> to vector<8x128xf32>
    %288 = tpu.reciprocal %287 {approx = true} : vector<8x128xf32> -> vector<8x128xf32>
    %289 = arith.mulf %8, %288 : vector<8x128xf32>
    %290 = vector.shape_cast %289 : vector<8x128xf32> to vector<8x1x128xf32>
    %291 = vector.broadcast %290 : vector<8x1x128xf32> to vector<8x8x128xf32>
    %292 = arith.mulf %286, %291 : vector<8x8x128xf32>
    %293 = arith.mulf %100, %292 : vector<8x8x128xf32>
    %cst_113 = arith.constant dense<0.000000e+00> : vector<8x128xf32>
    %294 = vector.multi_reduction <add>, %293, %cst_113 [0] : vector<8x8x128xf32> to vector<8x128xf32>
    %295 = arith.subf %294, %102 : vector<8x128xf32>
    %cst_114 = arith.constant dense<0.000000e+00> : vector<8x128xf32>
    %296 = vector.multi_reduction <add>, %292, %cst_114 [0] : vector<8x8x128xf32> to vector<8x128xf32>
    %cst_115 = arith.constant 9.99999974E-6 : f32
    %297 = vector.broadcast %cst_115 : f32 to vector<8x128xf32>
    %298 = arith.addf %296, %297 : vector<8x128xf32>
    %cst_116 = arith.constant 1.000000e+00 : f32
    %299 = vector.broadcast %cst_116 : f32 to vector<8x128xf32>
    %300 = arith.divf %299, %298 : vector<8x128xf32>
    %c2_117 = arith.constant 2 : index
    %c0_118 = arith.constant 0 : index
    %c0_119 = arith.constant 0 : index
    %301 = vector.load %arg8[%c2_117, %c0_118, %c0_119] : memref<3x8x8xf32, #tpu.memory_space<vmem>>, vector<1x8x8xf32>
    %302 = vector.shape_cast %301 : vector<1x8x8xf32> to vector<8x8xf32>
    %cst_120 = arith.constant dense<0.000000e+00> : vector<8x128xf32>
    %303 = tpu.matmul %302, %295, %cst_120 {dimension_numbers = #tpu.dot_dimension_numbers<[1], [0], [0], [1], [0, 0, 1, 1], [], []>} : vector<8x8xf32>, vector<8x128xf32>, vector<8x128xf32> -> vector<8x128xf32>
    %c2_121 = arith.constant 2 : index
    %c0_122 = arith.constant 0 : index
    %c0_123 = arith.constant 0 : index
    %304 = vector.load %arg9[%c2_121, %c0_122, %c0_123] : memref<3x8x1xf32, #tpu.memory_space<vmem>>, vector<1x8x1xf32>
    %305 = vector.shape_cast %304 : vector<1x8x1xf32> to vector<8x1xf32>
    %306 = vector.broadcast %305 : vector<8x1xf32> to vector<8x128xf32>
    %307 = arith.addf %303, %306 : vector<8x128xf32>
    %cst_124 = arith.constant 5.000000e-01 : f32
    %308 = vector.broadcast %cst_124 : f32 to vector<8x128xf32>
    %309 = arith.mulf %308, %307 : vector<8x128xf32>
    %310 = math.tanh %309 : vector<8x128xf32>
    %cst_125 = arith.constant 1.000000e+00 : f32
    %311 = vector.broadcast %cst_125 : f32 to vector<8x128xf32>
    %312 = arith.addf %310, %311 : vector<8x128xf32>
    %cst_126 = arith.constant 5.000000e-01 : f32
    %313 = vector.broadcast %cst_126 : f32 to vector<8x128xf32>
    %314 = arith.mulf %313, %312 : vector<8x128xf32>
    %315 = arith.mulf %295, %314 : vector<8x128xf32>
    %316 = arith.mulf %292, %52 : vector<8x8x128xf32>
    %cst_127 = arith.constant dense<0.000000e+00> : vector<8x128xf32>
    %317 = vector.multi_reduction <add>, %316, %cst_127 [0] : vector<8x8x128xf32> to vector<8x128xf32>
    %318 = arith.mulf %317, %300 : vector<8x128xf32>
    %319 = vector.shape_cast %318 : vector<8x128xf32> to vector<1x8x128xf32>
    %320 = vector.broadcast %319 : vector<1x8x128xf32> to vector<8x8x128xf32>
    %321 = arith.subf %52, %320 : vector<8x8x128xf32>
    %322 = arith.mulf %321, %321 : vector<8x8x128xf32>
    %323 = arith.mulf %292, %322 : vector<8x8x128xf32>
    %cst_128 = arith.constant dense<0.000000e+00> : vector<8x128xf32>
    %324 = vector.multi_reduction <add>, %323, %cst_128 [0] : vector<8x8x128xf32> to vector<8x128xf32>
    %325 = arith.mulf %324, %300 : vector<8x128xf32>
    %cst_129 = arith.constant 9.99999974E-6 : f32
    %326 = vector.broadcast %cst_129 : f32 to vector<8x128xf32>
    %327 = arith.addf %325, %326 : vector<8x128xf32>
    %328 = arith.mulf %292, %96 : vector<8x8x128xf32>
    %cst_130 = arith.constant dense<0.000000e+00> : vector<8x128xf32>
    %329 = vector.multi_reduction <add>, %328, %cst_130 [0] : vector<8x8x128xf32> to vector<8x128xf32>
    %330 = arith.mulf %329, %300 : vector<8x128xf32>
    %331 = vector.shape_cast %330 : vector<8x128xf32> to vector<1x8x128xf32>
    %332 = vector.broadcast %331 : vector<1x8x128xf32> to vector<8x8x128xf32>
    %333 = arith.subf %96, %332 : vector<8x8x128xf32>
    %334 = arith.mulf %333, %333 : vector<8x8x128xf32>
    %335 = arith.mulf %292, %334 : vector<8x8x128xf32>
    %cst_131 = arith.constant dense<0.000000e+00> : vector<8x128xf32>
    %336 = vector.multi_reduction <add>, %335, %cst_131 [0] : vector<8x8x128xf32> to vector<8x128xf32>
    %337 = arith.mulf %336, %300 : vector<8x128xf32>
    %cst_132 = arith.constant 9.99999974E-6 : f32
    %338 = vector.broadcast %cst_132 : f32 to vector<8x128xf32>
    %339 = arith.addf %337, %338 : vector<8x128xf32>
    %340 = tpu.concatenate %318, %330, %327, %339 in 0 : vector<8x128xf32>, vector<8x128xf32>, vector<8x128xf32>, vector<8x128xf32> -> vector<32x128xf32>
    %c0_133 = arith.constant 0 : index
    %c0_134 = arith.constant 0 : index
    %341 = vector.load %arg10[%c0_133, %c0_134] : memref<16x32xf32, #tpu.memory_space<vmem>>, vector<16x32xf32>
    %cst_135 = arith.constant dense<0.000000e+00> : vector<16x128xf32>
    %342 = tpu.matmul %341, %340, %cst_135 {dimension_numbers = #tpu.dot_dimension_numbers<[1], [0], [0], [1], [0, 0, 1, 1], [], []>} : vector<16x32xf32>, vector<32x128xf32>, vector<16x128xf32> -> vector<16x128xf32>
    %c0_136 = arith.constant 0 : index
    %c0_137 = arith.constant 0 : index
    %343 = vector.load %arg11[%c0_136, %c0_137] : memref<16x1xf32, #tpu.memory_space<vmem>>, vector<16x1xf32>
    %344 = vector.broadcast %343 : vector<16x1xf32> to vector<16x128xf32>
    %345 = arith.addf %342, %344 : vector<16x128xf32>
    %cst_138 = arith.constant 5.000000e-01 : f32
    %346 = vector.broadcast %cst_138 : f32 to vector<16x128xf32>
    %347 = arith.mulf %346, %345 : vector<16x128xf32>
    %348 = math.tanh %347 : vector<16x128xf32>
    %cst_139 = arith.constant 1.000000e+00 : f32
    %349 = vector.broadcast %cst_139 : f32 to vector<16x128xf32>
    %350 = arith.addf %348, %349 : vector<16x128xf32>
    %cst_140 = arith.constant 5.000000e-01 : f32
    %351 = vector.broadcast %cst_140 : f32 to vector<16x128xf32>
    %352 = arith.mulf %351, %350 : vector<16x128xf32>
    %c0_141 = arith.constant 0 : index
    %c0_142 = arith.constant 0 : index
    %353 = vector.load %arg12[%c0_141, %c0_142] : memref<40x128xf32, #tpu.memory_space<vmem>>, vector<8x128xf32>
    tpu.vector_store %arg12[%c0_141, %c0_142], %315 {strides = array<i32>} : memref<40x128xf32, #tpu.memory_space<vmem>>, vector<8x128xf32>,
    %354 = vector.extract_strided_slice %352 {offsets = [0, 0], sizes = [8, 128], strides = [1, 1]} : vector<16x128xf32> to vector<8x128xf32>
    %355 = arith.mulf %318, %354 : vector<8x128xf32>
    %c8 = arith.constant 8 : index
    %c0_143 = arith.constant 0 : index
    %356 = vector.load %arg12[%c8, %c0_143] : memref<40x128xf32, #tpu.memory_space<vmem>>, vector<8x128xf32>
    tpu.vector_store %arg12[%c8, %c0_143], %355 {strides = array<i32>} : memref<40x128xf32, #tpu.memory_space<vmem>>, vector<8x128xf32>,
    %357 = vector.extract_strided_slice %352 {offsets = [8, 0], sizes = [8, 128], strides = [1, 1]} : vector<16x128xf32> to vector<8x128xf32>
    %358 = arith.mulf %330, %357 : vector<8x128xf32>
    %c16 = arith.constant 16 : index
    %c0_144 = arith.constant 0 : index
    %359 = vector.load %arg12[%c16, %c0_144] : memref<40x128xf32, #tpu.memory_space<vmem>>, vector<8x128xf32>
    tpu.vector_store %arg12[%c16, %c0_144], %358 {strides = array<i32>} : memref<40x128xf32, #tpu.memory_space<vmem>>, vector<8x128xf32>,
    %c24 = arith.constant 24 : index
    %c0_145 = arith.constant 0 : index
    %360 = vector.load %arg12[%c24, %c0_145] : memref<40x128xf32, #tpu.memory_space<vmem>>, vector<8x128xf32>
    tpu.vector_store %arg12[%c24, %c0_145], %327 {strides = array<i32>} : memref<40x128xf32, #tpu.memory_space<vmem>>, vector<8x128xf32>,
    %c32 = arith.constant 32 : index
    %c0_146 = arith.constant 0 : index
    %361 = vector.load %arg12[%c32, %c0_146] : memref<40x128xf32, #tpu.memory_space<vmem>>, vector<8x128xf32>
    tpu.vector_store %arg12[%c32, %c0_146], %339 {strides = array<i32>} : memref<40x128xf32, #tpu.memory_space<vmem>>, vector<8x128xf32>,
    return
  }
  func.func @transform_0(%arg0: i32) -> (i32, i32) {
    %c0_i32 = arith.constant 0 : i32
    %c0_i32_0 = arith.constant 0 : i32
    %c0_i32_1 = arith.constant 0 : i32
    return %c0_i32, %c0_i32_0 : i32, i32
  }
  func.func @transform_1(%arg0: i32) -> (i32, i32) {
    %c0_i32 = arith.constant 0 : i32
    %c0_i32_0 = arith.constant 0 : i32
    return %c0_i32, %arg0 : i32, i32
  }
  func.func @transform_2(%arg0: i32) -> (i32, i32, i32) {
    %c0_i32 = arith.constant 0 : i32
    %c0_i32_0 = arith.constant 0 : i32
    %c0_i32_1 = arith.constant 0 : i32
    return %c0_i32, %c0_i32_0, %arg0 : i32, i32, i32
  }
  func.func @transform_3(%arg0: i32) -> (i32, i32, i32) {
    %c0_i32 = arith.constant 0 : i32
    %c0_i32_0 = arith.constant 0 : i32
    %c0_i32_1 = arith.constant 0 : i32
    %c0_i32_2 = arith.constant 0 : i32
    return %c0_i32, %c0_i32_0, %c0_i32_1 : i32, i32, i32
  }
  func.func @transform_4(%arg0: i32) -> (i32, i32, i32) {
    %c0_i32 = arith.constant 0 : i32
    %c0_i32_0 = arith.constant 0 : i32
    %c0_i32_1 = arith.constant 0 : i32
    %c0_i32_2 = arith.constant 0 : i32
    return %c0_i32, %c0_i32_0, %c0_i32_1 : i32, i32, i32
  }
  func.func @transform_5(%arg0: i32) -> (i32, i32) {
    %c0_i32 = arith.constant 0 : i32
    %c0_i32_0 = arith.constant 0 : i32
    %c0_i32_1 = arith.constant 0 : i32
    return %c0_i32, %c0_i32_0 : i32, i32
  }
  func.func @transform_6(%arg0: i32) -> (i32, i32) {
    %c0_i32 = arith.constant 0 : i32
    %c0_i32_0 = arith.constant 0 : i32
    %c0_i32_1 = arith.constant 0 : i32
    return %c0_i32, %c0_i32_0 : i32, i32
  }
  func.func @transform_7(%arg0: i32) -> (i32, i32, i32) {
    %c0_i32 = arith.constant 0 : i32
    %c0_i32_0 = arith.constant 0 : i32
    %c0_i32_1 = arith.constant 0 : i32
    %c0_i32_2 = arith.constant 0 : i32
    return %c0_i32, %c0_i32_0, %c0_i32_1 : i32, i32, i32
  }
  func.func @transform_8(%arg0: i32) -> (i32, i32, i32) {
    %c0_i32 = arith.constant 0 : i32
    %c0_i32_0 = arith.constant 0 : i32
    %c0_i32_1 = arith.constant 0 : i32
    %c0_i32_2 = arith.constant 0 : i32
    return %c0_i32, %c0_i32_0, %c0_i32_1 : i32, i32, i32
  }
  func.func @transform_9(%arg0: i32) -> (i32, i32) {
    %c0_i32 = arith.constant 0 : i32
    %c0_i32_0 = arith.constant 0 : i32
    %c0_i32_1 = arith.constant 0 : i32
    return %c0_i32, %c0_i32_0 : i32, i32
  }
  func.func @transform_10(%arg0: i32) -> (i32, i32) {
    %c0_i32 = arith.constant 0 : i32
    %c0_i32_0 = arith.constant 0 : i32
    %c0_i32_1 = arith.constant 0 : i32
    return %c0_i32, %c0_i32_0 : i32, i32
  }
  func.func @transform_11(%arg0: i32) -> (i32, i32) {
    %c0_i32 = arith.constant 0 : i32
    %c0_i32_0 = arith.constant 0 : i32
    return %c0_i32, %arg0 : i32, i32
  }
}

</mosaic_0001>

<llo_original>
// kernel: tpu_custom_call.1
$region0: #{tpu_custom_call.1}
  #allocation0 [shape = 'u32[]', space=smem, size = 0x4, offset = 0x4, fixed_abs, tag = 'smem constant byte address 0x4 - core index']
  #allocation1 [shape = 'u32[144,128]{1,0:T(1,128)}', space=vmem, size = 0x12000, scoped, tag = 'internal scratch']
  #allocation2 [shape = 'f32[1,1]{1,0:T(1,128)S(6)}', space=smem, size = 0x200, scoped, tag = 'scoped memory for tpu_custom_call.1']
  %s0 = inlined_call_operand.<no memory space> [shape: f32[1,1], index: 0, kind: input, shape index: {}]
  %s1 = inlined_call_operand.hbm [shape: f32[8,256], index: 1, kind: input, shape index: {}]
  %s2 = inlined_call_operand.hbm [shape: f32[8,8,256], index: 2, kind: input, shape index: {}]
  %s3 = inlined_call_operand.vmem [shape: f32[4,8,8], index: 3, kind: input, shape index: {}]
  %s4 = inlined_call_operand.hbm [shape: f32[2,8,8], index: 4, kind: input, shape index: {}]
  %s5 = inlined_call_operand.hbm [shape: f32[8,8], index: 5, kind: input, shape index: {}]
  %s6 = inlined_call_operand.hbm [shape: f32[8,8], index: 6, kind: input, shape index: {}]
  %s7 = inlined_call_operand.vmem [shape: f32[3,8,8], index: 7, kind: input, shape index: {}]
  %s8 = inlined_call_operand.vmem [shape: f32[3,8,1], index: 8, kind: input, shape index: {}]
  %s9 = inlined_call_operand.vmem [shape: f32[16,32], index: 9, kind: input, shape index: {}]
  %s10 = inlined_call_operand.vmem [shape: f32[16,1], index: 10, kind: input, shape index: {}]
  %s11 = inlined_call_operand.hbm [shape: f32[40,256], index: 11, kind: output, shape index: {}]
  %s12 = sld [smem:[#allocation0]]
  $region97: #{tpu_custom_call.1} parent=0
    _
  %s14 = ssub.s32 1, %s12
  %s15 = scalar_select 0, %s14, %s12
  %16 = sst [smem:[#allocation2]] %s0
  $region1: #{tpu_custom_call.1} parent=0
    #allocation3 [shape = 'u8[8192]{0}', space=vmem, size = 0x2000, scoped, tag = 'input window, operand 1']
    #allocation4 [shape = 's32[2]{0}', space=sflag, size = 0x8, scoped, tag = 'scoped memory for tpu_custom_call.1']
    #allocation5 [shape = 's32[2]{0}', space=sflag, size = 0x8, scoped, tag = 'scoped memory for tpu_custom_call.1']
    #allocation6 [shape = 'u8[65536]{0}', space=vmem, size = 0x10000, scoped, tag = 'input window, operand 2']
    #allocation7 [shape = 's32[2]{0}', space=sflag, size = 0x8, scoped, tag = 'scoped memory for tpu_custom_call.1']
    #allocation8 [shape = 'u8[8192]{0}', space=vmem, size = 0x2000, scoped, tag = 'input window, operand 4, single buffered']
    #allocation9 [shape = 'u8[4096]{0}', space=vmem, size = 0x1000, scoped, tag = 'input window, operand 5, single buffered']
    #allocation10 [shape = 's32[1]{0}', space=sflag, size = 0x4, scoped, tag = 'scoped memory for tpu_custom_call.1']
    #allocation11 [shape = 'u8[4096]{0}', space=vmem, size = 0x1000, scoped, tag = 'input window, operand 6, single buffered']
    #allocation12 [shape = 'u8[40960]{0}', space=vmem, size = 0xa000, scoped, tag = 'output window, operand 0']
    %17 = vsyncpa [#allocation4], 0
    %s18 = scalar_lea.sflag [#allocation4], 1
    %19 = vsyncpa %s18, 0
    %20 = vsyncpa [#allocation7], 0
    %s21 = scalar_lea.sflag [#allocation7], 1
    %22 = vsyncpa %s21, 0
    %23 = vsyncpa [#allocation10], 0
    %24 = vsyncpa [#allocation5], 0
    %s25 = scalar_lea.sflag [#allocation5], 1
    %26 = vsyncpa %s25, 0
    loop: start=0, step=1, limit=4
    $region2: #{tpu_custom_call.1} parent=1 // loop_pre_header
      _
    $region3: #{tpu_custom_call.1} parent=1 // loop_header
      %s28 = sphi 0, %s32
      %p29 = scmp.ge.s32.totalorder %s28, 4
      %s36 = sphi 0, %s36
      %s38 = sphi 0, %s36
      %s39 = sphi 0, %s38
      %s53 = sphi 0, %s39
      %s59 = sphi 0, %s61
      %s62 = sphi 0, %s59
      %s63 = sphi 0, %s62
      %s79 = sphi 0, %s63
      %s85 = sphi 0, %s87
      %s88 = sphi 0, %s85
      %s89 = sphi 0, %s88
      %s105 = sphi 0, %s89
      %s109 = sphi 0, %s109
      %s111 = sphi 0, %s109
      %s112 = sphi 0, %s111
      %s126 = sphi 0, %s112
      %s130 = sphi 0, %s130
      %s132 = sphi 0, %s130
      %s133 = sphi 0, %s132
      %s147 = sphi 0, %s133
      %s151 = sphi 0, %s151
      %s153 = sphi 0, %s151
      %s154 = sphi 0, %s153
      %s168 = sphi 0, %s154
      %s172 = sphi 0, %s172
      %s174 = sphi 0, %s172
      %s175 = sphi 0, %s174
      %s189 = sphi 0, %s175
      %s193 = sphi 0, %s193
      %s195 = sphi 0, %s193
      %s196 = sphi 0, %s195
      %s210 = sphi 0, %s196
      %s214 = sphi 0, %s214
      %s216 = sphi 0, %s214
      %s217 = sphi 0, %s216
      %s231 = sphi 0, %s217
      %s235 = sphi 0, %s235
      %s237 = sphi 0, %s235
      %s238 = sphi 0, %s237
      %s252 = sphi 0, %s238
      %s256 = sphi 0, %s256
      %s258 = sphi 0, %s256
      %s259 = sphi 0, %s258
      %s273 = sphi 0, %s259
      %s279 = sphi 0, %s281
      %s282 = sphi 0, %s279
      %s283 = sphi 0, %s282
      %s299 = sphi 0, %s283
    $region4: #{tpu_custom_call.1} parent=1 // loop_header_branch
      %31 = sbr.rel (%p29) target = $region8
    $region5: #{tpu_custom_call.1} parent=1 // loop_body
      %s33 = ssub.s32 %s28, 1
      %s34 = ssub.s32 %s28, 2
      %s35 = sadd.s32 %s28, 1
      %s37 = sadd.s32 %s36, 1
      %p40 = scmp.eq.s32.totalorder %s28, 1
      %p41 = scmp.ne.s32.totalorder %s36, %s38
      %p42 = scmp.eq.s32.totalorder %s28, 0
      %p43 = por %p41, %p42
      %p44 = scmp.ne.s32.totalorder %s36, %s38
      %p45 = scmp.eq.s32.totalorder %s33, 1
      %p46 = por %p44, %p45
      %p47 = scmp.ne.s32.totalorder %s38, %s39
      %p48 = scmp.eq.s32.totalorder %s33, 0
      %p49 = por %p47, %p48
      %p50 = scmp.ne.s32.totalorder %s38, %s39
      %p51 = scmp.eq.s32.totalorder %s34, 1
      %p52 = por %p50, %p51
      %p54 = scmp.ne.s32.totalorder %s39, %s53
      %p55 = scmp.eq.s32.totalorder %s34, 0
      %p56 = por %p54, %p55
      %s57 = ssub.s32 %s28, %s35
      %p58 = scmp.eq.s32.totalorder %s57, 0
      %s60 = sadd.s32 %s59, 1
      %s61 = scalar_select %p58, %s59, %s60
      %p64 = pneg %p58
      %p65 = scmp.eq.s32.totalorder %s28, 1
      %p66 = por %p64, %p65
      %p67 = scmp.ne.s32.totalorder %s59, %s62
      %p68 = scmp.eq.s32.totalorder %s28, 0
      %p69 = por %p67, %p68
      %p70 = scmp.ne.s32.totalorder %s59, %s62
      %p71 = scmp.eq.s32.totalorder %s33, 1
      %p72 = por %p70, %p71
      %p73 = scmp.ne.s32.totalorder %s62, %s63
      %p74 = scmp.eq.s32.totalorder %s33, 0
      %p75 = por %p73, %p74
      %p76 = scmp.ne.s32.totalorder %s62, %s63
      %p77 = scmp.eq.s32.totalorder %s34, 1
      %p78 = por %p76, %p77
      %p80 = scmp.ne.s32.totalorder %s63, %s79
      %p81 = scmp.eq.s32.totalorder %s34, 0
      %p82 = por %p80, %p81
      %s83 = ssub.s32 %s28, %s35
      %p84 = scmp.eq.s32.totalorder %s83, 0
      %s86 = sadd.s32 %s85, 1
      %s87 = scalar_select %p84, %s85, %s86
      %p90 = pneg %p84
      %p91 = scmp.eq.s32.totalorder %s28, 1
      %p92 = por %p90, %p91
      %p93 = scmp.ne.s32.totalorder %s85, %s88
      %p94 = scmp.eq.s32.totalorder %s28, 0
      %p95 = por %p93, %p94
      %p96 = scmp.ne.s32.totalorder %s85, %s88
      %p97 = scmp.eq.s32.totalorder %s33, 1
      %p98 = por %p96, %p97
      %p99 = scmp.ne.s32.totalorder %s88, %s89
      %p100 = scmp.eq.s32.totalorder %s33, 0
      %p101 = por %p99, %p100
      %p102 = scmp.ne.s32.totalorder %s88, %s89
      %p103 = scmp.eq.s32.totalorder %s34, 1
      %p104 = por %p102, %p103
      %p106 = scmp.ne.s32.totalorder %s89, %s105
      %p107 = scmp.eq.s32.totalorder %s34, 0
      %p108 = por %p106, %p107
      %s110 = sadd.s32 %s109, 1
      %p113 = scmp.eq.s32.totalorder %s28, 1
      %p114 = scmp.ne.s32.totalorder %s109, %s111
      %p115 = scmp.eq.s32.totalorder %s28, 0
      %p116 = por %p114, %p115
      %p117 = scmp.ne.s32.totalorder %s109, %s111
      %p118 = scmp.eq.s32.totalorder %s33, 1
      %p119 = por %p117, %p118
      %p120 = scmp.ne.s32.totalorder %s111, %s112
      %p121 = scmp.eq.s32.totalorder %s33, 0
      %p122 = por %p120, %p121
      %p123 = scmp.ne.s32.totalorder %s111, %s112
      %p124 = scmp.eq.s32.totalorder %s34, 1
      %p125 = por %p123, %p124
      %p127 = scmp.ne.s32.totalorder %s112, %s126
      %p128 = scmp.eq.s32.totalorder %s34, 0
      %p129 = por %p127, %p128
      %s131 = sadd.s32 %s130, 1
      %p134 = scmp.eq.s32.totalorder %s28, 1
      %p135 = scmp.ne.s32.totalorder %s130, %s132
      %p136 = scmp.eq.s32.totalorder %s28, 0
      %p137 = por %p135, %p136
      %p138 = scmp.ne.s32.totalorder %s130, %s132
      %p139 = scmp.eq.s32.totalorder %s33, 1
      %p140 = por %p138, %p139
      %p141 = scmp.ne.s32.totalorder %s132, %s133
      %p142 = scmp.eq.s32.totalorder %s33, 0
      %p143 = por %p141, %p142
      %p144 = scmp.ne.s32.totalorder %s132, %s133
      %p145 = scmp.eq.s32.totalorder %s34, 1
      %p146 = por %p144, %p145
      %p148 = scmp.ne.s32.totalorder %s133, %s147
      %p149 = scmp.eq.s32.totalorder %s34, 0
      %p150 = por %p148, %p149
      %s152 = sadd.s32 %s151, 1
      %p155 = scmp.eq.s32.totalorder %s28, 1
      %p156 = scmp.ne.s32.totalorder %s151, %s153
      %p157 = scmp.eq.s32.totalorder %s28, 0
      %p158 = por %p156, %p157
      %p159 = scmp.ne.s32.totalorder %s151, %s153
      %p160 = scmp.eq.s32.totalorder %s33, 1
      %p161 = por %p159, %p160
      %p162 = scmp.ne.s32.totalorder %s153, %s154
      %p163 = scmp.eq.s32.totalorder %s33, 0
      %p164 = por %p162, %p163
      %p165 = scmp.ne.s32.totalorder %s153, %s154
      %p166 = scmp.eq.s32.totalorder %s34, 1
      %p167 = por %p165, %p166
      %p169 = scmp.ne.s32.totalorder %s154, %s168
      %p170 = scmp.eq.s32.totalorder %s34, 0
      %p171 = por %p169, %p170
      %s173 = sadd.s32 %s172, 1
      %p176 = scmp.eq.s32.totalorder %s28, 1
      %p177 = scmp.ne.s32.totalorder %s172, %s174
      %p178 = scmp.eq.s32.totalorder %s28, 0
      %p179 = por %p177, %p178
      %p180 = scmp.ne.s32.totalorder %s172, %s174
      %p181 = scmp.eq.s32.totalorder %s33, 1
      %p182 = por %p180, %p181
      %p183 = scmp.ne.s32.totalorder %s174, %s175
      %p184 = scmp.eq.s32.totalorder %s33, 0
      %p185 = por %p183, %p184
      %p186 = scmp.ne.s32.totalorder %s174, %s175
      %p187 = scmp.eq.s32.totalorder %s34, 1
      %p188 = por %p186, %p187
      %p190 = scmp.ne.s32.totalorder %s175, %s189
      %p191 = scmp.eq.s32.totalorder %s34, 0
      %p192 = por %p190, %p191
      %s194 = sadd.s32 %s193, 1
      %p197 = scmp.eq.s32.totalorder %s28, 1
      %p198 = scmp.ne.s32.totalorder %s193, %s195
      %p199 = scmp.eq.s32.totalorder %s28, 0
      %p200 = por %p198, %p199
      %p201 = scmp.ne.s32.totalorder %s193, %s195
      %p202 = scmp.eq.s32.totalorder %s33, 1
      %p203 = por %p201, %p202
      %p204 = scmp.ne.s32.totalorder %s195, %s196
      %p205 = scmp.eq.s32.totalorder %s33, 0
      %p206 = por %p204, %p205
      %p207 = scmp.ne.s32.totalorder %s195, %s196
      %p208 = scmp.eq.s32.totalorder %s34, 1
      %p209 = por %p207, %p208
      %p211 = scmp.ne.s32.totalorder %s196, %s210
      %p212 = scmp.eq.s32.totalorder %s34, 0
      %p213 = por %p211, %p212
      %s215 = sadd.s32 %s214, 1
      %p218 = scmp.eq.s32.totalorder %s28, 1
      %p219 = scmp.ne.s32.totalorder %s214, %s216
      %p220 = scmp.eq.s32.totalorder %s28, 0
      %p221 = por %p219, %p220
      %p222 = scmp.ne.s32.totalorder %s214, %s216
      %p223 = scmp.eq.s32.totalorder %s33, 1
      %p224 = por %p222, %p223
      %p225 = scmp.ne.s32.totalorder %s216, %s217
      %p226 = scmp.eq.s32.totalorder %s33, 0
      %p227 = por %p225, %p226
      %p228 = scmp.ne.s32.totalorder %s216, %s217
      %p229 = scmp.eq.s32.totalorder %s34, 1
      %p230 = por %p228, %p229
      %p232 = scmp.ne.s32.totalorder %s217, %s231
      %p233 = scmp.eq.s32.totalorder %s34, 0
      %p234 = por %p232, %p233
      %s236 = sadd.s32 %s235, 1
      %p239 = scmp.eq.s32.totalorder %s28, 1
      %p240 = scmp.ne.s32.totalorder %s235, %s237
      %p241 = scmp.eq.s32.totalorder %s28, 0
      %p242 = por %p240, %p241
      %p243 = scmp.ne.s32.totalorder %s235, %s237
      %p244 = scmp.eq.s32.totalorder %s33, 1
      %p245 = por %p243, %p244
      %p246 = scmp.ne.s32.totalorder %s237, %s238
      %p247 = scmp.eq.s32.totalorder %s33, 0
      %p248 = por %p246, %p247
      %p249 = scmp.ne.s32.totalorder %s237, %s238
      %p250 = scmp.eq.s32.totalorder %s34, 1
      %p251 = por %p249, %p250
      %p253 = scmp.ne.s32.totalorder %s238, %s252
      %p254 = scmp.eq.s32.totalorder %s34, 0
      %p255 = por %p253, %p254
      %s257 = sadd.s32 %s256, 1
      %p260 = scmp.eq.s32.totalorder %s28, 1
      %p261 = scmp.ne.s32.totalorder %s256, %s258
      %p262 = scmp.eq.s32.totalorder %s28, 0
      %p263 = por %p261, %p262
      %p264 = scmp.ne.s32.totalorder %s256, %s258
      %p265 = scmp.eq.s32.totalorder %s33, 1
      %p266 = por %p264, %p265
      %p267 = scmp.ne.s32.totalorder %s258, %s259
      %p268 = scmp.eq.s32.totalorder %s33, 0
      %p269 = por %p267, %p268
      %p270 = scmp.ne.s32.totalorder %s258, %s259
      %p271 = scmp.eq.s32.totalorder %s34, 1
      %p272 = por %p270, %p271
      %p274 = scmp.ne.s32.totalorder %s259, %s273
      %p275 = scmp.eq.s32.totalorder %s34, 0
      %p276 = por %p274, %p275
      %s277 = ssub.s32 %s28, %s35
      %p278 = scmp.eq.s32.totalorder %s277, 0
      %s280 = sadd.s32 %s279, 1
      %s281 = scalar_select %p278, %s279, %s280
      %p284 = pneg %p278
      %p285 = scmp.eq.s32.totalorder %s28, 1
      %p286 = por %p284, %p285
      %p287 = scmp.ne.s32.totalorder %s279, %s282
      %p288 = scmp.eq.s32.totalorder %s28, 0
      %p289 = por %p287, %p288
      %p290 = scmp.ne.s32.totalorder %s279, %s282
      %p291 = scmp.eq.s32.totalorder %s33, 1
      %p292 = por %p290, %p291
      %p293 = scmp.ne.s32.totalorder %s282, %s283
      %p294 = scmp.eq.s32.totalorder %s33, 0
      %p295 = por %p293, %p294
      %p296 = scmp.ne.s32.totalorder %s282, %s283
      %p297 = scmp.eq.s32.totalorder %s34, 1
      %p298 = por %p296, %p297
      %p300 = scmp.ne.s32.totalorder %s283, %s299
      %p301 = scmp.eq.s32.totalorder %s34, 0
      %p302 = por %p300, %p301
      %p303 = scmp.le.s32.totalorder 1, %s28
      %p304 = scmp.lt.s32.totalorder %s28, 3
      %p305 = pnand %p303, %p304
      %p306 = pneg %p305
      // Predicated region
      $region9: #{tpu_custom_call.1} parent=5 // pred_check
        _
      $region10: #{tpu_custom_call.1} parent=5 // pred_check_branch
        %308 = sbr.rel (%p305) target = $region12
      $region11: #{tpu_custom_call.1} parent=5 // pred_region
        %s309 = ssub.s32 %s28, 1
        // Predicated region
        $region13: #{tpu_custom_call.1} parent=11 // pred_check
          %p310 = pneg %p49
        $region14: #{tpu_custom_call.1} parent=11 // pred_check_branch
          %312 = sbr.rel (%p310) target = $region16
        $region15: #{tpu_custom_call.1} parent=11 // pred_region
          _
        $region16: #{tpu_custom_call.1} parent=11 // pred_fallthru
          _
        // Predicated region
        $region17: #{tpu_custom_call.1} parent=11 // pred_check
          %p313 = pneg %p122
        $region18: #{tpu_custom_call.1} parent=11 // pred_check_branch
          %315 = sbr.rel (%p313) target = $region20
        $region19: #{tpu_custom_call.1} parent=11 // pred_region
          _
        $region20: #{tpu_custom_call.1} parent=11 // pred_fallthru
          _
        // Predicated region
        $region21: #{tpu_custom_call.1} parent=11 // pred_check
          %p316 = pneg %p143
        $region22: #{tpu_custom_call.1} parent=11 // pred_check_branch
          %318 = sbr.rel (%p316) target = $region24
        $region23: #{tpu_custom_call.1} parent=11 // pred_region
          %s320 = ssub.s32 256, 256
          %321 = vsyncadd [#allocation7], %s320
          %s322 = sshll.u32 [#allocation8], 4
          %s323 = int_to_ptr.vmem [resolvable:$true] %s322
          %328 = dma.hbm_to_vmem [thread:$0]  %s4, 256, %s323, [#allocation7], 128, 128, 8
        $region24: #{tpu_custom_call.1} parent=11 // pred_fallthru
          _
        // Predicated region
        $region25: #{tpu_custom_call.1} parent=11 // pred_check
          %p329 = pneg %p164
        $region26: #{tpu_custom_call.1} parent=11 // pred_check_branch
          %331 = sbr.rel (%p329) target = $region28
        $region27: #{tpu_custom_call.1} parent=11 // pred_region
          %s333 = ssub.s32 128, 128
          %334 = vsyncadd [#allocation10], %s333
          %s336 = sshll.u32 [#allocation9], 4
          %s337 = int_to_ptr.vmem [resolvable:$true] %s336
          %339 = dma.hbm_to_vmem [thread:$0]  %s5, 128, %s337, [#allocation10]
        $region28: #{tpu_custom_call.1} parent=11 // pred_fallthru
          _
        // Predicated region
        $region29: #{tpu_custom_call.1} parent=11 // pred_check
          %p340 = pneg %p185
        $region30: #{tpu_custom_call.1} parent=11 // pred_check_branch
          %342 = sbr.rel (%p340) target = $region32
        $region31: #{tpu_custom_call.1} parent=11 // pred_region
          %s344 = ssub.s32 128, 128
          %345 = vsyncadd [#allocation10], %s344
          %s347 = sshll.u32 [#allocation11], 4
          %s348 = int_to_ptr.vmem [resolvable:$true] %s347
          %350 = dma.hbm_to_vmem [thread:$0]  %s6, 128, %s348, [#allocation10]
        $region32: #{tpu_custom_call.1} parent=11 // pred_fallthru
          _
        // Predicated region
        $region33: #{tpu_custom_call.1} parent=11 // pred_check
          %p351 = pneg %p206
        $region34: #{tpu_custom_call.1} parent=11 // pred_check_branch
          %353 = sbr.rel (%p351) target = $region36
        $region35: #{tpu_custom_call.1} parent=11 // pred_region
          _
        $region36: #{tpu_custom_call.1} parent=11 // pred_fallthru
          _
        // Predicated region
        $region37: #{tpu_custom_call.1} parent=11 // pred_check
          %p354 = pneg %p227
        $region38: #{tpu_custom_call.1} parent=11 // pred_check_branch
          %356 = sbr.rel (%p354) target = $region40
        $region39: #{tpu_custom_call.1} parent=11 // pred_region
          _
        $region40: #{tpu_custom_call.1} parent=11 // pred_fallthru
          _
        // Predicated region
        $region41: #{tpu_custom_call.1} parent=11 // pred_check
          %p357 = pneg %p248
        $region42: #{tpu_custom_call.1} parent=11 // pred_check_branch
          %359 = sbr.rel (%p357) target = $region44
        $region43: #{tpu_custom_call.1} parent=11 // pred_region
          _
        $region44: #{tpu_custom_call.1} parent=11 // pred_fallthru
          _
        // Predicated region
        $region45: #{tpu_custom_call.1} parent=11 // pred_check
          %p360 = pneg %p269
        $region46: #{tpu_custom_call.1} parent=11 // pred_check_branch
          %362 = sbr.rel (%p360) target = $region48
        $region47: #{tpu_custom_call.1} parent=11 // pred_region
          _
        $region48: #{tpu_custom_call.1} parent=11 // pred_fallthru
          _
      $region12: #{tpu_custom_call.1} parent=5 // pred_fallthru
        _
      %p363 = scmp.lt.s32.totalorder %s28, 2
      // Predicated region
      $region49: #{tpu_custom_call.1} parent=5 // pred_check
        %p364 = pneg %p363
      $region50: #{tpu_custom_call.1} parent=5 // pred_check_branch
        %366 = sbr.rel (%p364) target = $region52
      $region51: #{tpu_custom_call.1} parent=5 // pred_region
        // Predicated region
        $region53: #{tpu_custom_call.1} parent=51 // pred_check
          %p367 = pneg %p69
        $region54: #{tpu_custom_call.1} parent=51 // pred_check_branch
          %369 = sbr.rel (%p367) target = $region56
        $region55: #{tpu_custom_call.1} parent=51 // pred_region
          %s370 = sand.u32 %s59, 1
          %s371 = scalar_lea.sflag [#allocation4], %s370
          %s372 = sand.u32 %s59, 1
          %s373 = smul.addr %s372, 8
          %s374 = scalar_lea.vmem [#allocation3], %s373
          %s376 = ssub.s32 128, 128
          %377 = vsyncadd %s371, %s376
          %s378 = smul.addr %s28, 128
          %s379 = scalar_lea.hbm %s1, %s378
          %s381 = sshll.u32 %s374, 4
          %s382 = int_to_ptr.vmem [resolvable:$true] %s381
          %384 = dma.hbm_to_vmem [thread:$0]  %s379, 128, %s382, %s371
        $region56: #{tpu_custom_call.1} parent=51 // pred_fallthru
          _
        // Predicated region
        $region57: #{tpu_custom_call.1} parent=51 // pred_check
          %p385 = pneg %p95
        $region58: #{tpu_custom_call.1} parent=51 // pred_check_branch
          %387 = sbr.rel (%p385) target = $region60
        $region59: #{tpu_custom_call.1} parent=51 // pred_region
          %s388 = sand.u32 %s28, 1
          %s389 = scalar_lea.sflag [#allocation7], %s388
          %s390 = sand.u32 %s85, 1
          %s391 = smul.addr %s390, 64
          %s392 = scalar_lea.vmem [#allocation6], %s391
          %s394 = ssub.s32 1024, 1024
          %395 = vsyncadd %s389, %s394
          %s396 = smul.addr %s28, 128
          %s397 = scalar_lea.hbm %s2, %s396
          %s398 = sshll.u32 %s392, 4
          %s399 = int_to_ptr.vmem [resolvable:$true] %s398
          %404 = dma.hbm_to_vmem [thread:$0]  %s397, 1024, %s399, %s389, 256, 128, 8
        $region60: #{tpu_custom_call.1} parent=51 // pred_fallthru
          _
      $region52: #{tpu_custom_call.1} parent=5 // pred_fallthru
        _
      %p405 = scmp.le.s32.totalorder 1, %s28
      %p406 = scmp.lt.s32.totalorder %s28, 3
      %p407 = pnand %p405, %p406
      %p408 = pneg %p407
      // Predicated region
      $region61: #{tpu_custom_call.1} parent=5 // pred_check
        _
      $region62: #{tpu_custom_call.1} parent=5 // pred_check_branch
        %410 = sbr.rel (%p407) target = $region64
      $region63: #{tpu_custom_call.1} parent=5 // pred_region
        %s411 = ssub.s32 %s28, 1
        %s412 = sand.u32 %s62, 1
        %s413 = scalar_lea.sflag [#allocation4], %s412
        %s414 = sand.u32 %s62, 1
        %s415 = smul.addr %s414, 8
        %s416 = scalar_lea.vmem [#allocation3], %s415
        // Predicated region
        $region65: #{tpu_custom_call.1} parent=63 // pred_check
          %p417 = pneg %p75
        $region66: #{tpu_custom_call.1} parent=63 // pred_check_branch
          %419 = sbr.rel (%p417) target = $region68
        $region67: #{tpu_custom_call.1} parent=63 // pred_region
          %420 = dma.done %s413, 128
        $region68: #{tpu_custom_call.1} parent=63 // pred_fallthru
          _
        %s421 = sand.u32 %s33, 1
        %s422 = scalar_lea.sflag [#allocation7], %s421
        %s423 = sand.u32 %s88, 1
        %s424 = smul.addr %s423, 64
        %s425 = scalar_lea.vmem [#allocation6], %s424
        // Predicated region
        $region69: #{tpu_custom_call.1} parent=63 // pred_check
          %p426 = pneg %p101
        $region70: #{tpu_custom_call.1} parent=63 // pred_check_branch
          %428 = sbr.rel (%p426) target = $region72
        $region71: #{tpu_custom_call.1} parent=63 // pred_region
          %429 = dma.done %s422, 1024
        $region72: #{tpu_custom_call.1} parent=63 // pred_fallthru
          _
        // Predicated region
        $region73: #{tpu_custom_call.1} parent=63 // pred_check
          %p430 = pneg %p143
        $region74: #{tpu_custom_call.1} parent=63 // pred_check_branch
          %432 = sbr.rel (%p430) target = $region76
        $region75: #{tpu_custom_call.1} parent=63 // pred_region
          %433 = dma.done [#allocation7], 256
        $region76: #{tpu_custom_call.1} parent=63 // pred_fallthru
          _
        // Predicated region
        $region77: #{tpu_custom_call.1} parent=63 // pred_check
          %p434 = pneg %p164
        $region78: #{tpu_custom_call.1} parent=63 // pred_check_branch
          %436 = sbr.rel (%p434) target = $region80
        $region79: #{tpu_custom_call.1} parent=63 // pred_region
          %437 = dma.done [#allocation10], 128
        $region80: #{tpu_custom_call.1} parent=63 // pred_fallthru
          _
        // Predicated region
        $region81: #{tpu_custom_call.1} parent=63 // pred_check
          %p438 = pneg %p185
        $region82: #{tpu_custom_call.1} parent=63 // pred_check_branch
          %440 = sbr.rel (%p438) target = $region84
        $region83: #{tpu_custom_call.1} parent=63 // pred_region
          %441 = dma.done [#allocation10], 128
        $region84: #{tpu_custom_call.1} parent=63 // pred_fallthru
          _
        %p442 = pneg %p49
        %p443 = pneg %p46
        %s444 = sand.u32 %s62, 1
        %s445 = scalar_lea.sflag [#allocation4], %s444
        %s446 = sand.u32 %s62, 1
        %s447 = smul.addr %s446, 8
        %s448 = scalar_lea.vmem [#allocation3], %s447
        %p449 = pneg %p75
        %p450 = pneg %p72
        %s451 = sand.u32 %s33, 1
        %s452 = scalar_lea.sflag [#allocation7], %s451
        %s453 = sand.u32 %s88, 1
        %s454 = smul.addr %s453, 64
        %s455 = scalar_lea.vmem [#allocation6], %s454
        %p456 = pneg %p101
        %p457 = pneg %p98
        %p458 = pneg %p122
        %p459 = pneg %p119
        %p460 = pneg %p143
        %p461 = pneg %p140
        %p462 = pneg %p164
        %p463 = pneg %p161
        %p464 = pneg %p185
        %p465 = pneg %p182
        %p466 = pneg %p206
        %p467 = pneg %p203
        %p468 = pneg %p227
        %p469 = pneg %p224
        %p470 = pneg %p248
        %p471 = pneg %p245
        %p472 = pneg %p269
        %p473 = pneg %p266
        %p474 = pneg %p295
        %p475 = pneg %p292
        %s476 = sand.u32 %s282, 1
        %s477 = scalar_lea.sflag [#allocation5], %s476
        %s478 = sand.u32 %s282, 1
        %s479 = smul.addr %s478, 40
        %s480 = scalar_lea.vmem [#allocation12], %s479
        %s481 = sld [smem:[#allocation2]]
        %v482 = vld [vmem:[%s416] sm:$0xff]
        %v483 = vmul.f32 %v482, 0.5
        %v484 = vtanh.pop %v483
        %v485 = vadd.f32 %v484, 1.0
        %v486 = vmul.f32 %v485, 0.5
        %v487 = vld [vmem:[%s425] sm:$0xff]
        %v489 = vcombine.high %v487, %v487
        %v491 = vunpack.c.l.s4 1966171168
        %v492 = vunpack.c.0.s8 %v491
        %v493 = vlaneseq
        %v494 = vshrl.u32 %v493, 7
        %v495 = vsub.s32 %v492, %v494
        %v496 = vrot.slane %v487, %v495
        %v498 = vunpack.c.l.s4 1966171168
        %v499 = vunpack.c.0.s8 %v498
        %v500 = vlaneseq
        %v501 = vshrl.u32 %v500, 7
        %v502 = vsub.s32 %v499, %v501
        %v503 = vrot.slane %v489, %v502
        %v504 = vcombine.high %v496, %v496
        %v505 = vcombine.high %v503, %v503
        %v507 = vunpack.c.l.s4 1966171168
        %v508 = vunpack.c.0.s8 %v507
        %v509 = vlaneseq
        %v510 = vshrl.u32 %v509, 7
        %v511 = vsub.s32 %v508, %v510
        %v512 = vrot.slane %v496, %v511
        %v514 = vunpack.c.l.s4 1966171168
        %v515 = vunpack.c.0.s8 %v514
        %v516 = vlaneseq
        %v517 = vshrl.u32 %v516, 7
        %v518 = vsub.s32 %v515, %v517
        %v519 = vrot.slane %v503, %v518
        %v521 = vunpack.c.l.s4 1966171168
        %v522 = vunpack.c.0.s8 %v521
        %v523 = vlaneseq
        %v524 = vshrl.u32 %v523, 7
        %v525 = vsub.s32 %v522, %v524
        %v526 = vrot.slane %v504, %v525
        %v528 = vunpack.c.l.s4 1966171168
        %v529 = vunpack.c.0.s8 %v528
        %v530 = vlaneseq
        %v531 = vshrl.u32 %v530, 7
        %v532 = vsub.s32 %v529, %v531
        %v533 = vrot.slane %v505, %v532
        %v534 = vcombine.high %v512, %v512
        %v535 = vcombine.high %v519, %v519
        %v536 = vcombine.high %v526, %v526
        %v537 = vcombine.high %v533, %v533
        %v538 = vld [vmem:[%s3] sm:$0xff]
        %v539 = vlaneseq
        %v540 = vshrl.u32 %v539, 7
        %v541 = vsub.s32 0, %v540
        %v542 = vrot.slane %v538, %v541
        %544 = vbcast.lane.b32.xlu0 %v542, 256
        %v545 = vpop.permute.xlu0 %544
        %v546 = vlaneseq
        %v547 = vshrl.u32 %v546, 7
        %v548 = vsub.s32 1, %v547
        %v549 = vrot.slane %v538, %v548
        %551 = vbcast.lane.b32.xlu0 %v549, 256
        %v552 = vpop.permute.xlu0 %551
        %v553 = vlaneseq
        %v554 = vshrl.u32 %v553, 7
        %v555 = vsub.s32 2, %v554
        %v556 = vrot.slane %v538, %v555
        %558 = vbcast.lane.b32.xlu0 %v556, 256
        %v559 = vpop.permute.xlu0 %558
        %v560 = vlaneseq
        %v561 = vshrl.u32 %v560, 7
        %v562 = vsub.s32 3, %v561
        %v563 = vrot.slane %v538, %v562
        %565 = vbcast.lane.b32.xlu0 %v563, 256
        %v566 = vpop.permute.xlu0 %565
        %v567 = vlaneseq
        %v568 = vshrl.u32 %v567, 7
        %v569 = vsub.s32 4, %v568
        %v570 = vrot.slane %v538, %v569
        %572 = vbcast.lane.b32.xlu0 %v570, 256
        %v573 = vpop.permute.xlu0 %572
        %v574 = vlaneseq
        %v575 = vshrl.u32 %v574, 7
        %v576 = vsub.s32 5, %v575
        %v577 = vrot.slane %v538, %v576
        %579 = vbcast.lane.b32.xlu0 %v577, 256
        %v580 = vpop.permute.xlu0 %579
        %v581 = vlaneseq
        %v582 = vshrl.u32 %v581, 7
        %v583 = vsub.s32 6, %v582
        %v584 = vrot.slane %v538, %v583
        %586 = vbcast.lane.b32.xlu0 %v584, 256
        %v587 = vpop.permute.xlu0 %586
        %v588 = vlaneseq
        %v589 = vshrl.u32 %v588, 7
        %v590 = vsub.s32 7, %v589
        %v591 = vrot.slane %v538, %v590
        %593 = vbcast.lane.b32.xlu0 %v591, 256
        %v594 = vpop.permute.xlu0 %593
        %v595 = vlaneseq
        %v596 = vshrl.u32 %v595, 7
        %v597 = vsub.s32 0, %v596
        %v598 = vrot.slane %v512, %v597
        %v599 = vlaneseq
        %v600 = vshrl.u32 %v599, 7
        %v601 = vsub.s32 0, %v600
        %v602 = vrot.slane %v526, %v601
        %v603 = vlaneseq
        %v604 = vshrl.u32 %v603, 7
        %v605 = vsub.s32 0, %v604
        %v606 = vrot.slane %v534, %v605
        %v607 = vlaneseq
        %v608 = vshrl.u32 %v607, 7
        %v609 = vsub.s32 0, %v608
        %v610 = vrot.slane %v536, %v609
        %v611 = vlaneseq
        %v612 = vshrl.u32 %v611, 7
        %v613 = vsub.s32 0, %v612
        %v614 = vrot.slane %v519, %v613
        %v615 = vlaneseq
        %v616 = vshrl.u32 %v615, 7
        %v617 = vsub.s32 0, %v616
        %v618 = vrot.slane %v533, %v617
        %v619 = vlaneseq
        %v620 = vshrl.u32 %v619, 7
        %v621 = vsub.s32 0, %v620
        %v622 = vrot.slane %v535, %v621
        %v623 = vlaneseq
        %v624 = vshrl.u32 %v623, 7
        %v625 = vsub.s32 0, %v624
        %v626 = vrot.slane %v537, %v625
        %v635 = vmul.f32 %v598, %v545
        %v636 = vmul.f32 %v602, %v552
        %v637 = vmul.f32 %v606, %v559
        %v638 = vmul.f32 %v610, %v566
        %v639 = vmul.f32 %v614, %v573
        %v640 = vmul.f32 %v618, %v580
        %v641 = vmul.f32 %v622, %v587
        %v642 = vmul.f32 %v626, %v594
        %s643 = scalar_lea.vmem %s425, 8 [#allocation6]
        %v644 = vld [vmem:[%s643] sm:$0xff]
        %v646 = vcombine.high %v644, %v644
        %v648 = vunpack.c.l.s4 1966171168
        %v649 = vunpack.c.0.s8 %v648
        %v650 = vlaneseq
        %v651 = vshrl.u32 %v650, 7
        %v652 = vsub.s32 %v649, %v651
        %v653 = vrot.slane %v644, %v652
        %v655 = vunpack.c.l.s4 1966171168
        %v656 = vunpack.c.0.s8 %v655
        %v657 = vlaneseq
        %v658 = vshrl.u32 %v657, 7
        %v659 = vsub.s32 %v656, %v658
        %v660 = vrot.slane %v646, %v659
        %v661 = vcombine.high %v653, %v653
        %v662 = vcombine.high %v660, %v660
        %v664 = vunpack.c.l.s4 1966171168
        %v665 = vunpack.c.0.s8 %v664
        %v666 = vlaneseq
        %v667 = vshrl.u32 %v666, 7
        %v668 = vsub.s32 %v665, %v667
        %v669 = vrot.slane %v653, %v668
        %v671 = vunpack.c.l.s4 1966171168
        %v672 = vunpack.c.0.s8 %v671
        %v673 = vlaneseq
        %v674 = vshrl.u32 %v673, 7
        %v675 = vsub.s32 %v672, %v674
        %v676 = vrot.slane %v660, %v675
        %v678 = vunpack.c.l.s4 1966171168
        %v679 = vunpack.c.0.s8 %v678
        %v680 = vlaneseq
        %v681 = vshrl.u32 %v680, 7
        %v682 = vsub.s32 %v679, %v681
        %v683 = vrot.slane %v661, %v682
        %v685 = vunpack.c.l.s4 1966171168
        %v686 = vunpack.c.0.s8 %v685
        %v687 = vlaneseq
        %v688 = vshrl.u32 %v687, 7
        %v689 = vsub.s32 %v686, %v688
        %v690 = vrot.slane %v662, %v689
        %v691 = vcombine.high %v669, %v669
        %v692 = vcombine.high %v676, %v676
        %v693 = vcombine.high %v683, %v683
        %v694 = vcombine.high %v690, %v690
        %s695 = scalar_lea.vmem %s3, 8
        %v696 = vld [vmem:[%s695] sm:$0xff]
        %v697 = vlaneseq
        %v698 = vshrl.u32 %v697, 7
        %v699 = vsub.s32 0, %v698
        %v700 = vrot.slane %v696, %v699
        %702 = vbcast.lane.b32.xlu0 %v700, 256
        %v703 = vpop.permute.xlu0 %702
        %v704 = vlaneseq
        %v705 = vshrl.u32 %v704, 7
        %v706 = vsub.s32 1, %v705
        %v707 = vrot.slane %v696, %v706
        %709 = vbcast.lane.b32.xlu0 %v707, 256
        %v710 = vpop.permute.xlu0 %709
        %v711 = vlaneseq
        %v712 = vshrl.u32 %v711, 7
        %v713 = vsub.s32 2, %v712
        %v714 = vrot.slane %v696, %v713
        %716 = vbcast.lane.b32.xlu0 %v714, 256
        %v717 = vpop.permute.xlu0 %716
        %v718 = vlaneseq
        %v719 = vshrl.u32 %v718, 7
        %v720 = vsub.s32 3, %v719
        %v721 = vrot.slane %v696, %v720
        %723 = vbcast.lane.b32.xlu0 %v721, 256
        %v724 = vpop.permute.xlu0 %723
        %v725 = vlaneseq
        %v726 = vshrl.u32 %v725, 7
        %v727 = vsub.s32 4, %v726
        %v728 = vrot.slane %v696, %v727
        %730 = vbcast.lane.b32.xlu0 %v728, 256
        %v731 = vpop.permute.xlu0 %730
        %v732 = vlaneseq
        %v733 = vshrl.u32 %v732, 7
        %v734 = vsub.s32 5, %v733
        %v735 = vrot.slane %v696, %v734
        %737 = vbcast.lane.b32.xlu0 %v735, 256
        %v738 = vpop.permute.xlu0 %737
        %v739 = vlaneseq
        %v740 = vshrl.u32 %v739, 7
        %v741 = vsub.s32 6, %v740
        %v742 = vrot.slane %v696, %v741
        %744 = vbcast.lane.b32.xlu0 %v742, 256
        %v745 = vpop.permute.xlu0 %744
        %v746 = vlaneseq
        %v747 = vshrl.u32 %v746, 7
        %v748 = vsub.s32 7, %v747
        %v749 = vrot.slane %v696, %v748
        %751 = vbcast.lane.b32.xlu0 %v749, 256
        %v752 = vpop.permute.xlu0 %751
        %v753 = vlaneseq
        %v754 = vshrl.u32 %v753, 7
        %v755 = vsub.s32 0, %v754
        %v756 = vrot.slane %v669, %v755
        %v757 = vlaneseq
        %v758 = vshrl.u32 %v757, 7
        %v759 = vsub.s32 0, %v758
        %v760 = vrot.slane %v683, %v759
        %v761 = vlaneseq
        %v762 = vshrl.u32 %v761, 7
        %v763 = vsub.s32 0, %v762
        %v764 = vrot.slane %v691, %v763
        %v765 = vlaneseq
        %v766 = vshrl.u32 %v765, 7
        %v767 = vsub.s32 0, %v766
        %v768 = vrot.slane %v693, %v767
        %v769 = vlaneseq
        %v770 = vshrl.u32 %v769, 7
        %v771 = vsub.s32 0, %v770
        %v772 = vrot.slane %v676, %v771
        %v773 = vlaneseq
        %v774 = vshrl.u32 %v773, 7
        %v775 = vsub.s32 0, %v774
        %v776 = vrot.slane %v690, %v775
        %v777 = vlaneseq
        %v778 = vshrl.u32 %v777, 7
        %v779 = vsub.s32 0, %v778
        %v780 = vrot.slane %v692, %v779
        %v781 = vlaneseq
        %v782 = vshrl.u32 %v781, 7
        %v783 = vsub.s32 0, %v782
        %v784 = vrot.slane %v694, %v783
        %v793 = vmul.f32 %v756, %v703
        %v794 = vmul.f32 %v760, %v710
        %v795 = vmul.f32 %v764, %v717
        %v796 = vmul.f32 %v768, %v724
        %v797 = vmul.f32 %v772, %v731
        %v798 = vmul.f32 %v776, %v738
        %v799 = vmul.f32 %v780, %v745
        %v800 = vmul.f32 %v784, %v752
        %v801 = vadd.f32 %v635, %v793
        %v802 = vadd.f32 %v636, %v794
        %v803 = vadd.f32 %v637, %v795
        %v804 = vadd.f32 %v638, %v796
        %v805 = vadd.f32 %v639, %v797
        %v806 = vadd.f32 %v640, %v798
        %v807 = vadd.f32 %v641, %v799
        %v808 = vadd.f32 %v642, %v800
        %s809 = scalar_lea.vmem %s425, 16 [#allocation6]
        %v810 = vld [vmem:[%s809] sm:$0xff]
        %v812 = vcombine.high %v810, %v810
        %v814 = vunpack.c.l.s4 1966171168
        %v815 = vunpack.c.0.s8 %v814
        %v816 = vlaneseq
        %v817 = vshrl.u32 %v816, 7
        %v818 = vsub.s32 %v815, %v817
        %v819 = vrot.slane %v810, %v818
        %v821 = vunpack.c.l.s4 1966171168
        %v822 = vunpack.c.0.s8 %v821
        %v823 = vlaneseq
        %v824 = vshrl.u32 %v823, 7
        %v825 = vsub.s32 %v822, %v824
        %v826 = vrot.slane %v812, %v825
        %v827 = vcombine.high %v819, %v819
        %v828 = vcombine.high %v826, %v826
        %v830 = vunpack.c.l.s4 1966171168
        %v831 = vunpack.c.0.s8 %v830
        %v832 = vlaneseq
        %v833 = vshrl.u32 %v832, 7
        %v834 = vsub.s32 %v831, %v833
        %v835 = vrot.slane %v819, %v834
        %v837 = vunpack.c.l.s4 1966171168
        %v838 = vunpack.c.0.s8 %v837
        %v839 = vlaneseq
        %v840 = vshrl.u32 %v839, 7
        %v841 = vsub.s32 %v838, %v840
        %v842 = vrot.slane %v826, %v841
        %v844 = vunpack.c.l.s4 1966171168
        %v845 = vunpack.c.0.s8 %v844
        %v846 = vlaneseq
        %v847 = vshrl.u32 %v846, 7
        %v848 = vsub.s32 %v845, %v847
        %v849 = vrot.slane %v827, %v848
        %v851 = vunpack.c.l.s4 1966171168
        %v852 = vunpack.c.0.s8 %v851
        %v853 = vlaneseq
        %v854 = vshrl.u32 %v853, 7
        %v855 = vsub.s32 %v852, %v854
        %v856 = vrot.slane %v828, %v855
        %v857 = vcombine.high %v835, %v835
        %v858 = vcombine.high %v842, %v842
        %v859 = vcombine.high %v849, %v849
        %v860 = vcombine.high %v856, %v856
        %s861 = scalar_lea.vmem %s3, 16
        %v862 = vld [vmem:[%s861] sm:$0xff]
        %v863 = vlaneseq
        %v864 = vshrl.u32 %v863, 7
        %v865 = vsub.s32 0, %v864
        %v866 = vrot.slane %v862, %v865
        %868 = vbcast.lane.b32.xlu0 %v866, 256
        %v869 = vpop.permute.xlu0 %868
        %v870 = vlaneseq
        %v871 = vshrl.u32 %v870, 7
        %v872 = vsub.s32 1, %v871
        %v873 = vrot.slane %v862, %v872
        %875 = vbcast.lane.b32.xlu0 %v873, 256
        %v876 = vpop.permute.xlu0 %875
        %v877 = vlaneseq
        %v878 = vshrl.u32 %v877, 7
        %v879 = vsub.s32 2, %v878
        %v880 = vrot.slane %v862, %v879
        %882 = vbcast.lane.b32.xlu0 %v880, 256
        %v883 = vpop.permute.xlu0 %882
        %v884 = vlaneseq
        %v885 = vshrl.u32 %v884, 7
        %v886 = vsub.s32 3, %v885
        %v887 = vrot.slane %v862, %v886
        %889 = vbcast.lane.b32.xlu0 %v887, 256
        %v890 = vpop.permute.xlu0 %889
        %v891 = vlaneseq
        %v892 = vshrl.u32 %v891, 7
        %v893 = vsub.s32 4, %v892
        %v894 = vrot.slane %v862, %v893
        %896 = vbcast.lane.b32.xlu0 %v894, 256
        %v897 = vpop.permute.xlu0 %896
        %v898 = vlaneseq
        %v899 = vshrl.u32 %v898, 7
        %v900 = vsub.s32 5, %v899
        %v901 = vrot.slane %v862, %v900
        %903 = vbcast.lane.b32.xlu0 %v901, 256
        %v904 = vpop.permute.xlu0 %903
        %v905 = vlaneseq
        %v906 = vshrl.u32 %v905, 7
        %v907 = vsub.s32 6, %v906
        %v908 = vrot.slane %v862, %v907
        %910 = vbcast.lane.b32.xlu0 %v908, 256
        %v911 = vpop.permute.xlu0 %910
        %v912 = vlaneseq
        %v913 = vshrl.u32 %v912, 7
        %v914 = vsub.s32 7, %v913
        %v915 = vrot.slane %v862, %v914
        %917 = vbcast.lane.b32.xlu0 %v915, 256
        %v918 = vpop.permute.xlu0 %917
        %v919 = vlaneseq
        %v920 = vshrl.u32 %v919, 7
        %v921 = vsub.s32 0, %v920
        %v922 = vrot.slane %v835, %v921
        %v923 = vlaneseq
        %v924 = vshrl.u32 %v923, 7
        %v925 = vsub.s32 0, %v924
        %v926 = vrot.slane %v849, %v925
        %v927 = vlaneseq
        %v928 = vshrl.u32 %v927, 7
        %v929 = vsub.s32 0, %v928
        %v930 = vrot.slane %v857, %v929
        %v931 = vlaneseq
        %v932 = vshrl.u32 %v931, 7
        %v933 = vsub.s32 0, %v932
        %v934 = vrot.slane %v859, %v933
        %v935 = vlaneseq
        %v936 = vshrl.u32 %v935, 7
        %v937 = vsub.s32 0, %v936
        %v938 = vrot.slane %v842, %v937
        %v939 = vlaneseq
        %v940 = vshrl.u32 %v939, 7
        %v941 = vsub.s32 0, %v940
        %v942 = vrot.slane %v856, %v941
        %v943 = vlaneseq
        %v944 = vshrl.u32 %v943, 7
        %v945 = vsub.s32 0, %v944
        %v946 = vrot.slane %v858, %v945
        %v947 = vlaneseq
        %v948 = vshrl.u32 %v947, 7
        %v949 = vsub.s32 0, %v948
        %v950 = vrot.slane %v860, %v949
        %v959 = vmul.f32 %v922, %v869
        %v960 = vmul.f32 %v926, %v876
        %v961 = vmul.f32 %v930, %v883
        %v962 = vmul.f32 %v934, %v890
        %v963 = vmul.f32 %v938, %v897
        %v964 = vmul.f32 %v942, %v904
        %v965 = vmul.f32 %v946, %v911
        %v966 = vmul.f32 %v950, %v918
        %v967 = vadd.f32 %v801, %v959
        %v968 = vadd.f32 %v802, %v960
        %v969 = vadd.f32 %v803, %v961
        %v970 = vadd.f32 %v804, %v962
        %v971 = vadd.f32 %v805, %v963
        %v972 = vadd.f32 %v806, %v964
        %v973 = vadd.f32 %v807, %v965
        %v974 = vadd.f32 %v808, %v966
        %s975 = scalar_lea.vmem %s425, 24 [#allocation6]
        %v976 = vld [vmem:[%s975] sm:$0xff]
        %v978 = vcombine.high %v976, %v976
        %v980 = vunpack.c.l.s4 1966171168
        %v981 = vunpack.c.0.s8 %v980
        %v982 = vlaneseq
        %v983 = vshrl.u32 %v982, 7
        %v984 = vsub.s32 %v981, %v983
        %v985 = vrot.slane %v976, %v984
        %v987 = vunpack.c.l.s4 1966171168
        %v988 = vunpack.c.0.s8 %v987
        %v989 = vlaneseq
        %v990 = vshrl.u32 %v989, 7
        %v991 = vsub.s32 %v988, %v990
        %v992 = vrot.slane %v978, %v991
        %v993 = vcombine.high %v985, %v985
        %v994 = vcombine.high %v992, %v992
        %v996 = vunpack.c.l.s4 1966171168
        %v997 = vunpack.c.0.s8 %v996
        %v998 = vlaneseq
        %v999 = vshrl.u32 %v998, 7
        %v1000 = vsub.s32 %v997, %v999
        %v1001 = vrot.slane %v985, %v1000
        %v1003 = vunpack.c.l.s4 1966171168
        %v1004 = vunpack.c.0.s8 %v1003
        %v1005 = vlaneseq
        %v1006 = vshrl.u32 %v1005, 7
        %v1007 = vsub.s32 %v1004, %v1006
        %v1008 = vrot.slane %v992, %v1007
        %v1010 = vunpack.c.l.s4 1966171168
        %v1011 = vunpack.c.0.s8 %v1010
        %v1012 = vlaneseq
        %v1013 = vshrl.u32 %v1012, 7
        %v1014 = vsub.s32 %v1011, %v1013
        %v1015 = vrot.slane %v993, %v1014
        %v1017 = vunpack.c.l.s4 1966171168
        %v1018 = vunpack.c.0.s8 %v1017
        %v1019 = vlaneseq
        %v1020 = vshrl.u32 %v1019, 7
        %v1021 = vsub.s32 %v1018, %v1020
        %v1022 = vrot.slane %v994, %v1021
        %v1023 = vcombine.high %v1001, %v1001
        %v1024 = vcombine.high %v1008, %v1008
        %v1025 = vcombine.high %v1015, %v1015
        %v1026 = vcombine.high %v1022, %v1022
        %s1027 = scalar_lea.vmem %s3, 24
        %v1028 = vld [vmem:[%s1027] sm:$0xff]
        %v1029 = vlaneseq
        %v1030 = vshrl.u32 %v1029, 7
        %v1031 = vsub.s32 0, %v1030
        %v1032 = vrot.slane %v1028, %v1031
        %1034 = vbcast.lane.b32.xlu0 %v1032, 256
        %v1035 = vpop.permute.xlu0 %1034
        %v1036 = vlaneseq
        %v1037 = vshrl.u32 %v1036, 7
        %v1038 = vsub.s32 1, %v1037
        %v1039 = vrot.slane %v1028, %v1038
        %1041 = vbcast.lane.b32.xlu0 %v1039, 256
        %v1042 = vpop.permute.xlu0 %1041
        %v1043 = vlaneseq
        %v1044 = vshrl.u32 %v1043, 7
        %v1045 = vsub.s32 2, %v1044
        %v1046 = vrot.slane %v1028, %v1045
        %1048 = vbcast.lane.b32.xlu0 %v1046, 256
        %v1049 = vpop.permute.xlu0 %1048
        %v1050 = vlaneseq
        %v1051 = vshrl.u32 %v1050, 7
        %v1052 = vsub.s32 3, %v1051
        %v1053 = vrot.slane %v1028, %v1052
        %1055 = vbcast.lane.b32.xlu0 %v1053, 256
        %v1056 = vpop.permute.xlu0 %1055
        %v1057 = vlaneseq
        %v1058 = vshrl.u32 %v1057, 7
        %v1059 = vsub.s32 4, %v1058
        %v1060 = vrot.slane %v1028, %v1059
        %1062 = vbcast.lane.b32.xlu0 %v1060, 256
        %v1063 = vpop.permute.xlu0 %1062
        %v1064 = vlaneseq
        %v1065 = vshrl.u32 %v1064, 7
        %v1066 = vsub.s32 5, %v1065
        %v1067 = vrot.slane %v1028, %v1066
        %1069 = vbcast.lane.b32.xlu0 %v1067, 256
        %v1070 = vpop.permute.xlu0 %1069
        %v1071 = vlaneseq
        %v1072 = vshrl.u32 %v1071, 7
        %v1073 = vsub.s32 6, %v1072
        %v1074 = vrot.slane %v1028, %v1073
        %1076 = vbcast.lane.b32.xlu0 %v1074, 256
        %v1077 = vpop.permute.xlu0 %1076
        %v1078 = vlaneseq
        %v1079 = vshrl.u32 %v1078, 7
        %v1080 = vsub.s32 7, %v1079
        %v1081 = vrot.slane %v1028, %v1080
        %1083 = vbcast.lane.b32.xlu0 %v1081, 256
        %v1084 = vpop.permute.xlu0 %1083
        %v1085 = vlaneseq
        %v1086 = vshrl.u32 %v1085, 7
        %v1087 = vsub.s32 0, %v1086
        %v1088 = vrot.slane %v1001, %v1087
        %v1089 = vlaneseq
        %v1090 = vshrl.u32 %v1089, 7
        %v1091 = vsub.s32 0, %v1090
        %v1092 = vrot.slane %v1015, %v1091
        %v1093 = vlaneseq
        %v1094 = vshrl.u32 %v1093, 7
        %v1095 = vsub.s32 0, %v1094
        %v1096 = vrot.slane %v1023, %v1095
        %v1097 = vlaneseq
        %v1098 = vshrl.u32 %v1097, 7
        %v1099 = vsub.s32 0, %v1098
        %v1100 = vrot.slane %v1025, %v1099
        %v1101 = vlaneseq
        %v1102 = vshrl.u32 %v1101, 7
        %v1103 = vsub.s32 0, %v1102
        %v1104 = vrot.slane %v1008, %v1103
        %v1105 = vlaneseq
        %v1106 = vshrl.u32 %v1105, 7
        %v1107 = vsub.s32 0, %v1106
        %v1108 = vrot.slane %v1022, %v1107
        %v1109 = vlaneseq
        %v1110 = vshrl.u32 %v1109, 7
        %v1111 = vsub.s32 0, %v1110
        %v1112 = vrot.slane %v1024, %v1111
        %v1113 = vlaneseq
        %v1114 = vshrl.u32 %v1113, 7
        %v1115 = vsub.s32 0, %v1114
        %v1116 = vrot.slane %v1026, %v1115
        %v1125 = vmul.f32 %v1088, %v1035
        %v1126 = vmul.f32 %v1092, %v1042
        %v1127 = vmul.f32 %v1096, %v1049
        %v1128 = vmul.f32 %v1100, %v1056
        %v1129 = vmul.f32 %v1104, %v1063
        %v1130 = vmul.f32 %v1108, %v1070
        %v1131 = vmul.f32 %v1112, %v1077
        %v1132 = vmul.f32 %v1116, %v1084
        %v1133 = vadd.f32 %v967, %v1125
        %v1134 = vadd.f32 %v968, %v1126
        %v1135 = vadd.f32 %v969, %v1127
        %v1136 = vadd.f32 %v970, %v1128
        %v1137 = vadd.f32 %v971, %v1129
        %v1138 = vadd.f32 %v972, %v1130
        %v1139 = vadd.f32 %v973, %v1131
        %v1140 = vadd.f32 %v974, %v1132
        %v1141 = vld [vmem:[#allocation8] sm:$0xff]
        %v1142 = vlaneseq
        %v1143 = vshrl.u32 %v1142, 7
        %v1144 = vsub.s32 0, %v1143
        %v1145 = vrot.slane %v1141, %v1144
        %1147 = vbcast.lane.b32.xlu0 %v1145, 256
        %v1148 = vpop.permute.xlu0 %1147
        %v1149 = vlaneseq
        %v1150 = vshrl.u32 %v1149, 7
        %v1151 = vsub.s32 1, %v1150
        %v1152 = vrot.slane %v1141, %v1151
        %1154 = vbcast.lane.b32.xlu0 %v1152, 256
        %v1155 = vpop.permute.xlu0 %1154
        %v1156 = vlaneseq
        %v1157 = vshrl.u32 %v1156, 7
        %v1158 = vsub.s32 2, %v1157
        %v1159 = vrot.slane %v1141, %v1158
        %1161 = vbcast.lane.b32.xlu0 %v1159, 256
        %v1162 = vpop.permute.xlu0 %1161
        %v1163 = vlaneseq
        %v1164 = vshrl.u32 %v1163, 7
        %v1165 = vsub.s32 3, %v1164
        %v1166 = vrot.slane %v1141, %v1165
        %1168 = vbcast.lane.b32.xlu0 %v1166, 256
        %v1169 = vpop.permute.xlu0 %1168
        %v1170 = vlaneseq
        %v1171 = vshrl.u32 %v1170, 7
        %v1172 = vsub.s32 4, %v1171
        %v1173 = vrot.slane %v1141, %v1172
        %1175 = vbcast.lane.b32.xlu0 %v1173, 256
        %v1176 = vpop.permute.xlu0 %1175
        %v1177 = vlaneseq
        %v1178 = vshrl.u32 %v1177, 7
        %v1179 = vsub.s32 5, %v1178
        %v1180 = vrot.slane %v1141, %v1179
        %1182 = vbcast.lane.b32.xlu0 %v1180, 256
        %v1183 = vpop.permute.xlu0 %1182
        %v1184 = vlaneseq
        %v1185 = vshrl.u32 %v1184, 7
        %v1186 = vsub.s32 6, %v1185
        %v1187 = vrot.slane %v1141, %v1186
        %1189 = vbcast.lane.b32.xlu0 %v1187, 256
        %v1190 = vpop.permute.xlu0 %1189
        %v1191 = vlaneseq
        %v1192 = vshrl.u32 %v1191, 7
        %v1193 = vsub.s32 7, %v1192
        %v1194 = vrot.slane %v1141, %v1193
        %1196 = vbcast.lane.b32.xlu0 %v1194, 256
        %v1197 = vpop.permute.xlu0 %1196
        %v1198 = vadd.f32 %v1133, %v1148
        %v1199 = vadd.f32 %v1134, %v1155
        %v1200 = vadd.f32 %v1135, %v1162
        %v1201 = vadd.f32 %v1136, %v1169
        %v1202 = vadd.f32 %v1137, %v1176
        %v1203 = vadd.f32 %v1138, %v1183
        %v1204 = vadd.f32 %v1139, %v1190
        %v1205 = vadd.f32 %v1140, %v1197
        %s1206 = scalar_lea.vmem %s425, 32 [#allocation6]
        %v1207 = vld [vmem:[%s1206] sm:$0xff]
        %v1209 = vcombine.high %v1207, %v1207
        %v1211 = vunpack.c.l.s4 1966171168
        %v1212 = vunpack.c.0.s8 %v1211
        %v1213 = vlaneseq
        %v1214 = vshrl.u32 %v1213, 7
        %v1215 = vsub.s32 %v1212, %v1214
        %v1216 = vrot.slane %v1207, %v1215
        %v1218 = vunpack.c.l.s4 1966171168
        %v1219 = vunpack.c.0.s8 %v1218
        %v1220 = vlaneseq
        %v1221 = vshrl.u32 %v1220, 7
        %v1222 = vsub.s32 %v1219, %v1221
        %v1223 = vrot.slane %v1209, %v1222
        %v1224 = vcombine.high %v1216, %v1216
        %v1225 = vcombine.high %v1223, %v1223
        %v1227 = vunpack.c.l.s4 1966171168
        %v1228 = vunpack.c.0.s8 %v1227
        %v1229 = vlaneseq
        %v1230 = vshrl.u32 %v1229, 7
        %v1231 = vsub.s32 %v1228, %v1230
        %v1232 = vrot.slane %v1216, %v1231
        %v1234 = vunpack.c.l.s4 1966171168
        %v1235 = vunpack.c.0.s8 %v1234
        %v1236 = vlaneseq
        %v1237 = vshrl.u32 %v1236, 7
        %v1238 = vsub.s32 %v1235, %v1237
        %v1239 = vrot.slane %v1223, %v1238
        %v1241 = vunpack.c.l.s4 1966171168
        %v1242 = vunpack.c.0.s8 %v1241
        %v1243 = vlaneseq
        %v1244 = vshrl.u32 %v1243, 7
        %v1245 = vsub.s32 %v1242, %v1244
        %v1246 = vrot.slane %v1224, %v1245
        %v1248 = vunpack.c.l.s4 1966171168
        %v1249 = vunpack.c.0.s8 %v1248
        %v1250 = vlaneseq
        %v1251 = vshrl.u32 %v1250, 7
        %v1252 = vsub.s32 %v1249, %v1251
        %v1253 = vrot.slane %v1225, %v1252
        %v1254 = vcombine.high %v1232, %v1232
        %v1255 = vcombine.high %v1239, %v1239
        %v1256 = vcombine.high %v1246, %v1246
        %v1257 = vcombine.high %v1253, %v1253
        %v1258 = vlaneseq
        %v1259 = vshrl.u32 %v1258, 7
        %v1260 = vsub.s32 0, %v1259
        %v1261 = vrot.slane %v1232, %v1260
        %v1262 = vlaneseq
        %v1263 = vshrl.u32 %v1262, 7
        %v1264 = vsub.s32 0, %v1263
        %v1265 = vrot.slane %v1246, %v1264
        %v1266 = vlaneseq
        %v1267 = vshrl.u32 %v1266, 7
        %v1268 = vsub.s32 0, %v1267
        %v1269 = vrot.slane %v1254, %v1268
        %v1270 = vlaneseq
        %v1271 = vshrl.u32 %v1270, 7
        %v1272 = vsub.s32 0, %v1271
        %v1273 = vrot.slane %v1256, %v1272
        %v1274 = vlaneseq
        %v1275 = vshrl.u32 %v1274, 7
        %v1276 = vsub.s32 0, %v1275
        %v1277 = vrot.slane %v1239, %v1276
        %v1278 = vlaneseq
        %v1279 = vshrl.u32 %v1278, 7
        %v1280 = vsub.s32 0, %v1279
        %v1281 = vrot.slane %v1253, %v1280
        %v1282 = vlaneseq
        %v1283 = vshrl.u32 %v1282, 7
        %v1284 = vsub.s32 0, %v1283
        %v1285 = vrot.slane %v1255, %v1284
        %v1286 = vlaneseq
        %v1287 = vshrl.u32 %v1286, 7
        %v1288 = vsub.s32 0, %v1287
        %v1289 = vrot.slane %v1257, %v1288
        %v1298 = vmul.f32 %v1261, %v545
        %v1299 = vmul.f32 %v1265, %v552
        %v1300 = vmul.f32 %v1269, %v559
        %v1301 = vmul.f32 %v1273, %v566
        %v1302 = vmul.f32 %v1277, %v573
        %v1303 = vmul.f32 %v1281, %v580
        %v1304 = vmul.f32 %v1285, %v587
        %v1305 = vmul.f32 %v1289, %v594
        %s1306 = scalar_lea.vmem %s425, 40 [#allocation6]
        %v1307 = vld [vmem:[%s1306] sm:$0xff]
        %v1309 = vcombine.high %v1307, %v1307
        %v1311 = vunpack.c.l.s4 1966171168
        %v1312 = vunpack.c.0.s8 %v1311
        %v1313 = vlaneseq
        %v1314 = vshrl.u32 %v1313, 7
        %v1315 = vsub.s32 %v1312, %v1314
        %v1316 = vrot.slane %v1307, %v1315
        %v1318 = vunpack.c.l.s4 1966171168
        %v1319 = vunpack.c.0.s8 %v1318
        %v1320 = vlaneseq
        %v1321 = vshrl.u32 %v1320, 7
        %v1322 = vsub.s32 %v1319, %v1321
        %v1323 = vrot.slane %v1309, %v1322
        %v1324 = vcombine.high %v1316, %v1316
        %v1325 = vcombine.high %v1323, %v1323
        %v1327 = vunpack.c.l.s4 1966171168
        %v1328 = vunpack.c.0.s8 %v1327
        %v1329 = vlaneseq
        %v1330 = vshrl.u32 %v1329, 7
        %v1331 = vsub.s32 %v1328, %v1330
        %v1332 = vrot.slane %v1316, %v1331
        %v1334 = vunpack.c.l.s4 1966171168
        %v1335 = vunpack.c.0.s8 %v1334
        %v1336 = vlaneseq
        %v1337 = vshrl.u32 %v1336, 7
        %v1338 = vsub.s32 %v1335, %v1337
        %v1339 = vrot.slane %v1323, %v1338
        %v1341 = vunpack.c.l.s4 1966171168
        %v1342 = vunpack.c.0.s8 %v1341
        %v1343 = vlaneseq
        %v1344 = vshrl.u32 %v1343, 7
        %v1345 = vsub.s32 %v1342, %v1344
        %v1346 = vrot.slane %v1324, %v1345
        %v1348 = vunpack.c.l.s4 1966171168
        %v1349 = vunpack.c.0.s8 %v1348
        %v1350 = vlaneseq
        %v1351 = vshrl.u32 %v1350, 7
        %v1352 = vsub.s32 %v1349, %v1351
        %v1353 = vrot.slane %v1325, %v1352
        %v1354 = vcombine.high %v1332, %v1332
        %v1355 = vcombine.high %v1339, %v1339
        %v1356 = vcombine.high %v1346, %v1346
        %v1357 = vcombine.high %v1353, %v1353
        %v1358 = vlaneseq
        %v1359 = vshrl.u32 %v1358, 7
        %v1360 = vsub.s32 0, %v1359
        %v1361 = vrot.slane %v1332, %v1360
        %v1362 = vlaneseq
        %v1363 = vshrl.u32 %v1362, 7
        %v1364 = vsub.s32 0, %v1363
        %v1365 = vrot.slane %v1346, %v1364
        %v1366 = vlaneseq
        %v1367 = vshrl.u32 %v1366, 7
        %v1368 = vsub.s32 0, %v1367
        %v1369 = vrot.slane %v1354, %v1368
        %v1370 = vlaneseq
        %v1371 = vshrl.u32 %v1370, 7
        %v1372 = vsub.s32 0, %v1371
        %v1373 = vrot.slane %v1356, %v1372
        %v1374 = vlaneseq
        %v1375 = vshrl.u32 %v1374, 7
        %v1376 = vsub.s32 0, %v1375
        %v1377 = vrot.slane %v1339, %v1376
        %v1378 = vlaneseq
        %v1379 = vshrl.u32 %v1378, 7
        %v1380 = vsub.s32 0, %v1379
        %v1381 = vrot.slane %v1353, %v1380
        %v1382 = vlaneseq
        %v1383 = vshrl.u32 %v1382, 7
        %v1384 = vsub.s32 0, %v1383
        %v1385 = vrot.slane %v1355, %v1384
        %v1386 = vlaneseq
        %v1387 = vshrl.u32 %v1386, 7
        %v1388 = vsub.s32 0, %v1387
        %v1389 = vrot.slane %v1357, %v1388
        %v1398 = vmul.f32 %v1361, %v703
        %v1399 = vmul.f32 %v1365, %v710
        %v1400 = vmul.f32 %v1369, %v717
        %v1401 = vmul.f32 %v1373, %v724
        %v1402 = vmul.f32 %v1377, %v731
        %v1403 = vmul.f32 %v1381, %v738
        %v1404 = vmul.f32 %v1385, %v745
        %v1405 = vmul.f32 %v1389, %v752
        %v1406 = vadd.f32 %v1298, %v1398
        %v1407 = vadd.f32 %v1299, %v1399
        %v1408 = vadd.f32 %v1300, %v1400
        %v1409 = vadd.f32 %v1301, %v1401
        %v1410 = vadd.f32 %v1302, %v1402
        %v1411 = vadd.f32 %v1303, %v1403
        %v1412 = vadd.f32 %v1304, %v1404
        %v1413 = vadd.f32 %v1305, %v1405
        %s1414 = scalar_lea.vmem %s425, 48 [#allocation6]
        %v1415 = vld [vmem:[%s1414] sm:$0xff]
        %v1417 = vcombine.high %v1415, %v1415
        %v1419 = vunpack.c.l.s4 1966171168
        %v1420 = vunpack.c.0.s8 %v1419
        %v1421 = vlaneseq
        %v1422 = vshrl.u32 %v1421, 7
        %v1423 = vsub.s32 %v1420, %v1422
        %v1424 = vrot.slane %v1415, %v1423
        %v1426 = vunpack.c.l.s4 1966171168
        %v1427 = vunpack.c.0.s8 %v1426
        %v1428 = vlaneseq
        %v1429 = vshrl.u32 %v1428, 7
        %v1430 = vsub.s32 %v1427, %v1429
        %v1431 = vrot.slane %v1417, %v1430
        %v1432 = vcombine.high %v1424, %v1424
        %v1433 = vcombine.high %v1431, %v1431
        %v1435 = vunpack.c.l.s4 1966171168
        %v1436 = vunpack.c.0.s8 %v1435
        %v1437 = vlaneseq
        %v1438 = vshrl.u32 %v1437, 7
        %v1439 = vsub.s32 %v1436, %v1438
        %v1440 = vrot.slane %v1424, %v1439
        %v1442 = vunpack.c.l.s4 1966171168
        %v1443 = vunpack.c.0.s8 %v1442
        %v1444 = vlaneseq
        %v1445 = vshrl.u32 %v1444, 7
        %v1446 = vsub.s32 %v1443, %v1445
        %v1447 = vrot.slane %v1431, %v1446
        %v1449 = vunpack.c.l.s4 1966171168
        %v1450 = vunpack.c.0.s8 %v1449
        %v1451 = vlaneseq
        %v1452 = vshrl.u32 %v1451, 7
        %v1453 = vsub.s32 %v1450, %v1452
        %v1454 = vrot.slane %v1432, %v1453
        %v1456 = vunpack.c.l.s4 1966171168
        %v1457 = vunpack.c.0.s8 %v1456
        %v1458 = vlaneseq
        %v1459 = vshrl.u32 %v1458, 7
        %v1460 = vsub.s32 %v1457, %v1459
        %v1461 = vrot.slane %v1433, %v1460
        %v1462 = vcombine.high %v1440, %v1440
        %v1463 = vcombine.high %v1447, %v1447
        %v1464 = vcombine.high %v1454, %v1454
        %v1465 = vcombine.high %v1461, %v1461
        %v1466 = vlaneseq
        %v1467 = vshrl.u32 %v1466, 7
        %v1468 = vsub.s32 0, %v1467
        %v1469 = vrot.slane %v1440, %v1468
        %v1470 = vlaneseq
        %v1471 = vshrl.u32 %v1470, 7
        %v1472 = vsub.s32 0, %v1471
        %v1473 = vrot.slane %v1454, %v1472
        %v1474 = vlaneseq
        %v1475 = vshrl.u32 %v1474, 7
        %v1476 = vsub.s32 0, %v1475
        %v1477 = vrot.slane %v1462, %v1476
        %v1478 = vlaneseq
        %v1479 = vshrl.u32 %v1478, 7
        %v1480 = vsub.s32 0, %v1479
        %v1481 = vrot.slane %v1464, %v1480
        %v1482 = vlaneseq
        %v1483 = vshrl.u32 %v1482, 7
        %v1484 = vsub.s32 0, %v1483
        %v1485 = vrot.slane %v1447, %v1484
        %v1486 = vlaneseq
        %v1487 = vshrl.u32 %v1486, 7
        %v1488 = vsub.s32 0, %v1487
        %v1489 = vrot.slane %v1461, %v1488
        %v1490 = vlaneseq
        %v1491 = vshrl.u32 %v1490, 7
        %v1492 = vsub.s32 0, %v1491
        %v1493 = vrot.slane %v1463, %v1492
        %v1494 = vlaneseq
        %v1495 = vshrl.u32 %v1494, 7
        %v1496 = vsub.s32 0, %v1495
        %v1497 = vrot.slane %v1465, %v1496
        %v1506 = vmul.f32 %v1469, %v869
        %v1507 = vmul.f32 %v1473, %v876
        %v1508 = vmul.f32 %v1477, %v883
        %v1509 = vmul.f32 %v1481, %v890
        %v1510 = vmul.f32 %v1485, %v897
        %v1511 = vmul.f32 %v1489, %v904
        %v1512 = vmul.f32 %v1493, %v911
        %v1513 = vmul.f32 %v1497, %v918
        %v1514 = vadd.f32 %v1406, %v1506
        %v1515 = vadd.f32 %v1407, %v1507
        %v1516 = vadd.f32 %v1408, %v1508
        %v1517 = vadd.f32 %v1409, %v1509
        %v1518 = vadd.f32 %v1410, %v1510
        %v1519 = vadd.f32 %v1411, %v1511
        %v1520 = vadd.f32 %v1412, %v1512
        %v1521 = vadd.f32 %v1413, %v1513
        %s1522 = scalar_lea.vmem %s425, 56 [#allocation6]
        %v1523 = vld [vmem:[%s1522] sm:$0xff]
        %v1525 = vcombine.high %v1523, %v1523
        %v1527 = vunpack.c.l.s4 1966171168
        %v1528 = vunpack.c.0.s8 %v1527
        %v1529 = vlaneseq
        %v1530 = vshrl.u32 %v1529, 7
        %v1531 = vsub.s32 %v1528, %v1530
        %v1532 = vrot.slane %v1523, %v1531
        %v1534 = vunpack.c.l.s4 1966171168
        %v1535 = vunpack.c.0.s8 %v1534
        %v1536 = vlaneseq
        %v1537 = vshrl.u32 %v1536, 7
        %v1538 = vsub.s32 %v1535, %v1537
        %v1539 = vrot.slane %v1525, %v1538
        %v1540 = vcombine.high %v1532, %v1532
        %v1541 = vcombine.high %v1539, %v1539
        %v1543 = vunpack.c.l.s4 1966171168
        %v1544 = vunpack.c.0.s8 %v1543
        %v1545 = vlaneseq
        %v1546 = vshrl.u32 %v1545, 7
        %v1547 = vsub.s32 %v1544, %v1546
        %v1548 = vrot.slane %v1532, %v1547
        %v1550 = vunpack.c.l.s4 1966171168
        %v1551 = vunpack.c.0.s8 %v1550
        %v1552 = vlaneseq
        %v1553 = vshrl.u32 %v1552, 7
        %v1554 = vsub.s32 %v1551, %v1553
        %v1555 = vrot.slane %v1539, %v1554
        %v1557 = vunpack.c.l.s4 1966171168
        %v1558 = vunpack.c.0.s8 %v1557
        %v1559 = vlaneseq
        %v1560 = vshrl.u32 %v1559, 7
        %v1561 = vsub.s32 %v1558, %v1560
        %v1562 = vrot.slane %v1540, %v1561
        %v1564 = vunpack.c.l.s4 1966171168
        %v1565 = vunpack.c.0.s8 %v1564
        %v1566 = vlaneseq
        %v1567 = vshrl.u32 %v1566, 7
        %v1568 = vsub.s32 %v1565, %v1567
        %v1569 = vrot.slane %v1541, %v1568
        %v1570 = vcombine.high %v1548, %v1548
        %v1571 = vcombine.high %v1555, %v1555
        %v1572 = vcombine.high %v1562, %v1562
        %v1573 = vcombine.high %v1569, %v1569
        %v1574 = vlaneseq
        %v1575 = vshrl.u32 %v1574, 7
        %v1576 = vsub.s32 0, %v1575
        %v1577 = vrot.slane %v1548, %v1576
        %v1578 = vlaneseq
        %v1579 = vshrl.u32 %v1578, 7
        %v1580 = vsub.s32 0, %v1579
        %v1581 = vrot.slane %v1562, %v1580
        %v1582 = vlaneseq
        %v1583 = vshrl.u32 %v1582, 7
        %v1584 = vsub.s32 0, %v1583
        %v1585 = vrot.slane %v1570, %v1584
        %v1586 = vlaneseq
        %v1587 = vshrl.u32 %v1586, 7
        %v1588 = vsub.s32 0, %v1587
        %v1589 = vrot.slane %v1572, %v1588
        %v1590 = vlaneseq
        %v1591 = vshrl.u32 %v1590, 7
        %v1592 = vsub.s32 0, %v1591
        %v1593 = vrot.slane %v1555, %v1592
        %v1594 = vlaneseq
        %v1595 = vshrl.u32 %v1594, 7
        %v1596 = vsub.s32 0, %v1595
        %v1597 = vrot.slane %v1569, %v1596
        %v1598 = vlaneseq
        %v1599 = vshrl.u32 %v1598, 7
        %v1600 = vsub.s32 0, %v1599
        %v1601 = vrot.slane %v1571, %v1600
        %v1602 = vlaneseq
        %v1603 = vshrl.u32 %v1602, 7
        %v1604 = vsub.s32 0, %v1603
        %v1605 = vrot.slane %v1573, %v1604
        %v1614 = vmul.f32 %v1577, %v1035
        %v1615 = vmul.f32 %v1581, %v1042
        %v1616 = vmul.f32 %v1585, %v1049
        %v1617 = vmul.f32 %v1589, %v1056
        %v1618 = vmul.f32 %v1593, %v1063
        %v1619 = vmul.f32 %v1597, %v1070
        %v1620 = vmul.f32 %v1601, %v1077
        %v1621 = vmul.f32 %v1605, %v1084
        %v1622 = vadd.f32 %v1514, %v1614
        %v1623 = vadd.f32 %v1515, %v1615
        %v1624 = vadd.f32 %v1516, %v1616
        %v1625 = vadd.f32 %v1517, %v1617
        %v1626 = vadd.f32 %v1518, %v1618
        %v1627 = vadd.f32 %v1519, %v1619
        %v1628 = vadd.f32 %v1520, %v1620
        %v1629 = vadd.f32 %v1521, %v1621
        %s1630 = scalar_lea.vmem [#allocation8], 8
        %v1631 = vld [vmem:[%s1630] sm:$0xff]
        %v1632 = vlaneseq
        %v1633 = vshrl.u32 %v1632, 7
        %v1634 = vsub.s32 0, %v1633
        %v1635 = vrot.slane %v1631, %v1634
        %1637 = vbcast.lane.b32.xlu0 %v1635, 256
        %v1638 = vpop.permute.xlu0 %1637
        %v1639 = vlaneseq
        %v1640 = vshrl.u32 %v1639, 7
        %v1641 = vsub.s32 1, %v1640
        %v1642 = vrot.slane %v1631, %v1641
        %1644 = vbcast.lane.b32.xlu0 %v1642, 256
        %v1645 = vpop.permute.xlu0 %1644
        %v1646 = vlaneseq
        %v1647 = vshrl.u32 %v1646, 7
        %v1648 = vsub.s32 2, %v1647
        %v1649 = vrot.slane %v1631, %v1648
        %1651 = vbcast.lane.b32.xlu0 %v1649, 256
        %v1652 = vpop.permute.xlu0 %1651
        %v1653 = vlaneseq
        %v1654 = vshrl.u32 %v1653, 7
        %v1655 = vsub.s32 3, %v1654
        %v1656 = vrot.slane %v1631, %v1655
        %1658 = vbcast.lane.b32.xlu0 %v1656, 256
        %v1659 = vpop.permute.xlu0 %1658
        %v1660 = vlaneseq
        %v1661 = vshrl.u32 %v1660, 7
        %v1662 = vsub.s32 4, %v1661
        %v1663 = vrot.slane %v1631, %v1662
        %1665 = vbcast.lane.b32.xlu0 %v1663, 256
        %v1666 = vpop.permute.xlu0 %1665
        %v1667 = vlaneseq
        %v1668 = vshrl.u32 %v1667, 7
        %v1669 = vsub.s32 5, %v1668
        %v1670 = vrot.slane %v1631, %v1669
        %1672 = vbcast.lane.b32.xlu0 %v1670, 256
        %v1673 = vpop.permute.xlu0 %1672
        %v1674 = vlaneseq
        %v1675 = vshrl.u32 %v1674, 7
        %v1676 = vsub.s32 6, %v1675
        %v1677 = vrot.slane %v1631, %v1676
        %1679 = vbcast.lane.b32.xlu0 %v1677, 256
        %v1680 = vpop.permute.xlu0 %1679
        %v1681 = vlaneseq
        %v1682 = vshrl.u32 %v1681, 7
        %v1683 = vsub.s32 7, %v1682
        %v1684 = vrot.slane %v1631, %v1683
        %1686 = vbcast.lane.b32.xlu0 %v1684, 256
        %v1687 = vpop.permute.xlu0 %1686
        %v1688 = vadd.f32 %v1622, %v1638
        %v1689 = vadd.f32 %v1623, %v1645
        %v1690 = vadd.f32 %v1624, %v1652
        %v1691 = vadd.f32 %v1625, %v1659
        %v1692 = vadd.f32 %v1626, %v1666
        %v1693 = vadd.f32 %v1627, %v1673
        %v1694 = vadd.f32 %v1628, %v1680
        %v1695 = vadd.f32 %v1629, %v1687
        %v1696 = vld [vmem:[#allocation9] sm:$0xff]
        %v1697 = vlaneseq
        %v1698 = vshrl.u32 %v1697, 7
        %v1699 = vsub.s32 0, %v1698
        %v1700 = vrot.slane %v1696, %v1699
        %1702 = vbcast.lane.b32.xlu0 %v1700, 256
        %v1703 = vpop.permute.xlu0 %1702
        %v1704 = vlaneseq
        %v1705 = vshrl.u32 %v1704, 7
        %v1706 = vsub.s32 1, %v1705
        %v1707 = vrot.slane %v1696, %v1706
        %1709 = vbcast.lane.b32.xlu0 %v1707, 256
        %v1710 = vpop.permute.xlu0 %1709
        %v1711 = vlaneseq
        %v1712 = vshrl.u32 %v1711, 7
        %v1713 = vsub.s32 2, %v1712
        %v1714 = vrot.slane %v1696, %v1713
        %1716 = vbcast.lane.b32.xlu0 %v1714, 256
        %v1717 = vpop.permute.xlu0 %1716
        %v1718 = vlaneseq
        %v1719 = vshrl.u32 %v1718, 7
        %v1720 = vsub.s32 3, %v1719
        %v1721 = vrot.slane %v1696, %v1720
        %1723 = vbcast.lane.b32.xlu0 %v1721, 256
        %v1724 = vpop.permute.xlu0 %1723
        %v1725 = vlaneseq
        %v1726 = vshrl.u32 %v1725, 7
        %v1727 = vsub.s32 4, %v1726
        %v1728 = vrot.slane %v1696, %v1727
        %1730 = vbcast.lane.b32.xlu0 %v1728, 256
        %v1731 = vpop.permute.xlu0 %1730
        %v1732 = vlaneseq
        %v1733 = vshrl.u32 %v1732, 7
        %v1734 = vsub.s32 5, %v1733
        %v1735 = vrot.slane %v1696, %v1734
        %1737 = vbcast.lane.b32.xlu0 %v1735, 256
        %v1738 = vpop.permute.xlu0 %1737
        %v1739 = vlaneseq
        %v1740 = vshrl.u32 %v1739, 7
        %v1741 = vsub.s32 6, %v1740
        %v1742 = vrot.slane %v1696, %v1741
        %1744 = vbcast.lane.b32.xlu0 %v1742, 256
        %v1745 = vpop.permute.xlu0 %1744
        %v1746 = vlaneseq
        %v1747 = vshrl.u32 %v1746, 7
        %v1748 = vsub.s32 7, %v1747
        %v1749 = vrot.slane %v1696, %v1748
        %1751 = vbcast.lane.b32.xlu0 %v1749, 256
        %v1752 = vpop.permute.xlu0 %1751
        %v1753 = vld [vmem:[#allocation11] sm:$0xff]
        %vm1754 = vcmask 64512
        %v1756 = vsel %vm1754, %v1753, 0
        %1758 = vmatprep.subr.mxu0 0.0
        %1759 = vmatpush1.msra.mxu0 %v486
        %1760 = vmatprep.subr.mxu0 0.0
        %1761 = vmatpush1.msra.mxu0 0.0
        %1762 = vmatprep.subr.mxu0 0.0
        %1763 = vmatpush1.msra.mxu0 0.0
        %1764 = vmatprep.subr.mxu0 0.0
        %1765 = vmatpush1.msra.mxu0 0.0
        %1766 = vmatprep.subr.mxu0 0.0
        %1767 = vmatpush1.msra.mxu0 0.0
        %1768 = vmatprep.subr.mxu0 0.0
        %1769 = vmatpush1.msra.mxu0 0.0
        %1770 = vmatprep.subr.mxu0 0.0
        %1771 = vmatpush1.msra.mxu0 0.0
        %1772 = vmatprep.subr.mxu0 0.0
        %1773 = vmatpush1.msra.mxu0 0.0
        %1774 = vmatprep.subr.mxu0 0.0
        %1775 = vmatpush1.msra.mxu0 0.0
        %1776 = vmatprep.subr.mxu0 0.0
        %1777 = vmatpush1.msra.mxu0 0.0
        %1778 = vmatprep.subr.mxu0 0.0
        %1779 = vmatpush1.msra.mxu0 0.0
        %1780 = vmatprep.subr.mxu0 0.0
        %1781 = vmatpush1.msra.mxu0 0.0
        %1782 = vmatprep.subr.mxu0 0.0
        %1783 = vmatpush1.msra.mxu0 0.0
        %1784 = vmatprep.subr.mxu0 0.0
        %1785 = vmatpush1.msra.mxu0 0.0
        %1786 = vmatprep.subr.mxu0 0.0
        %1787 = vmatpush1.msra.mxu0 0.0
        %1788 = vmatprep.subr.mxu0 0.0
        %1789 = vmatpush1.msra.mxu0 0.0
        %1790 = vmatprep.subr.mxu0 0.0
        %1791 = vmatpush1.msra.mxu0 0.0
        %1792 = vmatprep.subr.mxu0 0.0
        %1793 = vmatpush1.msra.mxu0 0.0
        %1794 = vmatprep.subr.mxu0 0.0
        %1795 = vmatpush1.msra.mxu0 0.0
        %1796 = vmatprep.subr.mxu0 0.0
        %1797 = vmatpush1.msra.mxu0 0.0
        %1798 = vmatprep.subr.mxu0 0.0
        %1799 = vmatpush1.msra.mxu0 0.0
        %1800 = vmatprep.subr.mxu0 0.0
        %1801 = vmatpush1.msra.mxu0 0.0
        %1802 = vmatprep.subr.mxu0 0.0
        %1803 = vmatpush1.msra.mxu0 0.0
        %1804 = vmatprep.subr.mxu0 0.0
        %1805 = vmatpush1.msra.mxu0 0.0
        %1806 = vmatprep.subr.mxu0 0.0
        %1807 = vmatpush1.msra.mxu0 0.0
        %1808 = vmatprep.subr.mxu0 0.0
        %1809 = vmatpush1.msra.mxu0 0.0
        %1810 = vmatprep.subr.mxu0 0.0
        %1811 = vmatpush1.msra.mxu0 0.0
        %1812 = vmatprep.subr.mxu0 0.0
        %1813 = vmatpush1.msra.mxu0 0.0
        %1814 = vmatprep.subr.mxu0 0.0
        %1815 = vmatpush1.msra.mxu0 0.0
        %1816 = vmatprep.subr.mxu0 0.0
        %1817 = vmatpush1.msra.mxu0 0.0
        %1818 = vmatprep.subr.mxu0 0.0
        %1819 = vmatpush1.msra.mxu0 0.0
        %1820 = vmatprep.subr.mxu0 0.0
        %1821 = vmatpush1.msra.mxu0 0.0
        %1822 = vmatprep.mubr.f32.mxu0 0.0
        %1823 = vmatmul.mubr.f32.gmra.mrb[0].mxu0 %v1756
        %v1824 = vpop.f32.mrb[0].mxu0
        %v1825 = vadd.f32 0.0, %v1824
        %v1826 = vpop.f32.mrb[0].mxu0
        %1827 = vdwg.mxu0
        %v1829 = vcombine.high %v486, %v486
        %v1831 = vunpack.c.l.s4 1966171168
        %v1832 = vunpack.c.0.s8 %v1831
        %v1833 = vlaneseq
        %v1834 = vshrl.u32 %v1833, 7
        %v1835 = vsub.s32 %v1832, %v1834
        %v1836 = vrot.slane %v486, %v1835
        %v1838 = vunpack.c.l.s4 1966171168
        %v1839 = vunpack.c.0.s8 %v1838
        %v1840 = vlaneseq
        %v1841 = vshrl.u32 %v1840, 7
        %v1842 = vsub.s32 %v1839, %v1841
        %v1843 = vrot.slane %v1829, %v1842
        %v1844 = vcombine.high %v1836, %v1836
        %v1845 = vcombine.high %v1843, %v1843
        %v1847 = vunpack.c.l.s4 1966171168
        %v1848 = vunpack.c.0.s8 %v1847
        %v1849 = vlaneseq
        %v1850 = vshrl.u32 %v1849, 7
        %v1851 = vsub.s32 %v1848, %v1850
        %v1852 = vrot.slane %v1836, %v1851
        %v1854 = vunpack.c.l.s4 1966171168
        %v1855 = vunpack.c.0.s8 %v1854
        %v1856 = vlaneseq
        %v1857 = vshrl.u32 %v1856, 7
        %v1858 = vsub.s32 %v1855, %v1857
        %v1859 = vrot.slane %v1843, %v1858
        %v1861 = vunpack.c.l.s4 1966171168
        %v1862 = vunpack.c.0.s8 %v1861
        %v1863 = vlaneseq
        %v1864 = vshrl.u32 %v1863, 7
        %v1865 = vsub.s32 %v1862, %v1864
        %v1866 = vrot.slane %v1844, %v1865
        %v1868 = vunpack.c.l.s4 1966171168
        %v1869 = vunpack.c.0.s8 %v1868
        %v1870 = vlaneseq
        %v1871 = vshrl.u32 %v1870, 7
        %v1872 = vsub.s32 %v1869, %v1871
        %v1873 = vrot.slane %v1845, %v1872
        %v1874 = vcombine.high %v1852, %v1852
        %v1875 = vcombine.high %v1859, %v1859
        %v1876 = vcombine.high %v1866, %v1866
        %v1877 = vcombine.high %v1873, %v1873
        %v1886 = vstv %s481
        %v1887 = vmul.f32 %v1852, %v1886
        %v1888 = vmul.f32 %v1866, %v1886
        %v1889 = vmul.f32 %v1874, %v1886
        %v1890 = vmul.f32 %v1876, %v1886
        %v1891 = vmul.f32 %v1859, %v1886
        %v1892 = vmul.f32 %v1873, %v1886
        %v1893 = vmul.f32 %v1875, %v1886
        %v1894 = vmul.f32 %v1877, %v1886
        %v1903 = vlaneseq
        %v1904 = vshrl.u32 %v1903, 7
        %v1905 = vsub.s32 0, %v1904
        %v1906 = vrot.slane %v1887, %v1905
        %v1907 = vlaneseq
        %v1908 = vshrl.u32 %v1907, 7
        %v1909 = vsub.s32 0, %v1908
        %v1910 = vrot.slane %v1888, %v1909
        %v1911 = vlaneseq
        %v1912 = vshrl.u32 %v1911, 7
        %v1913 = vsub.s32 0, %v1912
        %v1914 = vrot.slane %v1889, %v1913
        %v1915 = vlaneseq
        %v1916 = vshrl.u32 %v1915, 7
        %v1917 = vsub.s32 0, %v1916
        %v1918 = vrot.slane %v1890, %v1917
        %v1919 = vlaneseq
        %v1920 = vshrl.u32 %v1919, 7
        %v1921 = vsub.s32 0, %v1920
        %v1922 = vrot.slane %v1891, %v1921
        %v1923 = vlaneseq
        %v1924 = vshrl.u32 %v1923, 7
        %v1925 = vsub.s32 0, %v1924
        %v1926 = vrot.slane %v1892, %v1925
        %v1927 = vlaneseq
        %v1928 = vshrl.u32 %v1927, 7
        %v1929 = vsub.s32 0, %v1928
        %v1930 = vrot.slane %v1893, %v1929
        %v1931 = vlaneseq
        %v1932 = vshrl.u32 %v1931, 7
        %v1933 = vsub.s32 0, %v1932
        %v1934 = vrot.slane %v1894, %v1933
        %v1943 = vmul.f32 %v1703, %v1906
        %v1944 = vmul.f32 %v1710, %v1910
        %v1945 = vmul.f32 %v1717, %v1914
        %v1946 = vmul.f32 %v1724, %v1918
        %v1947 = vmul.f32 %v1731, %v1922
        %v1948 = vmul.f32 %v1738, %v1926
        %v1949 = vmul.f32 %v1745, %v1930
        %v1950 = vmul.f32 %v1752, %v1934
        %v1951 = vadd.f32 %v1943, %v1944
        %v1952 = vadd.f32 %v1951, %v1945
        %v1953 = vadd.f32 %v1952, %v1946
        %v1954 = vadd.f32 %v1953, %v1947
        %v1955 = vadd.f32 %v1954, %v1948
        %v1956 = vadd.f32 %v1955, %v1949
        %v1957 = vadd.f32 %v1956, %v1950
        %v1958 = vsub.f32 %v1957, %v1825
        %vm1959 = vcmask 1040384
        %v1960 = vsel %vm1959, %v1887, 0.0
        %v1961 = vsel %vm1959, %v1888, 0.0
        %v1962 = vadd.f32 %v1960, %v1961
        %v1963 = vsel %vm1959, %v1889, 0.0
        %v1964 = vadd.f32 %v1962, %v1963
        %v1965 = vsel %vm1959, %v1890, 0.0
        %v1966 = vadd.f32 %v1964, %v1965
        %v1967 = vsel %vm1959, %v1891, 0.0
        %v1968 = vadd.f32 %v1966, %v1967
        %v1969 = vsel %vm1959, %v1892, 0.0
        %v1970 = vadd.f32 %v1968, %v1969
        %v1971 = vsel %vm1959, %v1893, 0.0
        %v1972 = vadd.f32 %v1970, %v1971
        %v1973 = vsel %vm1959, %v1894, 0.0
        %v1974 = vadd.f32 %v1972, %v1973
        %v1975 = vadd.f32 %v1974, 1e-05
        %v1976 = vrcp.pop %v1975
        %v1977 = vmul.f32 1.0, %v1976
        %v1978 = vld [vmem:[%s7] sm:$0xff]
        %v1979 = vld [vmem:[%s8] sm:$0xff]
        %1981 = vset.pattern.permute.xlu0 0
        %1982 = vperm.xlu0 %1981, %v1979
        %v1983 = vpop.permute.xlu0 %1982
        %v1986 = vsel %vm1754, %v1978, 0
        %1988 = vmatprep.subr.mxu0 0.0
        %1989 = vmatpush1.msra.mxu0 %v1958
        %1990 = vmatprep.subr.mxu0 0.0
        %1991 = vmatpush1.msra.mxu0 0.0
        %1992 = vmatprep.subr.mxu0 0.0
        %1993 = vmatpush1.msra.mxu0 0.0
        %1994 = vmatprep.subr.mxu0 0.0
        %1995 = vmatpush1.msra.mxu0 0.0
        %1996 = vmatprep.subr.mxu0 0.0
        %1997 = vmatpush1.msra.mxu0 0.0
        %1998 = vmatprep.subr.mxu0 0.0
        %1999 = vmatpush1.msra.mxu0 0.0
        %2000 = vmatprep.subr.mxu0 0.0
        %2001 = vmatpush1.msra.mxu0 0.0
        %2002 = vmatprep.subr.mxu0 0.0
        %2003 = vmatpush1.msra.mxu0 0.0
        %2004 = vmatprep.subr.mxu0 0.0
        %2005 = vmatpush1.msra.mxu0 0.0
        %2006 = vmatprep.subr.mxu0 0.0
        %2007 = vmatpush1.msra.mxu0 0.0
        %2008 = vmatprep.subr.mxu0 0.0
        %2009 = vmatpush1.msra.mxu0 0.0
        %2010 = vmatprep.subr.mxu0 0.0
        %2011 = vmatpush1.msra.mxu0 0.0
        %2012 = vmatprep.subr.mxu0 0.0
        %2013 = vmatpush1.msra.mxu0 0.0
        %2014 = vmatprep.subr.mxu0 0.0
        %2015 = vmatpush1.msra.mxu0 0.0
        %2016 = vmatprep.subr.mxu0 0.0
        %2017 = vmatpush1.msra.mxu0 0.0
        %2018 = vmatprep.subr.mxu0 0.0
        %2019 = vmatpush1.msra.mxu0 0.0
        %2020 = vmatprep.subr.mxu0 0.0
        %2021 = vmatpush1.msra.mxu0 0.0
        %2022 = vmatprep.subr.mxu0 0.0
        %2023 = vmatpush1.msra.mxu0 0.0
        %2024 = vmatprep.subr.mxu0 0.0
        %2025 = vmatpush1.msra.mxu0 0.0
        %2026 = vmatprep.subr.mxu0 0.0
        %2027 = vmatpush1.msra.mxu0 0.0
        %2028 = vmatprep.subr.mxu0 0.0
        %2029 = vmatpush1.msra.mxu0 0.0
        %2030 = vmatprep.subr.mxu0 0.0
        %2031 = vmatpush1.msra.mxu0 0.0
        %2032 = vmatprep.subr.mxu0 0.0
        %2033 = vmatpush1.msra.mxu0 0.0
        %2034 = vmatprep.subr.mxu0 0.0
        %2035 = vmatpush1.msra.mxu0 0.0
        %2036 = vmatprep.subr.mxu0 0.0
        %2037 = vmatpush1.msra.mxu0 0.0
        %2038 = vmatprep.subr.mxu0 0.0
        %2039 = vmatpush1.msra.mxu0 0.0
        %2040 = vmatprep.subr.mxu0 0.0
        %2041 = vmatpush1.msra.mxu0 0.0
        %2042 = vmatprep.subr.mxu0 0.0
        %2043 = vmatpush1.msra.mxu0 0.0
        %2044 = vmatprep.subr.mxu0 0.0
        %2045 = vmatpush1.msra.mxu0 0.0
        %2046 = vmatprep.subr.mxu0 0.0
        %2047 = vmatpush1.msra.mxu0 0.0
        %2048 = vmatprep.subr.mxu0 0.0
        %2049 = vmatpush1.msra.mxu0 0.0
        %2050 = vmatprep.subr.mxu0 0.0
        %2051 = vmatpush1.msra.mxu0 0.0
        %2052 = vmatprep.mubr.f32.mxu0 0.0
        %2053 = vmatmul.mubr.f32.gmra.mrb[0].mxu0 %v1986
        %v2054 = vpop.f32.mrb[0].mxu0
        %v2055 = vadd.f32 %v1983, %v2054
        %v2056 = vpop.f32.mrb[0].mxu0
        %2057 = vdwg.mxu0
        %v2058 = vmul.f32 %v2055, 0.5
        %v2059 = vtanh.pop %v2058
        %v2060 = vadd.f32 %v2059, 1.0
        %v2061 = vmul.f32 %v2060, 0.5
        %v2062 = vmul.f32 %v1958, %v2061
        %v2063 = vmul.f32 %v1906, %v1198
        %v2064 = vmul.f32 %v1910, %v1199
        %v2065 = vmul.f32 %v1914, %v1200
        %v2066 = vmul.f32 %v1918, %v1201
        %v2067 = vmul.f32 %v1922, %v1202
        %v2068 = vmul.f32 %v1926, %v1203
        %v2069 = vmul.f32 %v1930, %v1204
        %v2070 = vmul.f32 %v1934, %v1205
        %v2071 = vadd.f32 %v2063, %v2064
        %v2072 = vadd.f32 %v2071, %v2065
        %v2073 = vadd.f32 %v2072, %v2066
        %v2074 = vadd.f32 %v2073, %v2067
        %v2075 = vadd.f32 %v2074, %v2068
        %v2076 = vadd.f32 %v2075, %v2069
        %v2077 = vadd.f32 %v2076, %v2070
        %v2078 = vlaneseq
        %v2079 = vshrl.u32 %v2078, 7
        %v2080 = vsub.s32 0, %v2079
        %v2081 = vrot.slane %v1977, %v2080
        %v2082 = vmul.f32 %v2077, %v2081
        %v2083 = vsub.f32 %v1198, %v2082
        %v2084 = vsub.f32 %v1199, %v2082
        %v2085 = vsub.f32 %v1200, %v2082
        %v2086 = vsub.f32 %v1201, %v2082
        %v2087 = vsub.f32 %v1202, %v2082
        %v2088 = vsub.f32 %v1203, %v2082
        %v2089 = vsub.f32 %v1204, %v2082
        %v2090 = vsub.f32 %v1205, %v2082
        %v2091 = vmul.f32 %v2083, %v2083
        %v2092 = vmul.f32 %v2084, %v2084
        %v2093 = vmul.f32 %v2085, %v2085
        %v2094 = vmul.f32 %v2086, %v2086
        %v2095 = vmul.f32 %v2087, %v2087
        %v2096 = vmul.f32 %v2088, %v2088
        %v2097 = vmul.f32 %v2089, %v2089
        %v2098 = vmul.f32 %v2090, %v2090
        %v2099 = vmul.f32 %v1906, %v2091
        %v2100 = vmul.f32 %v1910, %v2092
        %v2101 = vmul.f32 %v1914, %v2093
        %v2102 = vmul.f32 %v1918, %v2094
        %v2103 = vmul.f32 %v1922, %v2095
        %v2104 = vmul.f32 %v1926, %v2096
        %v2105 = vmul.f32 %v1930, %v2097
        %v2106 = vmul.f32 %v1934, %v2098
        %v2107 = vadd.f32 %v2099, %v2100
        %v2108 = vadd.f32 %v2107, %v2101
        %v2109 = vadd.f32 %v2108, %v2102
        %v2110 = vadd.f32 %v2109, %v2103
        %v2111 = vadd.f32 %v2110, %v2104
        %v2112 = vadd.f32 %v2111, %v2105
        %v2113 = vadd.f32 %v2112, %v2106
        %v2114 = vmul.f32 %v2113, %v2081
        %v2115 = vadd.f32 %v2114, 1e-05
        %v2116 = vrcp.pop %v2115
        %v2117 = vmul.f32 %v2116, 0.5
        %v2118 = vmul.f32 %v2091, %v2117
        %v2119 = vmul.f32 %v2092, %v2117
        %v2120 = vmul.f32 %v2093, %v2117
        %v2121 = vmul.f32 %v2094, %v2117
        %v2122 = vmul.f32 %v2095, %v2117
        %v2123 = vmul.f32 %v2096, %v2117
        %v2124 = vmul.f32 %v2097, %v2117
        %v2125 = vmul.f32 %v2098, %v2117
        %v2126 = vmul.f32 %v1906, %v1688
        %v2127 = vmul.f32 %v1910, %v1689
        %v2128 = vmul.f32 %v1914, %v1690
        %v2129 = vmul.f32 %v1918, %v1691
        %v2130 = vmul.f32 %v1922, %v1692
        %v2131 = vmul.f32 %v1926, %v1693
        %v2132 = vmul.f32 %v1930, %v1694
        %v2133 = vmul.f32 %v1934, %v1695
        %v2134 = vadd.f32 %v2126, %v2127
        %v2135 = vadd.f32 %v2134, %v2128
        %v2136 = vadd.f32 %v2135, %v2129
        %v2137 = vadd.f32 %v2136, %v2130
        %v2138 = vadd.f32 %v2137, %v2131
        %v2139 = vadd.f32 %v2138, %v2132
        %v2140 = vadd.f32 %v2139, %v2133
        %v2141 = vmul.f32 %v2140, %v2081
        %v2142 = vsub.f32 %v1688, %v2141
        %v2143 = vsub.f32 %v1689, %v2141
        %v2144 = vsub.f32 %v1690, %v2141
        %v2145 = vsub.f32 %v1691, %v2141
        %v2146 = vsub.f32 %v1692, %v2141
        %v2147 = vsub.f32 %v1693, %v2141
        %v2148 = vsub.f32 %v1694, %v2141
        %v2149 = vsub.f32 %v1695, %v2141
        %v2150 = vmul.f32 %v2142, %v2142
        %v2151 = vmul.f32 %v2143, %v2143
        %v2152 = vmul.f32 %v2144, %v2144
        %v2153 = vmul.f32 %v2145, %v2145
        %v2154 = vmul.f32 %v2146, %v2146
        %v2155 = vmul.f32 %v2147, %v2147
        %v2156 = vmul.f32 %v2148, %v2148
        %v2157 = vmul.f32 %v2149, %v2149
        %v2158 = vmul.f32 %v1906, %v2150
        %v2159 = vmul.f32 %v1910, %v2151
        %v2160 = vmul.f32 %v1914, %v2152
        %v2161 = vmul.f32 %v1918, %v2153
        %v2162 = vmul.f32 %v1922, %v2154
        %v2163 = vmul.f32 %v1926, %v2155
        %v2164 = vmul.f32 %v1930, %v2156
        %v2165 = vmul.f32 %v1934, %v2157
        %v2166 = vadd.f32 %v2158, %v2159
        %v2167 = vadd.f32 %v2166, %v2160
        %v2168 = vadd.f32 %v2167, %v2161
        %v2169 = vadd.f32 %v2168, %v2162
        %v2170 = vadd.f32 %v2169, %v2163
        %v2171 = vadd.f32 %v2170, %v2164
        %v2172 = vadd.f32 %v2171, %v2165
        %v2173 = vmul.f32 %v2172, %v2081
        %v2174 = vadd.f32 %v2173, 1e-05
        %v2175 = vmul.f32 %v2115, %v2174
        %v2176 = vrcp.pop %v2174
        %v2177 = vmul.f32 %v2176, 0.5
        %v2178 = vmul.f32 %v2150, %v2177
        %v2179 = vmul.f32 %v2151, %v2177
        %v2180 = vmul.f32 %v2152, %v2177
        %v2181 = vmul.f32 %v2153, %v2177
        %v2182 = vmul.f32 %v2154, %v2177
        %v2183 = vmul.f32 %v2155, %v2177
        %v2184 = vmul.f32 %v2156, %v2177
        %v2185 = vmul.f32 %v2157, %v2177
        %v2186 = vadd.f32 %v2118, %v2178
        %v2187 = vadd.f32 %v2119, %v2179
        %v2188 = vadd.f32 %v2120, %v2180
        %v2189 = vadd.f32 %v2121, %v2181
        %v2190 = vadd.f32 %v2122, %v2182
        %v2191 = vadd.f32 %v2123, %v2183
        %v2192 = vadd.f32 %v2124, %v2184
        %v2193 = vadd.f32 %v2125, %v2185
        %v2194 = vlog2.pop %v2175
        %v2195 = vmul.f32 %v2194, 0.6931472
        %v2196 = vmul.f32 %v2195, 0.5
        %v2197 = vmin.f32 %v2062, 0.0
        %v2198 = vand.u32 2147483647, %v2062
        %v2199 = vsub.f32 0.0, %v2198
        %v2200 = vmul.f32 %v2199, 1.442695
        %v2201 = vpow.pop %v2200
        %v2202 = vadd.f32 %v2201, 1.0
        %v2203 = vlog2.pop %v2202
        %v2204 = vmul.f32 %v2203, 0.6931472
        %v2205 = vsub.f32 %v2197, %v2204
        %v2206 = vsub.f32 %v2205, %v2196
        %v2207 = vsub.f32 %v2206, %v2186
        %v2208 = vsub.f32 %v2206, %v2187
        %v2209 = vsub.f32 %v2206, %v2188
        %v2210 = vsub.f32 %v2206, %v2189
        %v2211 = vsub.f32 %v2206, %v2190
        %v2212 = vsub.f32 %v2206, %v2191
        %v2213 = vsub.f32 %v2206, %v2192
        %v2214 = vsub.f32 %v2206, %v2193
        %v2215 = vrot.slane %v2207, 4
        %v2216 = vmax.f32 %v2207, %v2215
        %v2217 = vrot.slane %v2216, 2
        %v2218 = vmax.f32 %v2216, %v2217
        %v2219 = vrot.slane %v2218, 1
        %v2220 = vmax.f32 %v2218, %v2219
        %v2221 = vrot.slane %v2208, 4
        %v2222 = vmax.f32 %v2208, %v2221
        %v2223 = vrot.slane %v2222, 2
        %v2224 = vmax.f32 %v2222, %v2223
        %v2225 = vrot.slane %v2224, 1
        %v2226 = vmax.f32 %v2224, %v2225
        %v2227 = vrot.slane %v2209, 4
        %v2228 = vmax.f32 %v2209, %v2227
        %v2229 = vrot.slane %v2228, 2
        %v2230 = vmax.f32 %v2228, %v2229
        %v2231 = vrot.slane %v2230, 1
        %v2232 = vmax.f32 %v2230, %v2231
        %v2233 = vrot.slane %v2210, 4
        %v2234 = vmax.f32 %v2210, %v2233
        %v2235 = vrot.slane %v2234, 2
        %v2236 = vmax.f32 %v2234, %v2235
        %v2237 = vrot.slane %v2236, 1
        %v2238 = vmax.f32 %v2236, %v2237
        %v2239 = vrot.slane %v2211, 4
        %v2240 = vmax.f32 %v2211, %v2239
        %v2241 = vrot.slane %v2240, 2
        %v2242 = vmax.f32 %v2240, %v2241
        %v2243 = vrot.slane %v2242, 1
        %v2244 = vmax.f32 %v2242, %v2243
        %v2245 = vrot.slane %v2212, 4
        %v2246 = vmax.f32 %v2212, %v2245
        %v2247 = vrot.slane %v2246, 2
        %v2248 = vmax.f32 %v2246, %v2247
        %v2249 = vrot.slane %v2248, 1
        %v2250 = vmax.f32 %v2248, %v2249
        %v2251 = vrot.slane %v2213, 4
        %v2252 = vmax.f32 %v2213, %v2251
        %v2253 = vrot.slane %v2252, 2
        %v2254 = vmax.f32 %v2252, %v2253
        %v2255 = vrot.slane %v2254, 1
        %v2256 = vmax.f32 %v2254, %v2255
        %v2257 = vrot.slane %v2214, 4
        %v2258 = vmax.f32 %v2214, %v2257
        %v2259 = vrot.slane %v2258, 2
        %v2260 = vmax.f32 %v2258, %v2259
        %v2261 = vrot.slane %v2260, 1
        %v2262 = vmax.f32 %v2260, %v2261
        %v2263 = vsub.f32 %v2207, %v2220
        %v2264 = vsub.f32 %v2208, %v2226
        %v2265 = vsub.f32 %v2209, %v2232
        %v2266 = vsub.f32 %v2210, %v2238
        %v2267 = vsub.f32 %v2211, %v2244
        %v2268 = vsub.f32 %v2212, %v2250
        %v2269 = vsub.f32 %v2213, %v2256
        %v2270 = vsub.f32 %v2214, %v2262
        %v2271 = vmul.f32 %v2263, 1.442695
        %v2272 = vpow.pop %v2271
        %v2273 = vmul.f32 %v2264, 1.442695
        %v2274 = vpow.pop %v2273
        %v2275 = vmul.f32 %v2265, 1.442695
        %v2276 = vpow.pop %v2275
        %v2277 = vmul.f32 %v2266, 1.442695
        %v2278 = vpow.pop %v2277
        %v2279 = vmul.f32 %v2267, 1.442695
        %v2280 = vpow.pop %v2279
        %v2281 = vmul.f32 %v2268, 1.442695
        %v2282 = vpow.pop %v2281
        %v2283 = vmul.f32 %v2269, 1.442695
        %v2284 = vpow.pop %v2283
        %v2285 = vmul.f32 %v2270, 1.442695
        %v2286 = vpow.pop %v2285
        %v2287 = vrot.slane %v2272, 4
        %v2288 = vadd.f32 %v2272, %v2287
        %v2289 = vrot.slane %v2288, 2
        %v2290 = vadd.f32 %v2288, %v2289
        %v2291 = vrot.slane %v2290, 1
        %v2292 = vadd.f32 %v2290, %v2291
        %v2293 = vrot.slane %v2274, 4
        %v2294 = vadd.f32 %v2274, %v2293
        %v2295 = vrot.slane %v2294, 2
        %v2296 = vadd.f32 %v2294, %v2295
        %v2297 = vrot.slane %v2296, 1
        %v2298 = vadd.f32 %v2296, %v2297
        %v2299 = vrot.slane %v2276, 4
        %v2300 = vadd.f32 %v2276, %v2299
        %v2301 = vrot.slane %v2300, 2
        %v2302 = vadd.f32 %v2300, %v2301
        %v2303 = vrot.slane %v2302, 1
        %v2304 = vadd.f32 %v2302, %v2303
        %v2305 = vrot.slane %v2278, 4
        %v2306 = vadd.f32 %v2278, %v2305
        %v2307 = vrot.slane %v2306, 2
        %v2308 = vadd.f32 %v2306, %v2307
        %v2309 = vrot.slane %v2308, 1
        %v2310 = vadd.f32 %v2308, %v2309
        %v2311 = vrot.slane %v2280, 4
        %v2312 = vadd.f32 %v2280, %v2311
        %v2313 = vrot.slane %v2312, 2
        %v2314 = vadd.f32 %v2312, %v2313
        %v2315 = vrot.slane %v2314, 1
        %v2316 = vadd.f32 %v2314, %v2315
        %v2317 = vrot.slane %v2282, 4
        %v2318 = vadd.f32 %v2282, %v2317
        %v2319 = vrot.slane %v2318, 2
        %v2320 = vadd.f32 %v2318, %v2319
        %v2321 = vrot.slane %v2320, 1
        %v2322 = vadd.f32 %v2320, %v2321
        %v2323 = vrot.slane %v2284, 4
        %v2324 = vadd.f32 %v2284, %v2323
        %v2325 = vrot.slane %v2324, 2
        %v2326 = vadd.f32 %v2324, %v2325
        %v2327 = vrot.slane %v2326, 1
        %v2328 = vadd.f32 %v2326, %v2327
        %v2329 = vrot.slane %v2286, 4
        %v2330 = vadd.f32 %v2286, %v2329
        %v2331 = vrot.slane %v2330, 2
        %v2332 = vadd.f32 %v2330, %v2331
        %v2333 = vrot.slane %v2332, 1
        %v2334 = vadd.f32 %v2332, %v2333
        %v2335 = vrcp.pop %v2292
        %v2336 = vrcp.pop %v2298
        %v2337 = vrcp.pop %v2304
        %v2338 = vrcp.pop %v2310
        %v2339 = vrcp.pop %v2316
        %v2340 = vrcp.pop %v2322
        %v2341 = vrcp.pop %v2328
        %v2342 = vrcp.pop %v2334
        %vm2351 = vcmask 1041409
        %v2352 = vsel %vm2351, %v2336, %v2335
        %vm2353 = vcmask 1042434
        %v2354 = vsel %vm2353, %v2337, %v2352
        %vm2355 = vcmask 1043459
        %v2356 = vsel %vm2355, %v2338, %v2354
        %vm2357 = vcmask 1044484
        %v2358 = vsel %vm2357, %v2339, %v2356
        %vm2359 = vcmask 1045509
        %v2360 = vsel %vm2359, %v2340, %v2358
        %vm2361 = vcmask 1046534
        %v2362 = vsel %vm2361, %v2341, %v2360
        %vm2363 = vcmask 1047559
        %v2364 = vsel %vm2363, %v2342, %v2362
        %v2366 = vmul.f32 %v486, %v2364
        %v2368 = vcombine.high %v2366, %v2366
        %v2370 = vunpack.c.l.s4 1966171168
        %v2371 = vunpack.c.0.s8 %v2370
        %v2372 = vlaneseq
        %v2373 = vshrl.u32 %v2372, 7
        %v2374 = vsub.s32 %v2371, %v2373
        %v2375 = vrot.slane %v2366, %v2374
        %v2377 = vunpack.c.l.s4 1966171168
        %v2378 = vunpack.c.0.s8 %v2377
        %v2379 = vlaneseq
        %v2380 = vshrl.u32 %v2379, 7
        %v2381 = vsub.s32 %v2378, %v2380
        %v2382 = vrot.slane %v2368, %v2381
        %v2383 = vcombine.high %v2375, %v2375
        %v2384 = vcombine.high %v2382, %v2382
        %v2386 = vunpack.c.l.s4 1966171168
        %v2387 = vunpack.c.0.s8 %v2386
        %v2388 = vlaneseq
        %v2389 = vshrl.u32 %v2388, 7
        %v2390 = vsub.s32 %v2387, %v2389
        %v2391 = vrot.slane %v2375, %v2390
        %v2393 = vunpack.c.l.s4 1966171168
        %v2394 = vunpack.c.0.s8 %v2393
        %v2395 = vlaneseq
        %v2396 = vshrl.u32 %v2395, 7
        %v2397 = vsub.s32 %v2394, %v2396
        %v2398 = vrot.slane %v2382, %v2397
        %v2400 = vunpack.c.l.s4 1966171168
        %v2401 = vunpack.c.0.s8 %v2400
        %v2402 = vlaneseq
        %v2403 = vshrl.u32 %v2402, 7
        %v2404 = vsub.s32 %v2401, %v2403
        %v2405 = vrot.slane %v2383, %v2404
        %v2407 = vunpack.c.l.s4 1966171168
        %v2408 = vunpack.c.0.s8 %v2407
        %v2409 = vlaneseq
        %v2410 = vshrl.u32 %v2409, 7
        %v2411 = vsub.s32 %v2408, %v2410
        %v2412 = vrot.slane %v2384, %v2411
        %v2413 = vcombine.high %v2391, %v2391
        %v2414 = vcombine.high %v2398, %v2398
        %v2415 = vcombine.high %v2405, %v2405
        %v2416 = vcombine.high %v2412, %v2412
        %v2417 = vlaneseq
        %v2418 = vshrl.u32 %v2417, 7
        %v2419 = vsub.s32 0, %v2418
        %v2420 = vrot.slane %v2391, %v2419
        %v2421 = vlaneseq
        %v2422 = vshrl.u32 %v2421, 7
        %v2423 = vsub.s32 0, %v2422
        %v2424 = vrot.slane %v2405, %v2423
        %v2425 = vlaneseq
        %v2426 = vshrl.u32 %v2425, 7
        %v2427 = vsub.s32 0, %v2426
        %v2428 = vrot.slane %v2413, %v2427
        %v2429 = vlaneseq
        %v2430 = vshrl.u32 %v2429, 7
        %v2431 = vsub.s32 0, %v2430
        %v2432 = vrot.slane %v2415, %v2431
        %v2433 = vlaneseq
        %v2434 = vshrl.u32 %v2433, 7
        %v2435 = vsub.s32 0, %v2434
        %v2436 = vrot.slane %v2398, %v2435
        %v2437 = vlaneseq
        %v2438 = vshrl.u32 %v2437, 7
        %v2439 = vsub.s32 0, %v2438
        %v2440 = vrot.slane %v2412, %v2439
        %v2441 = vlaneseq
        %v2442 = vshrl.u32 %v2441, 7
        %v2443 = vsub.s32 0, %v2442
        %v2444 = vrot.slane %v2414, %v2443
        %v2445 = vlaneseq
        %v2446 = vshrl.u32 %v2445, 7
        %v2447 = vsub.s32 0, %v2446
        %v2448 = vrot.slane %v2416, %v2447
        %v2457 = vmul.f32 %v2272, %v2420
        %v2458 = vmul.f32 %v2274, %v2424
        %v2459 = vmul.f32 %v2276, %v2428
        %v2460 = vmul.f32 %v2278, %v2432
        %v2461 = vmul.f32 %v2280, %v2436
        %v2462 = vmul.f32 %v2282, %v2440
        %v2463 = vmul.f32 %v2284, %v2444
        %v2464 = vmul.f32 %v2286, %v2448
        %v2465 = vmul.f32 %v1703, %v2457
        %v2466 = vmul.f32 %v1710, %v2458
        %v2467 = vmul.f32 %v1717, %v2459
        %v2468 = vmul.f32 %v1724, %v2460
        %v2469 = vmul.f32 %v1731, %v2461
        %v2470 = vmul.f32 %v1738, %v2462
        %v2471 = vmul.f32 %v1745, %v2463
        %v2472 = vmul.f32 %v1752, %v2464
        %v2473 = vadd.f32 %v2465, %v2466
        %v2474 = vadd.f32 %v2473, %v2467
        %v2475 = vadd.f32 %v2474, %v2468
        %v2476 = vadd.f32 %v2475, %v2469
        %v2477 = vadd.f32 %v2476, %v2470
        %v2478 = vadd.f32 %v2477, %v2471
        %v2479 = vadd.f32 %v2478, %v2472
        %v2480 = vsub.f32 %v2479, %v1825
        %v2481 = vadd.f32 %v2457, %v2458
        %v2482 = vadd.f32 %v2481, %v2459
        %v2483 = vadd.f32 %v2482, %v2460
        %v2484 = vadd.f32 %v2483, %v2461
        %v2485 = vadd.f32 %v2484, %v2462
        %v2486 = vadd.f32 %v2485, %v2463
        %v2487 = vadd.f32 %v2486, %v2464
        %v2488 = vadd.f32 %v2487, 1e-05
        %v2489 = vrcp.pop %v2488
        %v2490 = vmul.f32 1.0, %v2489
        %s2491 = scalar_lea.vmem %s7, 8
        %v2492 = vld [vmem:[%s2491] sm:$0xff]
        %s2493 = scalar_lea.vmem %s8, 8
        %v2494 = vld [vmem:[%s2493] sm:$0xff]
        %2496 = vset.pattern.permute.xlu0 0
        %2497 = vperm.xlu0 %2496, %v2494
        %v2498 = vpop.permute.xlu0 %2497
        %v2501 = vsel %vm1754, %v2492, 0
        %2503 = vmatprep.subr.mxu0 0.0
        %2504 = vmatpush1.msra.mxu0 %v2480
        %2505 = vmatprep.subr.mxu0 0.0
        %2506 = vmatpush1.msra.mxu0 0.0
        %2507 = vmatprep.subr.mxu0 0.0
        %2508 = vmatpush1.msra.mxu0 0.0
        %2509 = vmatprep.subr.mxu0 0.0
        %2510 = vmatpush1.msra.mxu0 0.0
        %2511 = vmatprep.subr.mxu0 0.0
        %2512 = vmatpush1.msra.mxu0 0.0
        %2513 = vmatprep.subr.mxu0 0.0
        %2514 = vmatpush1.msra.mxu0 0.0
        %2515 = vmatprep.subr.mxu0 0.0
        %2516 = vmatpush1.msra.mxu0 0.0
        %2517 = vmatprep.subr.mxu0 0.0
        %2518 = vmatpush1.msra.mxu0 0.0
        %2519 = vmatprep.subr.mxu0 0.0
        %2520 = vmatpush1.msra.mxu0 0.0
        %2521 = vmatprep.subr.mxu0 0.0
        %2522 = vmatpush1.msra.mxu0 0.0
        %2523 = vmatprep.subr.mxu0 0.0
        %2524 = vmatpush1.msra.mxu0 0.0
        %2525 = vmatprep.subr.mxu0 0.0
        %2526 = vmatpush1.msra.mxu0 0.0
        %2527 = vmatprep.subr.mxu0 0.0
        %2528 = vmatpush1.msra.mxu0 0.0
        %2529 = vmatprep.subr.mxu0 0.0
        %2530 = vmatpush1.msra.mxu0 0.0
        %2531 = vmatprep.subr.mxu0 0.0
        %2532 = vmatpush1.msra.mxu0 0.0
        %2533 = vmatprep.subr.mxu0 0.0
        %2534 = vmatpush1.msra.mxu0 0.0
        %2535 = vmatprep.subr.mxu0 0.0
        %2536 = vmatpush1.msra.mxu0 0.0
        %2537 = vmatprep.subr.mxu0 0.0
        %2538 = vmatpush1.msra.mxu0 0.0
        %2539 = vmatprep.subr.mxu0 0.0
        %2540 = vmatpush1.msra.mxu0 0.0
        %2541 = vmatprep.subr.mxu0 0.0
        %2542 = vmatpush1.msra.mxu0 0.0
        %2543 = vmatprep.subr.mxu0 0.0
        %2544 = vmatpush1.msra.mxu0 0.0
        %2545 = vmatprep.subr.mxu0 0.0
        %2546 = vmatpush1.msra.mxu0 0.0
        %2547 = vmatprep.subr.mxu0 0.0
        %2548 = vmatpush1.msra.mxu0 0.0
        %2549 = vmatprep.subr.mxu0 0.0
        %2550 = vmatpush1.msra.mxu0 0.0
        %2551 = vmatprep.subr.mxu0 0.0
        %2552 = vmatpush1.msra.mxu0 0.0
        %2553 = vmatprep.subr.mxu0 0.0
        %2554 = vmatpush1.msra.mxu0 0.0
        %2555 = vmatprep.subr.mxu0 0.0
        %2556 = vmatpush1.msra.mxu0 0.0
        %2557 = vmatprep.subr.mxu0 0.0
        %2558 = vmatpush1.msra.mxu0 0.0
        %2559 = vmatprep.subr.mxu0 0.0
        %2560 = vmatpush1.msra.mxu0 0.0
        %2561 = vmatprep.subr.mxu0 0.0
        %2562 = vmatpush1.msra.mxu0 0.0
        %2563 = vmatprep.subr.mxu0 0.0
        %2564 = vmatpush1.msra.mxu0 0.0
        %2565 = vmatprep.subr.mxu0 0.0
        %2566 = vmatpush1.msra.mxu0 0.0
        %2567 = vmatprep.mubr.f32.mxu0 0.0
        %2568 = vmatmul.mubr.f32.gmra.mrb[0].mxu0 %v2501
        %v2569 = vpop.f32.mrb[0].mxu0
        %v2570 = vadd.f32 %v2498, %v2569
        %v2571 = vpop.f32.mrb[0].mxu0
        %2572 = vdwg.mxu0
        %v2573 = vmul.f32 %v2570, 0.5
        %v2574 = vtanh.pop %v2573
        %v2575 = vadd.f32 %v2574, 1.0
        %v2576 = vmul.f32 %v2575, 0.5
        %v2577 = vmul.f32 %v2480, %v2576
        %v2578 = vmul.f32 %v2457, %v1198
        %v2579 = vmul.f32 %v2458, %v1199
        %v2580 = vmul.f32 %v2459, %v1200
        %v2581 = vmul.f32 %v2460, %v1201
        %v2582 = vmul.f32 %v2461, %v1202
        %v2583 = vmul.f32 %v2462, %v1203
        %v2584 = vmul.f32 %v2463, %v1204
        %v2585 = vmul.f32 %v2464, %v1205
        %v2586 = vadd.f32 %v2578, %v2579
        %v2587 = vadd.f32 %v2586, %v2580
        %v2588 = vadd.f32 %v2587, %v2581
        %v2589 = vadd.f32 %v2588, %v2582
        %v2590 = vadd.f32 %v2589, %v2583
        %v2591 = vadd.f32 %v2590, %v2584
        %v2592 = vadd.f32 %v2591, %v2585
        %v2593 = vmul.f32 %v2592, %v2490
        %v2594 = vsub.f32 %v1198, %v2593
        %v2595 = vsub.f32 %v1199, %v2593
        %v2596 = vsub.f32 %v1200, %v2593
        %v2597 = vsub.f32 %v1201, %v2593
        %v2598 = vsub.f32 %v1202, %v2593
        %v2599 = vsub.f32 %v1203, %v2593
        %v2600 = vsub.f32 %v1204, %v2593
        %v2601 = vsub.f32 %v1205, %v2593
        %v2602 = vmul.f32 %v2594, %v2594
        %v2603 = vmul.f32 %v2595, %v2595
        %v2604 = vmul.f32 %v2596, %v2596
        %v2605 = vmul.f32 %v2597, %v2597
        %v2606 = vmul.f32 %v2598, %v2598
        %v2607 = vmul.f32 %v2599, %v2599
        %v2608 = vmul.f32 %v2600, %v2600
        %v2609 = vmul.f32 %v2601, %v2601
        %v2610 = vmul.f32 %v2457, %v2602
        %v2611 = vmul.f32 %v2458, %v2603
        %v2612 = vmul.f32 %v2459, %v2604
        %v2613 = vmul.f32 %v2460, %v2605
        %v2614 = vmul.f32 %v2461, %v2606
        %v2615 = vmul.f32 %v2462, %v2607
        %v2616 = vmul.f32 %v2463, %v2608
        %v2617 = vmul.f32 %v2464, %v2609
        %v2618 = vadd.f32 %v2610, %v2611
        %v2619 = vadd.f32 %v2618, %v2612
        %v2620 = vadd.f32 %v2619, %v2613
        %v2621 = vadd.f32 %v2620, %v2614
        %v2622 = vadd.f32 %v2621, %v2615
        %v2623 = vadd.f32 %v2622, %v2616
        %v2624 = vadd.f32 %v2623, %v2617
        %v2625 = vmul.f32 %v2624, %v2490
        %v2626 = vadd.f32 %v2625, 1e-05
        %v2627 = vrcp.pop %v2626
        %v2628 = vmul.f32 %v2627, 0.5
        %v2629 = vmul.f32 %v2602, %v2628
        %v2630 = vmul.f32 %v2603, %v2628
        %v2631 = vmul.f32 %v2604, %v2628
        %v2632 = vmul.f32 %v2605, %v2628
        %v2633 = vmul.f32 %v2606, %v2628
        %v2634 = vmul.f32 %v2607, %v2628
        %v2635 = vmul.f32 %v2608, %v2628
        %v2636 = vmul.f32 %v2609, %v2628
        %v2637 = vmul.f32 %v2457, %v1688
        %v2638 = vmul.f32 %v2458, %v1689
        %v2639 = vmul.f32 %v2459, %v1690
        %v2640 = vmul.f32 %v2460, %v1691
        %v2641 = vmul.f32 %v2461, %v1692
        %v2642 = vmul.f32 %v2462, %v1693
        %v2643 = vmul.f32 %v2463, %v1694
        %v2644 = vmul.f32 %v2464, %v1695
        %v2645 = vadd.f32 %v2637, %v2638
        %v2646 = vadd.f32 %v2645, %v2639
        %v2647 = vadd.f32 %v2646, %v2640
        %v2648 = vadd.f32 %v2647, %v2641
        %v2649 = vadd.f32 %v2648, %v2642
        %v2650 = vadd.f32 %v2649, %v2643
        %v2651 = vadd.f32 %v2650, %v2644
        %v2652 = vmul.f32 %v2651, %v2490
        %v2653 = vsub.f32 %v1688, %v2652
        %v2654 = vsub.f32 %v1689, %v2652
        %v2655 = vsub.f32 %v1690, %v2652
        %v2656 = vsub.f32 %v1691, %v2652
        %v2657 = vsub.f32 %v1692, %v2652
        %v2658 = vsub.f32 %v1693, %v2652
        %v2659 = vsub.f32 %v1694, %v2652
        %v2660 = vsub.f32 %v1695, %v2652
        %v2661 = vmul.f32 %v2653, %v2653
        %v2662 = vmul.f32 %v2654, %v2654
        %v2663 = vmul.f32 %v2655, %v2655
        %v2664 = vmul.f32 %v2656, %v2656
        %v2665 = vmul.f32 %v2657, %v2657
        %v2666 = vmul.f32 %v2658, %v2658
        %v2667 = vmul.f32 %v2659, %v2659
        %v2668 = vmul.f32 %v2660, %v2660
        %v2669 = vmul.f32 %v2457, %v2661
        %v2670 = vmul.f32 %v2458, %v2662
        %v2671 = vmul.f32 %v2459, %v2663
        %v2672 = vmul.f32 %v2460, %v2664
        %v2673 = vmul.f32 %v2461, %v2665
        %v2674 = vmul.f32 %v2462, %v2666
        %v2675 = vmul.f32 %v2463, %v2667
        %v2676 = vmul.f32 %v2464, %v2668
        %v2677 = vadd.f32 %v2669, %v2670
        %v2678 = vadd.f32 %v2677, %v2671
        %v2679 = vadd.f32 %v2678, %v2672
        %v2680 = vadd.f32 %v2679, %v2673
        %v2681 = vadd.f32 %v2680, %v2674
        %v2682 = vadd.f32 %v2681, %v2675
        %v2683 = vadd.f32 %v2682, %v2676
        %v2684 = vmul.f32 %v2683, %v2490
        %v2685 = vadd.f32 %v2684, 1e-05
        %v2686 = vmul.f32 %v2626, %v2685
        %v2687 = vrcp.pop %v2685
        %v2688 = vmul.f32 %v2687, 0.5
        %v2689 = vmul.f32 %v2661, %v2688
        %v2690 = vmul.f32 %v2662, %v2688
        %v2691 = vmul.f32 %v2663, %v2688
        %v2692 = vmul.f32 %v2664, %v2688
        %v2693 = vmul.f32 %v2665, %v2688
        %v2694 = vmul.f32 %v2666, %v2688
        %v2695 = vmul.f32 %v2667, %v2688
        %v2696 = vmul.f32 %v2668, %v2688
        %v2697 = vadd.f32 %v2629, %v2689
        %v2698 = vadd.f32 %v2630, %v2690
        %v2699 = vadd.f32 %v2631, %v2691
        %v2700 = vadd.f32 %v2632, %v2692
        %v2701 = vadd.f32 %v2633, %v2693
        %v2702 = vadd.f32 %v2634, %v2694
        %v2703 = vadd.f32 %v2635, %v2695
        %v2704 = vadd.f32 %v2636, %v2696
        %v2705 = vlog2.pop %v2686
        %v2706 = vmul.f32 %v2705, 0.6931472
        %v2707 = vmul.f32 %v2706, 0.5
        %v2708 = vmin.f32 %v2577, 0.0
        %v2709 = vand.u32 2147483647, %v2577
        %v2710 = vsub.f32 0.0, %v2709
        %v2711 = vmul.f32 %v2710, 1.442695
        %v2712 = vpow.pop %v2711
        %v2713 = vadd.f32 %v2712, 1.0
        %v2714 = vlog2.pop %v2713
        %v2715 = vmul.f32 %v2714, 0.6931472
        %v2716 = vsub.f32 %v2708, %v2715
        %v2717 = vsub.f32 %v2716, %v2707
        %v2718 = vsub.f32 %v2717, %v2697
        %v2719 = vsub.f32 %v2717, %v2698
        %v2720 = vsub.f32 %v2717, %v2699
        %v2721 = vsub.f32 %v2717, %v2700
        %v2722 = vsub.f32 %v2717, %v2701
        %v2723 = vsub.f32 %v2717, %v2702
        %v2724 = vsub.f32 %v2717, %v2703
        %v2725 = vsub.f32 %v2717, %v2704
        %v2726 = vrot.slane %v2718, 4
        %v2727 = vmax.f32 %v2718, %v2726
        %v2728 = vrot.slane %v2727, 2
        %v2729 = vmax.f32 %v2727, %v2728
        %v2730 = vrot.slane %v2729, 1
        %v2731 = vmax.f32 %v2729, %v2730
        %v2732 = vrot.slane %v2719, 4
        %v2733 = vmax.f32 %v2719, %v2732
        %v2734 = vrot.slane %v2733, 2
        %v2735 = vmax.f32 %v2733, %v2734
        %v2736 = vrot.slane %v2735, 1
        %v2737 = vmax.f32 %v2735, %v2736
        %v2738 = vrot.slane %v2720, 4
        %v2739 = vmax.f32 %v2720, %v2738
        %v2740 = vrot.slane %v2739, 2
        %v2741 = vmax.f32 %v2739, %v2740
        %v2742 = vrot.slane %v2741, 1
        %v2743 = vmax.f32 %v2741, %v2742
        %v2744 = vrot.slane %v2721, 4
        %v2745 = vmax.f32 %v2721, %v2744
        %v2746 = vrot.slane %v2745, 2
        %v2747 = vmax.f32 %v2745, %v2746
        %v2748 = vrot.slane %v2747, 1
        %v2749 = vmax.f32 %v2747, %v2748
        %v2750 = vrot.slane %v2722, 4
        %v2751 = vmax.f32 %v2722, %v2750
        %v2752 = vrot.slane %v2751, 2
        %v2753 = vmax.f32 %v2751, %v2752
        %v2754 = vrot.slane %v2753, 1
        %v2755 = vmax.f32 %v2753, %v2754
        %v2756 = vrot.slane %v2723, 4
        %v2757 = vmax.f32 %v2723, %v2756
        %v2758 = vrot.slane %v2757, 2
        %v2759 = vmax.f32 %v2757, %v2758
        %v2760 = vrot.slane %v2759, 1
        %v2761 = vmax.f32 %v2759, %v2760
        %v2762 = vrot.slane %v2724, 4
        %v2763 = vmax.f32 %v2724, %v2762
        %v2764 = vrot.slane %v2763, 2
        %v2765 = vmax.f32 %v2763, %v2764
        %v2766 = vrot.slane %v2765, 1
        %v2767 = vmax.f32 %v2765, %v2766
        %v2768 = vrot.slane %v2725, 4
        %v2769 = vmax.f32 %v2725, %v2768
        %v2770 = vrot.slane %v2769, 2
        %v2771 = vmax.f32 %v2769, %v2770
        %v2772 = vrot.slane %v2771, 1
        %v2773 = vmax.f32 %v2771, %v2772
        %v2774 = vsub.f32 %v2718, %v2731
        %v2775 = vsub.f32 %v2719, %v2737
        %v2776 = vsub.f32 %v2720, %v2743
        %v2777 = vsub.f32 %v2721, %v2749
        %v2778 = vsub.f32 %v2722, %v2755
        %v2779 = vsub.f32 %v2723, %v2761
        %v2780 = vsub.f32 %v2724, %v2767
        %v2781 = vsub.f32 %v2725, %v2773
        %v2782 = vmul.f32 %v2774, 1.442695
        %v2783 = vpow.pop %v2782
        %v2784 = vmul.f32 %v2775, 1.442695
        %v2785 = vpow.pop %v2784
        %v2786 = vmul.f32 %v2776, 1.442695
        %v2787 = vpow.pop %v2786
        %v2788 = vmul.f32 %v2777, 1.442695
        %v2789 = vpow.pop %v2788
        %v2790 = vmul.f32 %v2778, 1.442695
        %v2791 = vpow.pop %v2790
        %v2792 = vmul.f32 %v2779, 1.442695
        %v2793 = vpow.pop %v2792
        %v2794 = vmul.f32 %v2780, 1.442695
        %v2795 = vpow.pop %v2794
        %v2796 = vmul.f32 %v2781, 1.442695
        %v2797 = vpow.pop %v2796
        %v2798 = vrot.slane %v2783, 4
        %v2799 = vadd.f32 %v2783, %v2798
        %v2800 = vrot.slane %v2799, 2
        %v2801 = vadd.f32 %v2799, %v2800
        %v2802 = vrot.slane %v2801, 1
        %v2803 = vadd.f32 %v2801, %v2802
        %v2804 = vrot.slane %v2785, 4
        %v2805 = vadd.f32 %v2785, %v2804
        %v2806 = vrot.slane %v2805, 2
        %v2807 = vadd.f32 %v2805, %v2806
        %v2808 = vrot.slane %v2807, 1
        %v2809 = vadd.f32 %v2807, %v2808
        %v2810 = vrot.slane %v2787, 4
        %v2811 = vadd.f32 %v2787, %v2810
        %v2812 = vrot.slane %v2811, 2
        %v2813 = vadd.f32 %v2811, %v2812
        %v2814 = vrot.slane %v2813, 1
        %v2815 = vadd.f32 %v2813, %v2814
        %v2816 = vrot.slane %v2789, 4
        %v2817 = vadd.f32 %v2789, %v2816
        %v2818 = vrot.slane %v2817, 2
        %v2819 = vadd.f32 %v2817, %v2818
        %v2820 = vrot.slane %v2819, 1
        %v2821 = vadd.f32 %v2819, %v2820
        %v2822 = vrot.slane %v2791, 4
        %v2823 = vadd.f32 %v2791, %v2822
        %v2824 = vrot.slane %v2823, 2
        %v2825 = vadd.f32 %v2823, %v2824
        %v2826 = vrot.slane %v2825, 1
        %v2827 = vadd.f32 %v2825, %v2826
        %v2828 = vrot.slane %v2793, 4
        %v2829 = vadd.f32 %v2793, %v2828
        %v2830 = vrot.slane %v2829, 2
        %v2831 = vadd.f32 %v2829, %v2830
        %v2832 = vrot.slane %v2831, 1
        %v2833 = vadd.f32 %v2831, %v2832
        %v2834 = vrot.slane %v2795, 4
        %v2835 = vadd.f32 %v2795, %v2834
        %v2836 = vrot.slane %v2835, 2
        %v2837 = vadd.f32 %v2835, %v2836
        %v2838 = vrot.slane %v2837, 1
        %v2839 = vadd.f32 %v2837, %v2838
        %v2840 = vrot.slane %v2797, 4
        %v2841 = vadd.f32 %v2797, %v2840
        %v2842 = vrot.slane %v2841, 2
        %v2843 = vadd.f32 %v2841, %v2842
        %v2844 = vrot.slane %v2843, 1
        %v2845 = vadd.f32 %v2843, %v2844
        %v2846 = vrcp.pop %v2803
        %v2847 = vrcp.pop %v2809
        %v2848 = vrcp.pop %v2815
        %v2849 = vrcp.pop %v2821
        %v2850 = vrcp.pop %v2827
        %v2851 = vrcp.pop %v2833
        %v2852 = vrcp.pop %v2839
        %v2853 = vrcp.pop %v2845
        %v2862 = vsel %vm2351, %v2847, %v2846
        %v2863 = vsel %vm2353, %v2848, %v2862
        %v2864 = vsel %vm2355, %v2849, %v2863
        %v2865 = vsel %vm2357, %v2850, %v2864
        %v2866 = vsel %vm2359, %v2851, %v2865
        %v2867 = vsel %vm2361, %v2852, %v2866
        %v2868 = vsel %vm2363, %v2853, %v2867
        %v2870 = vmul.f32 %v486, %v2868
        %v2872 = vcombine.high %v2870, %v2870
        %v2874 = vunpack.c.l.s4 1966171168
        %v2875 = vunpack.c.0.s8 %v2874
        %v2876 = vlaneseq
        %v2877 = vshrl.u32 %v2876, 7
        %v2878 = vsub.s32 %v2875, %v2877
        %v2879 = vrot.slane %v2870, %v2878
        %v2881 = vunpack.c.l.s4 1966171168
        %v2882 = vunpack.c.0.s8 %v2881
        %v2883 = vlaneseq
        %v2884 = vshrl.u32 %v2883, 7
        %v2885 = vsub.s32 %v2882, %v2884
        %v2886 = vrot.slane %v2872, %v2885
        %v2887 = vcombine.high %v2879, %v2879
        %v2888 = vcombine.high %v2886, %v2886
        %v2890 = vunpack.c.l.s4 1966171168
        %v2891 = vunpack.c.0.s8 %v2890
        %v2892 = vlaneseq
        %v2893 = vshrl.u32 %v2892, 7
        %v2894 = vsub.s32 %v2891, %v2893
        %v2895 = vrot.slane %v2879, %v2894
        %v2897 = vunpack.c.l.s4 1966171168
        %v2898 = vunpack.c.0.s8 %v2897
        %v2899 = vlaneseq
        %v2900 = vshrl.u32 %v2899, 7
        %v2901 = vsub.s32 %v2898, %v2900
        %v2902 = vrot.slane %v2886, %v2901
        %v2904 = vunpack.c.l.s4 1966171168
        %v2905 = vunpack.c.0.s8 %v2904
        %v2906 = vlaneseq
        %v2907 = vshrl.u32 %v2906, 7
        %v2908 = vsub.s32 %v2905, %v2907
        %v2909 = vrot.slane %v2887, %v2908
        %v2911 = vunpack.c.l.s4 1966171168
        %v2912 = vunpack.c.0.s8 %v2911
        %v2913 = vlaneseq
        %v2914 = vshrl.u32 %v2913, 7
        %v2915 = vsub.s32 %v2912, %v2914
        %v2916 = vrot.slane %v2888, %v2915
        %v2917 = vcombine.high %v2895, %v2895
        %v2918 = vcombine.high %v2902, %v2902
        %v2919 = vcombine.high %v2909, %v2909
        %v2920 = vcombine.high %v2916, %v2916
        %v2921 = vlaneseq
        %v2922 = vshrl.u32 %v2921, 7
        %v2923 = vsub.s32 0, %v2922
        %v2924 = vrot.slane %v2895, %v2923
        %v2925 = vlaneseq
        %v2926 = vshrl.u32 %v2925, 7
        %v2927 = vsub.s32 0, %v2926
        %v2928 = vrot.slane %v2909, %v2927
        %v2929 = vlaneseq
        %v2930 = vshrl.u32 %v2929, 7
        %v2931 = vsub.s32 0, %v2930
        %v2932 = vrot.slane %v2917, %v2931
        %v2933 = vlaneseq
        %v2934 = vshrl.u32 %v2933, 7
        %v2935 = vsub.s32 0, %v2934
        %v2936 = vrot.slane %v2919, %v2935
        %v2937 = vlaneseq
        %v2938 = vshrl.u32 %v2937, 7
        %v2939 = vsub.s32 0, %v2938
        %v2940 = vrot.slane %v2902, %v2939
        %v2941 = vlaneseq
        %v2942 = vshrl.u32 %v2941, 7
        %v2943 = vsub.s32 0, %v2942
        %v2944 = vrot.slane %v2916, %v2943
        %v2945 = vlaneseq
        %v2946 = vshrl.u32 %v2945, 7
        %v2947 = vsub.s32 0, %v2946
        %v2948 = vrot.slane %v2918, %v2947
        %v2949 = vlaneseq
        %v2950 = vshrl.u32 %v2949, 7
        %v2951 = vsub.s32 0, %v2950
        %v2952 = vrot.slane %v2920, %v2951
        %v2961 = vmul.f32 %v2783, %v2924
        %v2962 = vmul.f32 %v2785, %v2928
        %v2963 = vmul.f32 %v2787, %v2932
        %v2964 = vmul.f32 %v2789, %v2936
        %v2965 = vmul.f32 %v2791, %v2940
        %v2966 = vmul.f32 %v2793, %v2944
        %v2967 = vmul.f32 %v2795, %v2948
        %v2968 = vmul.f32 %v2797, %v2952
        %v2969 = vmul.f32 %v1703, %v2961
        %v2970 = vmul.f32 %v1710, %v2962
        %v2971 = vmul.f32 %v1717, %v2963
        %v2972 = vmul.f32 %v1724, %v2964
        %v2973 = vmul.f32 %v1731, %v2965
        %v2974 = vmul.f32 %v1738, %v2966
        %v2975 = vmul.f32 %v1745, %v2967
        %v2976 = vmul.f32 %v1752, %v2968
        %v2977 = vadd.f32 %v2969, %v2970
        %v2978 = vadd.f32 %v2977, %v2971
        %v2979 = vadd.f32 %v2978, %v2972
        %v2980 = vadd.f32 %v2979, %v2973
        %v2981 = vadd.f32 %v2980, %v2974
        %v2982 = vadd.f32 %v2981, %v2975
        %v2983 = vadd.f32 %v2982, %v2976
        %v2984 = vsub.f32 %v2983, %v1825
        %v2985 = vadd.f32 %v2961, %v2962
        %v2986 = vadd.f32 %v2985, %v2963
        %v2987 = vadd.f32 %v2986, %v2964
        %v2988 = vadd.f32 %v2987, %v2965
        %v2989 = vadd.f32 %v2988, %v2966
        %v2990 = vadd.f32 %v2989, %v2967
        %v2991 = vadd.f32 %v2990, %v2968
        %v2992 = vadd.f32 %v2991, 1e-05
        %v2993 = vrcp.pop %v2992
        %v2994 = vmul.f32 1.0, %v2993
        %s2995 = scalar_lea.vmem %s7, 16
        %v2996 = vld [vmem:[%s2995] sm:$0xff]
        %s2997 = scalar_lea.vmem %s8, 16
        %v2998 = vld [vmem:[%s2997] sm:$0xff]
        %3000 = vset.pattern.permute.xlu0 0
        %3001 = vperm.xlu0 %3000, %v2998
        %v3002 = vpop.permute.xlu0 %3001
        %v3005 = vsel %vm1754, %v2996, 0
        %3007 = vmatprep.subr.mxu0 0.0
        %3008 = vmatpush1.msra.mxu0 %v2984
        %3009 = vmatprep.subr.mxu0 0.0
        %3010 = vmatpush1.msra.mxu0 0.0
        %3011 = vmatprep.subr.mxu0 0.0
        %3012 = vmatpush1.msra.mxu0 0.0
        %3013 = vmatprep.subr.mxu0 0.0
        %3014 = vmatpush1.msra.mxu0 0.0
        %3015 = vmatprep.subr.mxu0 0.0
        %3016 = vmatpush1.msra.mxu0 0.0
        %3017 = vmatprep.subr.mxu0 0.0
        %3018 = vmatpush1.msra.mxu0 0.0
        %3019 = vmatprep.subr.mxu0 0.0
        %3020 = vmatpush1.msra.mxu0 0.0
        %3021 = vmatprep.subr.mxu0 0.0
        %3022 = vmatpush1.msra.mxu0 0.0
        %3023 = vmatprep.subr.mxu0 0.0
        %3024 = vmatpush1.msra.mxu0 0.0
        %3025 = vmatprep.subr.mxu0 0.0
        %3026 = vmatpush1.msra.mxu0 0.0
        %3027 = vmatprep.subr.mxu0 0.0
        %3028 = vmatpush1.msra.mxu0 0.0
        %3029 = vmatprep.subr.mxu0 0.0
        %3030 = vmatpush1.msra.mxu0 0.0
        %3031 = vmatprep.subr.mxu0 0.0
        %3032 = vmatpush1.msra.mxu0 0.0
        %3033 = vmatprep.subr.mxu0 0.0
        %3034 = vmatpush1.msra.mxu0 0.0
        %3035 = vmatprep.subr.mxu0 0.0
        %3036 = vmatpush1.msra.mxu0 0.0
        %3037 = vmatprep.subr.mxu0 0.0
        %3038 = vmatpush1.msra.mxu0 0.0
        %3039 = vmatprep.subr.mxu0 0.0
        %3040 = vmatpush1.msra.mxu0 0.0
        %3041 = vmatprep.subr.mxu0 0.0
        %3042 = vmatpush1.msra.mxu0 0.0
        %3043 = vmatprep.subr.mxu0 0.0
        %3044 = vmatpush1.msra.mxu0 0.0
        %3045 = vmatprep.subr.mxu0 0.0
        %3046 = vmatpush1.msra.mxu0 0.0
        %3047 = vmatprep.subr.mxu0 0.0
        %3048 = vmatpush1.msra.mxu0 0.0
        %3049 = vmatprep.subr.mxu0 0.0
        %3050 = vmatpush1.msra.mxu0 0.0
        %3051 = vmatprep.subr.mxu0 0.0
        %3052 = vmatpush1.msra.mxu0 0.0
        %3053 = vmatprep.subr.mxu0 0.0
        %3054 = vmatpush1.msra.mxu0 0.0
        %3055 = vmatprep.subr.mxu0 0.0
        %3056 = vmatpush1.msra.mxu0 0.0
        %3057 = vmatprep.subr.mxu0 0.0
        %3058 = vmatpush1.msra.mxu0 0.0
        %3059 = vmatprep.subr.mxu0 0.0
        %3060 = vmatpush1.msra.mxu0 0.0
        %3061 = vmatprep.subr.mxu0 0.0
        %3062 = vmatpush1.msra.mxu0 0.0
        %3063 = vmatprep.subr.mxu0 0.0
        %3064 = vmatpush1.msra.mxu0 0.0
        %3065 = vmatprep.subr.mxu0 0.0
        %3066 = vmatpush1.msra.mxu0 0.0
        %3067 = vmatprep.subr.mxu0 0.0
        %3068 = vmatpush1.msra.mxu0 0.0
        %3069 = vmatprep.subr.mxu0 0.0
        %3070 = vmatpush1.msra.mxu0 0.0
        %3071 = vmatprep.mubr.f32.mxu0 0.0
        %3072 = vmatmul.mubr.f32.gmra.mrb[0].mxu0 %v3005
        %v3073 = vpop.f32.mrb[0].mxu0
        %v3074 = vadd.f32 %v3002, %v3073
        %v3075 = vpop.f32.mrb[0].mxu0
        %3076 = vdwg.mxu0
        %v3077 = vmul.f32 %v3074, 0.5
        %v3078 = vtanh.pop %v3077
        %v3079 = vadd.f32 %v3078, 1.0
        %v3080 = vmul.f32 %v3079, 0.5
        %v3081 = vmul.f32 %v2984, %v3080
        %v3082 = vmul.f32 %v2961, %v1198
        %v3083 = vmul.f32 %v2962, %v1199
        %v3084 = vmul.f32 %v2963, %v1200
        %v3085 = vmul.f32 %v2964, %v1201
        %v3086 = vmul.f32 %v2965, %v1202
        %v3087 = vmul.f32 %v2966, %v1203
        %v3088 = vmul.f32 %v2967, %v1204
        %v3089 = vmul.f32 %v2968, %v1205
        %v3090 = vadd.f32 %v3082, %v3083
        %v3091 = vadd.f32 %v3090, %v3084
        %v3092 = vadd.f32 %v3091, %v3085
        %v3093 = vadd.f32 %v3092, %v3086
        %v3094 = vadd.f32 %v3093, %v3087
        %v3095 = vadd.f32 %v3094, %v3088
        %v3096 = vadd.f32 %v3095, %v3089
        %v3097 = vmul.f32 %v3096, %v2994
        %v3098 = vsub.f32 %v1198, %v3097
        %v3099 = vsub.f32 %v1199, %v3097
        %v3100 = vsub.f32 %v1200, %v3097
        %v3101 = vsub.f32 %v1201, %v3097
        %v3102 = vsub.f32 %v1202, %v3097
        %v3103 = vsub.f32 %v1203, %v3097
        %v3104 = vsub.f32 %v1204, %v3097
        %v3105 = vsub.f32 %v1205, %v3097
        %v3106 = vmul.f32 %v3098, %v3098
        %v3107 = vmul.f32 %v3099, %v3099
        %v3108 = vmul.f32 %v3100, %v3100
        %v3109 = vmul.f32 %v3101, %v3101
        %v3110 = vmul.f32 %v3102, %v3102
        %v3111 = vmul.f32 %v3103, %v3103
        %v3112 = vmul.f32 %v3104, %v3104
        %v3113 = vmul.f32 %v3105, %v3105
        %v3114 = vmul.f32 %v2961, %v3106
        %v3115 = vmul.f32 %v2962, %v3107
        %v3116 = vmul.f32 %v2963, %v3108
        %v3117 = vmul.f32 %v2964, %v3109
        %v3118 = vmul.f32 %v2965, %v3110
        %v3119 = vmul.f32 %v2966, %v3111
        %v3120 = vmul.f32 %v2967, %v3112
        %v3121 = vmul.f32 %v2968, %v3113
        %v3122 = vadd.f32 %v3114, %v3115
        %v3123 = vadd.f32 %v3122, %v3116
        %v3124 = vadd.f32 %v3123, %v3117
        %v3125 = vadd.f32 %v3124, %v3118
        %v3126 = vadd.f32 %v3125, %v3119
        %v3127 = vadd.f32 %v3126, %v3120
        %v3128 = vadd.f32 %v3127, %v3121
        %v3129 = vmul.f32 %v3128, %v2994
        %v3130 = vadd.f32 %v3129, 1e-05
        %v3131 = vmul.f32 %v2961, %v1688
        %v3132 = vmul.f32 %v2962, %v1689
        %v3133 = vmul.f32 %v2963, %v1690
        %v3134 = vmul.f32 %v2964, %v1691
        %v3135 = vmul.f32 %v2965, %v1692
        %v3136 = vmul.f32 %v2966, %v1693
        %v3137 = vmul.f32 %v2967, %v1694
        %v3138 = vmul.f32 %v2968, %v1695
        %v3139 = vadd.f32 %v3131, %v3132
        %v3140 = vadd.f32 %v3139, %v3133
        %v3141 = vadd.f32 %v3140, %v3134
        %v3142 = vadd.f32 %v3141, %v3135
        %v3143 = vadd.f32 %v3142, %v3136
        %v3144 = vadd.f32 %v3143, %v3137
        %v3145 = vadd.f32 %v3144, %v3138
        %v3146 = vmul.f32 %v3145, %v2994
        %v3147 = vsub.f32 %v1688, %v3146
        %v3148 = vsub.f32 %v1689, %v3146
        %v3149 = vsub.f32 %v1690, %v3146
        %v3150 = vsub.f32 %v1691, %v3146
        %v3151 = vsub.f32 %v1692, %v3146
        %v3152 = vsub.f32 %v1693, %v3146
        %v3153 = vsub.f32 %v1694, %v3146
        %v3154 = vsub.f32 %v1695, %v3146
        %v3155 = vmul.f32 %v3147, %v3147
        %v3156 = vmul.f32 %v3148, %v3148
        %v3157 = vmul.f32 %v3149, %v3149
        %v3158 = vmul.f32 %v3150, %v3150
        %v3159 = vmul.f32 %v3151, %v3151
        %v3160 = vmul.f32 %v3152, %v3152
        %v3161 = vmul.f32 %v3153, %v3153
        %v3162 = vmul.f32 %v3154, %v3154
        %v3163 = vmul.f32 %v2961, %v3155
        %v3164 = vmul.f32 %v2962, %v3156
        %v3165 = vmul.f32 %v2963, %v3157
        %v3166 = vmul.f32 %v2964, %v3158
        %v3167 = vmul.f32 %v2965, %v3159
        %v3168 = vmul.f32 %v2966, %v3160
        %v3169 = vmul.f32 %v2967, %v3161
        %v3170 = vmul.f32 %v2968, %v3162
        %v3171 = vadd.f32 %v3163, %v3164
        %v3172 = vadd.f32 %v3171, %v3165
        %v3173 = vadd.f32 %v3172, %v3166
        %v3174 = vadd.f32 %v3173, %v3167
        %v3175 = vadd.f32 %v3174, %v3168
        %v3176 = vadd.f32 %v3175, %v3169
        %v3177 = vadd.f32 %v3176, %v3170
        %v3178 = vmul.f32 %v3177, %v2994
        %v3179 = vadd.f32 %v3178, 1e-05
        %v3180 = vld [vmem:[%s9] sm:$0xff]
        %v3181 = vld [vmem:[%s9 + $0x8] sm:$0xff]
        %v3182 = vld [vmem:[%s10] sm:$0xff]
        %v3183 = vld [vmem:[%s10 + $0x8] sm:$0xff]
        %3185 = vset.pattern.permute.xlu0 0
        %3186 = vperm.xlu0 %3185, %v3182
        %v3187 = vpop.permute.xlu0 %3186
        %3190 = vset.pattern.permute.xlu0 0
        %3191 = vperm.xlu0 %3190, %v3183
        %v3192 = vpop.permute.xlu0 %3191
        %vm3194 = vcmask 261120
        %v3196 = vsel %vm3194, %v3180, 0
        %v3199 = vsel %vm3194, %v3181, 0
        %3201 = vmatprep.subr.mxu0 0.0
        %3202 = vmatpush1.msra.mxu0 %v3097
        %3203 = vmatprep.subr.mxu0 0.0
        %3204 = vmatpush1.msra.mxu0 %v3146
        %3205 = vmatprep.subr.mxu0 0.0
        %3206 = vmatpush1.msra.mxu0 %v3130
        %3207 = vmatprep.subr.mxu0 0.0
        %3208 = vmatpush1.msra.mxu0 %v3179
        %3209 = vmatprep.subr.mxu0 0.0
        %3210 = vmatpush1.msra.mxu0 0.0
        %3211 = vmatprep.subr.mxu0 0.0
        %3212 = vmatpush1.msra.mxu0 0.0
        %3213 = vmatprep.subr.mxu0 0.0
        %3214 = vmatpush1.msra.mxu0 0.0
        %3215 = vmatprep.subr.mxu0 0.0
        %3216 = vmatpush1.msra.mxu0 0.0
        %3217 = vmatprep.subr.mxu0 0.0
        %3218 = vmatpush1.msra.mxu0 0.0
        %3219 = vmatprep.subr.mxu0 0.0
        %3220 = vmatpush1.msra.mxu0 0.0
        %3221 = vmatprep.subr.mxu0 0.0
        %3222 = vmatpush1.msra.mxu0 0.0
        %3223 = vmatprep.subr.mxu0 0.0
        %3224 = vmatpush1.msra.mxu0 0.0
        %3225 = vmatprep.subr.mxu0 0.0
        %3226 = vmatpush1.msra.mxu0 0.0
        %3227 = vmatprep.subr.mxu0 0.0
        %3228 = vmatpush1.msra.mxu0 0.0
        %3229 = vmatprep.subr.mxu0 0.0
        %3230 = vmatpush1.msra.mxu0 0.0
        %3231 = vmatprep.subr.mxu0 0.0
        %3232 = vmatpush1.msra.mxu0 0.0
        %3233 = vmatprep.subr.mxu0 0.0
        %3234 = vmatpush1.msra.mxu0 0.0
        %3235 = vmatprep.subr.mxu0 0.0
        %3236 = vmatpush1.msra.mxu0 0.0
        %3237 = vmatprep.subr.mxu0 0.0
        %3238 = vmatpush1.msra.mxu0 0.0
        %3239 = vmatprep.subr.mxu0 0.0
        %3240 = vmatpush1.msra.mxu0 0.0
        %3241 = vmatprep.subr.mxu0 0.0
        %3242 = vmatpush1.msra.mxu0 0.0
        %3243 = vmatprep.subr.mxu0 0.0
        %3244 = vmatpush1.msra.mxu0 0.0
        %3245 = vmatprep.subr.mxu0 0.0
        %3246 = vmatpush1.msra.mxu0 0.0
        %3247 = vmatprep.subr.mxu0 0.0
        %3248 = vmatpush1.msra.mxu0 0.0
        %3249 = vmatprep.subr.mxu0 0.0
        %3250 = vmatpush1.msra.mxu0 0.0
        %3251 = vmatprep.subr.mxu0 0.0
        %3252 = vmatpush1.msra.mxu0 0.0
        %3253 = vmatprep.subr.mxu0 0.0
        %3254 = vmatpush1.msra.mxu0 0.0
        %3255 = vmatprep.subr.mxu0 0.0
        %3256 = vmatpush1.msra.mxu0 0.0
        %3257 = vmatprep.subr.mxu0 0.0
        %3258 = vmatpush1.msra.mxu0 0.0
        %3259 = vmatprep.subr.mxu0 0.0
        %3260 = vmatpush1.msra.mxu0 0.0
        %3261 = vmatprep.subr.mxu0 0.0
        %3262 = vmatpush1.msra.mxu0 0.0
        %3263 = vmatprep.subr.mxu0 0.0
        %3264 = vmatpush1.msra.mxu0 0.0
        %3265 = vmatprep.mubr.f32.mxu0 0.0
        %3266 = vmatmul.mubr.f32.gmra.mrb[0].mxu0 %v3196
        %v3267 = vpop.f32.mrb[0].mxu0
        %v3268 = vadd.f32 %v3187, %v3267
        %v3269 = vpop.f32.mrb[0].mxu0
        %3270 = vmatprep.mubr.f32.mxu0 0.0
        %3271 = vmatmul.mubr.f32.gmra.mrb[0].mxu0 %v3199
        %v3272 = vpop.f32.mrb[0].mxu0
        %v3273 = vadd.f32 %v3192, %v3272
        %v3274 = vpop.f32.mrb[0].mxu0
        %3275 = vdwg.mxu0
        %v3276 = vmul.f32 %v3268, 0.5
        %v3277 = vmul.f32 %v3273, 0.5
        %v3278 = vtanh.pop %v3276
        %v3279 = vtanh.pop %v3277
        %v3280 = vadd.f32 %v3278, 1.0
        %v3281 = vadd.f32 %v3279, 1.0
        %v3282 = vmul.f32 %v3280, 0.5
        %v3283 = vmul.f32 %v3281, 0.5
        %3284 = vst [vmem:[%s480] sm:$0xff] %v3081
        %v3285 = vmul.f32 %v3097, %v3282
        %3286 = vst [vmem:[%s480 + $0x8] sm:$0xff] %v3285
        %v3287 = vmul.f32 %v3146, %v3283
        %3288 = vst [vmem:[%s480 + $0x10] sm:$0xff] %v3287
        %3289 = vst [vmem:[%s480 + $0x18] sm:$0xff] %v3130
        %3290 = vst [vmem:[%s480 + $0x20] sm:$0xff] %v3179
        %s3291 = sand.u32 %s282, 1
        %s3292 = scalar_lea.sflag [#allocation5], %s3291
        %s3293 = sand.u32 %s282, 1
        %s3294 = smul.addr %s3293, 40
        %s3295 = scalar_lea.vmem [#allocation12], %s3294
        // Predicated region
        $region85: #{tpu_custom_call.1} parent=63 // pred_check
          %p3296 = pneg %p292
        $region86: #{tpu_custom_call.1} parent=63 // pred_check_branch
          %3298 = sbr.rel (%p3296) target = $region88
        $region87: #{tpu_custom_call.1} parent=63 // pred_region
          %s3300 = ssub.s32 640, 640
          %3301 = vsyncadd %s3292, %s3300
          %s3302 = smul.addr %s33, 128
          %s3303 = scalar_lea.hbm %s11, %s3302
          %s3304 = sshll.u32 %s3295, 4
          %s3305 = int_to_ptr.vmem [resolvable:$true] %s3304
          %3310 = dma.vmem_to_hbm [thread:$0]  %s3305, 640, %s3303, %s3292, 128, 256, 8
        $region88: #{tpu_custom_call.1} parent=63 // pred_fallthru
          _
      $region64: #{tpu_custom_call.1} parent=5 // pred_fallthru
        _
      %p3311 = scmp.le.s32.totalorder 2, %s28
      // Predicated region
      $region89: #{tpu_custom_call.1} parent=5 // pred_check
        %p3312 = pneg %p3311
      $region90: #{tpu_custom_call.1} parent=5 // pred_check_branch
        %3314 = sbr.rel (%p3312) target = $region92
      $region91: #{tpu_custom_call.1} parent=5 // pred_region
        %s3315 = ssub.s32 %s28, 2
        // Predicated region
        $region93: #{tpu_custom_call.1} parent=91 // pred_check
          %p3316 = pneg %p298
        $region94: #{tpu_custom_call.1} parent=91 // pred_check_branch
          %3318 = sbr.rel (%p3316) target = $region96
        $region95: #{tpu_custom_call.1} parent=91 // pred_region
          %s3319 = sand.u32 %s283, 1
          %s3320 = scalar_lea.sflag [#allocation5], %s3319
          %s3321 = sand.u32 %s283, 1
          %s3322 = smul.addr %s3321, 40
          %s3323 = scalar_lea.vmem [#allocation12], %s3322
          %3324 = dma.done %s3320, 640
        $region96: #{tpu_custom_call.1} parent=91 // pred_fallthru
          _
      $region92: #{tpu_custom_call.1} parent=5 // pred_fallthru
        _
    $region6: #{tpu_custom_call.1} parent=1 // loop_footer
      %s32 = sadd.s32 1, %s28
    $region7: #{tpu_custom_call.1} parent=1 // loop_footer_branch
      %27 = sbr.rel target = $region3
    $region8: #{tpu_custom_call.1} parent=1 // loop_exit
      _
    %3325 = vsyncpa [#allocation4], 1
    %s3326 = scalar_lea.sflag [#allocation4], 1
    %3327 = vsyncpa %s3326, 1
    %3328 = vsyncpa [#allocation7], 1
    %s3329 = scalar_lea.sflag [#allocation7], 1
    %3330 = vsyncpa %s3329, 1
    %3331 = vsyncpa [#allocation10], 1
    %3332 = vsyncpa [#allocation5], 1
    %s3333 = scalar_lea.sflag [#allocation5], 1
    %3334 = vsyncpa %s3333, 1

</llo_original>
